<compile_context>
chip_gen: v7x
topology: tpu7x:2x2x1
jax: 0.10.0
libtpu: 0.0.40
codegen_flags: <defaults>
</compile_context>

<pallas_src>
import jax
import jax.numpy as jnp
from jax.experimental import pallas as pl
from jax.experimental.pallas import tpu as pltpu


HIDDEN_SIZES = [256, 128, 64]
INPUT_SIZE = 1
OUTPUT_SIZE = 1

H2_PAD = 128      # layer-2 hidden 64 -> 128 (lane alignment)
OUT_PAD = 128     # fc output 1 -> 128 (lane-dense store)
WEIGHT_DTYPE = jnp.bfloat16


# ----------------------------- Pallas kernel ------------------------------- #

def fused_gru_seq_kernel(
        x_ref, h1i_ref, h2i_ref, h3i_ref,
        w0i_ref, b0i_ref, w0h_ref, b0hn_ref,
        w1i_ref, b1i_ref, w1h_ref, b1hn_ref,
        w2i_ref, b2i_ref, w2h_ref, b2hn_ref,
        wfc_ref, bfc_ref,
        h1o_ref, h2o_ref, h3o_ref, out_ref,
        h1_s, h2_s, h3_s):
    """One time step per grid iteration; weights stay VMEM-resident.

    x: (B, 1)  per step.  Hidden carries live in f32 VMEM scratch:
      h1_s (B,256), h2_s (B,128), h3_s (B,128) [layer-2 padded 64->128].
    Per-layer weights are pre-transposed (in, 3H), bf16; b*i are merged
    (b_ih + b_hh for r,z; b_ih for n) f32 biases of shape (1, 3H); b*hn is
    the separate n-gate hidden bias (1, H).  Layer-2 / fc are lane-padded.
    """
    f32 = jnp.float32
    t = pl.program_id(0)

    @pl.when(t == 0)
    def _init():
        h1_s[...] = h1i_ref[...]
        h2_s[...] = h2i_ref[...]
        h3_s[...] = h3i_ref[...]

    def gru_gates(gi, gh, b_hn, h):
        H = h.shape[-1]
        r = jax.nn.sigmoid(gi[:, 0:H] + gh[:, 0:H])
        z = jax.nn.sigmoid(gi[:, H:2 * H] + gh[:, H:2 * H])
        n = jnp.tanh(gi[:, 2 * H:3 * H] + r * (gh[:, 2 * H:3 * H] + b_hn))
        return (1.0 - z) * n + z * h

    x = x_ref[...]                                            # (B, 1)

    # ---- layer 0: in_size == 1 -> VPU broadcast instead of K=1 MXU pass ----
    h1 = h1_s[...]
    gi0 = x * w0i_ref[...].astype(f32) + b0i_ref[...]
    gh0 = jnp.dot(h1, w0h_ref[...].astype(f32), preferred_element_type=f32)
    h1 = gru_gates(gi0, gh0, b0hn_ref[...], h1)
    h1_s[...] = h1

    # ---- layer 1 (H=128, all gate slices 128-aligned) ----
    h2 = h2_s[...]
    gi1 = jnp.dot(h1, w1i_ref[...].astype(f32),
                  preferred_element_type=f32) + b1i_ref[...]
    gh1 = jnp.dot(h2, w1h_ref[...].astype(f32), preferred_element_type=f32)
    h2 = gru_gates(gi1, gh1, b1hn_ref[...], h2)
    h2_s[...] = h2

    # ---- layer 2 (hidden padded 64 -> 128; padded lanes stay exactly 0) ----
    h3 = h3_s[...]
    gi2 = jnp.dot(h2, w2i_ref[...].astype(f32),
                  preferred_element_type=f32) + b2i_ref[...]
    gh2 = jnp.dot(h3, w2h_ref[...].astype(f32), preferred_element_type=f32)
    h3 = gru_gates(gi2, gh2, b2hn_ref[...], h3)
    h3_s[...] = h3

    # ---- fc + tanh (output padded to 128 lanes: lane-dense store) ----
    out_ref[...] = jnp.tanh(
        jnp.dot(h3, wfc_ref[...].astype(f32), preferred_element_type=f32)
        + bfc_ref[...])

    # ---- write final hidden states back once, at the last step ----
    @pl.when(t == pl.num_programs(0) - 1)
    def _finalize():
        h1o_ref[...] = h1_s[...]
        h2o_ref[...] = h2_s[...]
        h3o_ref[...] = h3_s[...]


# ------------------------------ Wrappers ------------------------------------ #

_WEIGHT_ORDER = ("w0i", "b0i", "w0h", "b0hn",
                 "w1i", "b1i", "w1h", "b1hn",
                 "w2i", "b2i", "w2h", "b2hn",
                 "wfc", "bfc")


def custom_gru_forward_seq(packed, inputs_seq, h_states):
    """Run the cell over a whole (T, B, 1) sequence in ONE pallas_call.

    Returns (outputs (T, B, 1), final_h_states) — each step's semantics are
    identical to CustomGRUModel.forward.
    """
    T, B, _ = inputs_seq.shape
    h1, h2, h3 = h_states
    h3p = jnp.pad(h3, ((0, 0), (0, H2_PAD - h3.shape[1])))   # once per call

    weights = [packed[k] for k in _WEIGHT_ORDER]

    def const_spec(shape):
        return pl.BlockSpec(shape, lambda t, _n=len(shape): (0,) * _n)

    in_specs = ([pl.BlockSpec((None, B, INPUT_SIZE), lambda t: (t, 0, 0)),
                 const_spec((B, HIDDEN_SIZES[0])),
                 const_spec((B, HIDDEN_SIZES[1])),
                 const_spec((B, H2_PAD))]
                + [const_spec(w.shape) for w in weights])

    out_specs = [const_spec((B, HIDDEN_SIZES[0])),
                 const_spec((B, HIDDEN_SIZES[1])),
                 const_spec((B, H2_PAD)),
                 pl.BlockSpec((None, B, OUT_PAD), lambda t: (t, 0, 0))]

    out_shape = (jax.ShapeDtypeStruct((B, HIDDEN_SIZES[0]), jnp.float32),
                 jax.ShapeDtypeStruct((B, HIDDEN_SIZES[1]), jnp.float32),
                 jax.ShapeDtypeStruct((B, H2_PAD), jnp.float32),
                 jax.ShapeDtypeStruct((T, B, OUT_PAD), jnp.float32))

    scratch_shapes = [pltpu.VMEM((B, HIDDEN_SIZES[0]), jnp.float32),
                      pltpu.VMEM((B, HIDDEN_SIZES[1]), jnp.float32),
                      pltpu.VMEM((B, H2_PAD), jnp.float32)]

    h1n, h2n, h3n_p, out_p = pl.pallas_call(
        fused_gru_seq_kernel,
        out_shape=out_shape,
        grid_spec=pltpu.PrefetchScalarGridSpec(
            num_scalar_prefetch=0,
            grid=(T,),
            in_specs=in_specs,
            out_specs=out_specs,
            scratch_shapes=scratch_shapes),
        compiler_params=pltpu.CompilerParams(
            dimension_semantics=("arbitrary",)),
    )(inputs_seq, h1, h2, h3p, *weights)

    outputs = out_p[:, :, :OUTPUT_SIZE]                      # once per call
    new_h_states = [h1n, h2n, h3n_p[:, :HIDDEN_SIZES[2]]]
    return outputs, new_h_states


def custom_gru_forward(packed, input_t, h_states):
    """Exact CustomGRUModel.forward semantics (single step)."""
    outputs, new_h_states = custom_gru_forward_seq(packed, input_t[None],
                                                   h_states)
    return outputs[0], new_h_states


custom_gru_forward_seq_jit = jax.jit(custom_gru_forward_seq)
custom_gru_forward_jit = jax.jit(custom_gru_forward)


# ------------------------- Parameter construction --------------------------- #

def init_params(key, input_size, hidden_sizes, output_size):
    """PyTorch-layout parameters (weights stored pre-transposed as (in, 3H))."""
    params = {"gru_cells": []}
    for i, hidden in enumerate(hidden_sizes):
        in_size = input_size if i == 0 else hidden_sizes[i - 1]
        k = 1.0 / jnp.sqrt(jnp.float32(hidden))
        key, k1, k2, k3, k4 = jax.random.split(key, 5)
        w_ih_t = jax.random.uniform(k1, (in_size, 3 * hidden), jnp.float32, -k, k)
        w_hh_t = jax.random.uniform(k2, (hidden, 3 * hidden), jnp.float32, -k, k)
        b_ih = jax.random.uniform(k3, (1, 3 * hidden), jnp.float32, -k, k)
        b_hh = jax.random.uniform(k4, (1, 3 * hidden), jnp.float32, -k, k)
        params["gru_cells"].append(
            dict(w_ih_t=w_ih_t, w_hh_t=w_hh_t, b_ih=b_ih, b_hh=b_hh))
    kfc = 1.0 / jnp.sqrt(jnp.float32(hidden_sizes[-1]))
    key, k1, k2 = jax.random.split(key, 3)
    params["fc"] = dict(
        w_t=jax.random.uniform(k1, (hidden_sizes[-1], output_size),
                               jnp.float32, -kfc, kfc),
        b=jax.random.uniform(k2, (1, output_size), jnp.float32, -kfc, kfc),
    )
    return params, key


def pack_params(params, weight_dtype=WEIGHT_DTYPE):
    """Pack into kernel layout: merged biases, lane padding, bf16 weights."""
    p0, p1, p2 = params["gru_cells"]
    hr, hp = HIDDEN_SIZES[2], H2_PAD

    def merge_bias(b_ih, b_hh, H):
        # r,z biases added host-side; n-gate hidden bias stays separate.
        b_i = jnp.concatenate(
            [b_ih[:, :2 * H] + b_hh[:, :2 * H], b_ih[:, 2 * H:]], axis=1)
        b_hn = b_hh[:, 2 * H:]
        return b_i, b_hn

    b0i, b0hn = merge_bias(p0["b_ih"], p0["b_hh"], HIDDEN_SIZES[0])
    b1i, b1hn = merge_bias(p1["b_ih"], p1["b_hh"], HIDDEN_SIZES[1])
    b2i_r, b2hn_r = merge_bias(p2["b_ih"], p2["b_hh"], hr)

    def pad_gate_cols(w):
        # (rows, 3*hr) -> (rows, 3*hp): each gate block at a 128-aligned start.
        rows = w.shape[0]
        out = jnp.zeros((rows, 3 * hp), jnp.float32)
        for g in range(3):
            out = out.at[:, g * hp:g * hp + hr].set(w[:, g * hr:(g + 1) * hr])
        return out

    w2i = pad_gate_cols(p2["w_ih_t"])                                   # (128,384)
    b2i = pad_gate_cols(b2i_r)                                          # (1,384)
    w2h = jnp.zeros((hp, 3 * hp), jnp.float32).at[:hr].set(
        pad_gate_cols(p2["w_hh_t"]))                                    # (128,384)
    b2hn = jnp.zeros((1, hp), jnp.float32).at[:, :hr].set(b2hn_r)       # (1,128)

    wfc = jnp.zeros((hp, OUT_PAD), jnp.float32).at[:hr, :OUTPUT_SIZE].set(
        params["fc"]["w_t"])                                            # (128,128)
    bfc = jnp.zeros((1, OUT_PAD), jnp.float32).at[:, :OUTPUT_SIZE].set(
        params["fc"]["b"])                                              # (1,128)

    wd = weight_dtype
    return dict(
        w0i=p0["w_ih_t"].astype(wd), b0i=b0i,
        w0h=p0["w_hh_t"].astype(wd), b0hn=b0hn,
        w1i=p1["w_ih_t"].astype(wd), b1i=b1i,
        w1h=p1["w_hh_t"].astype(wd), b1hn=b1hn,
        w2i=w2i.astype(wd), b2i=b2i, w2h=w2h.astype(wd), b2hn=b2hn,
        wfc=wfc.astype(wd), bfc=bfc,
    )


# ---------------------------- Pure-JAX reference ---------------------------- #

def _quantize_weights_like_kernel(params, weight_dtype=WEIGHT_DTYPE):
    """Round weight matrices through bf16 so the reference matches the kernel."""
    def rt(w):
        return w.astype(weight_dtype).astype(jnp.float32)
    q = {"gru_cells": [], "fc": None}
    for c in params["gru_cells"]:
        q["gru_cells"].append(dict(w_ih_t=rt(c["w_ih_t"]), w_hh_t=rt(c["w_hh_t"]),
                                   b_ih=c["b_ih"], b_hh=c["b_hh"]))
    q["fc"] = dict(w_t=rt(params["fc"]["w_t"]), b=params["fc"]["b"])
    return q


def _ref_forward(params, input_t, h_states):
    out = input_t
    new_h = []
    for p, h in zip(params["gru_cells"], h_states):
        H = h.shape[-1]
        gi = out @ p["w_ih_t"] + p["b_ih"]
        gh = h @ p["w_hh_t"] + p["b_hh"]
        r = jax.nn.sigmoid(gi[:, :H] + gh[:, :H])
        z = jax.nn.sigmoid(gi[:, H:2 * H] + gh[:, H:2 * H])
        n = jnp.tanh(gi[:, 2 * H:] + r * gh[:, 2 * H:])
        h = (1.0 - z) * n + z * h
        out = h
        new_h.append(h)
    output = jnp.tanh(out @ params["fc"]["w_t"] + params["fc"]["b"])
    return output, new_h


def _ref_forward_seq(params, inputs_seq, h_states):
    outs = []
    h = list(h_states)
    for t in range(inputs_seq.shape[0]):
        o, h = _ref_forward(params, inputs_seq[t], h)
        outs.append(o)
    return jnp.stack(outs), h


# --------------------------------- Main ------------------------------------- #

if __name__ == "__main__":
    batch = 8
    seq_len = 8

    key = jax.random.PRNGKey(0)
    params, key = init_params(key, INPUT_SIZE, HIDDEN_SIZES, OUTPUT_SIZE)
    packed = pack_params(params)
    ref_params = _quantize_weights_like_kernel(params)

    key, kx = jax.random.split(key)
    inputs_seq = jax.random.normal(kx, (seq_len, batch, INPUT_SIZE), jnp.float32)

    h_states = []
    for h in HIDDEN_SIZES:
        key, kh = jax.random.split(key)
        h_states.append(jax.random.normal(kh, (batch, h), jnp.float32))

    # ---- sequence path (time loop inside the kernel) ----
    outputs, new_h_states = custom_gru_forward_seq_jit(packed, inputs_seq,
                                                       h_states)
    outputs = jax.block_until_ready(outputs)
    new_h_states = [jax.block_until_ready(h) for h in new_h_states]

    ref_outs, ref_h = _ref_forward_seq(ref_params, inputs_seq, h_states)
    assert outputs.shape == (seq_len, batch, OUTPUT_SIZE)
    assert jnp.allclose(outputs, ref_outs, atol=2e-3, rtol=1e-3)
    for a, b in zip(new_h_states, ref_h):
        assert a.shape == b.shape
        assert jnp.allclose(a, b, atol=2e-3, rtol=1e-3)

    # ---- single-step path (exact CustomGRUModel.forward semantics) ----
    out1, h1_new = custom_gru_forward_jit(packed, inputs_seq[0], h_states)
    out1 = jax.block_until_ready(out1)
    ref_out1, ref_h1 = _ref_forward(ref_params, inputs_seq[0], h_states)
    assert out1.shape == (batch, OUTPUT_SIZE)
    assert jnp.allclose(out1, ref_out1, atol=2e-3, rtol=1e-3)
    for a, b in zip(h1_new, ref_h1):
        assert jnp.allclose(a, b, atol=2e-3, rtol=1e-3)

    print("KERNEL_OK")
</pallas_src>

<mosaic_0001>
module attributes {stable_mosaic.version = 11 : i64} {
  func.func @fused_gru_seq_kernel(%arg0: i32, %arg1: memref<1x8x1xf32, #tpu.memory_space<vmem>>, %arg2: memref<8x256xf32, #tpu.memory_space<vmem>>, %arg3: memref<8x128xf32, #tpu.memory_space<vmem>>, %arg4: memref<8x128xf32, #tpu.memory_space<vmem>>, %arg5: memref<1x768xbf16, #tpu.memory_space<vmem>>, %arg6: memref<1x768xf32, #tpu.memory_space<vmem>>, %arg7: memref<256x768xbf16, #tpu.memory_space<vmem>>, %arg8: memref<1x256xf32, #tpu.memory_space<vmem>>, %arg9: memref<256x384xbf16, #tpu.memory_space<vmem>>, %arg10: memref<1x384xf32, #tpu.memory_space<vmem>>, %arg11: memref<128x384xbf16, #tpu.memory_space<vmem>>, %arg12: memref<1x128xf32, #tpu.memory_space<vmem>>, %arg13: memref<128x384xbf16, #tpu.memory_space<vmem>>, %arg14: memref<1x384xf32, #tpu.memory_space<vmem>>, %arg15: memref<128x384xbf16, #tpu.memory_space<vmem>>, %arg16: memref<1x128xf32, #tpu.memory_space<vmem>>, %arg17: memref<128x128xbf16, #tpu.memory_space<vmem>>, %arg18: memref<1x128xf32, #tpu.memory_space<vmem>>, %arg19: memref<8x256xf32, #tpu.memory_space<vmem>>, %arg20: memref<8x128xf32, #tpu.memory_space<vmem>>, %arg21: memref<8x128xf32, #tpu.memory_space<vmem>>, %arg22: memref<1x8x128xf32, #tpu.memory_space<vmem>>, %arg23: memref<8x256xf32, #tpu.memory_space<vmem>>, %arg24: memref<8x128xf32, #tpu.memory_space<vmem>>, %arg25: memref<8x128xf32, #tpu.memory_space<vmem>>) attributes {dimension_semantics = [#tpu.dimension_semantics<arbitrary>], iteration_bounds = array<i64: 8>, scalar_prefetch = 0 : i64, scratch_operands = 3 : i64, tpu.core_type = #tpu.core_type<tc>, window_params = [{transform_indices = @transform_0, window_bounds = array<i64: 1, 8, 1>}, {pipeline_mode = #tpu.pipeline_mode<synchronous>, transform_indices = @transform_1, window_bounds = array<i64: 8, 256>}, {pipeline_mode = #tpu.pipeline_mode<synchronous>, transform_indices = @transform_2, window_bounds = array<i64: 8, 128>}, {pipeline_mode = #tpu.pipeline_mode<synchronous>, transform_indices = @transform_3, window_bounds = array<i64: 8, 128>}, {pipeline_mode = #tpu.pipeline_mode<synchronous>, transform_indices = @transform_4, window_bounds = array<i64: 1, 768>}, {pipeline_mode = #tpu.pipeline_mode<synchronous>, transform_indices = @transform_5, window_bounds = array<i64: 1, 768>}, {pipeline_mode = #tpu.pipeline_mode<synchronous>, transform_indices = @transform_6, window_bounds = array<i64: 256, 768>}, {pipeline_mode = #tpu.pipeline_mode<synchronous>, transform_indices = @transform_7, window_bounds = array<i64: 1, 256>}, {pipeline_mode = #tpu.pipeline_mode<synchronous>, transform_indices = @transform_8, window_bounds = array<i64: 256, 384>}, {pipeline_mode = #tpu.pipeline_mode<synchronous>, transform_indices = @transform_9, window_bounds = array<i64: 1, 384>}, {pipeline_mode = #tpu.pipeline_mode<synchronous>, transform_indices = @transform_10, window_bounds = array<i64: 128, 384>}, {pipeline_mode = #tpu.pipeline_mode<synchronous>, transform_indices = @transform_11, window_bounds = array<i64: 1, 128>}, {pipeline_mode = #tpu.pipeline_mode<synchronous>, transform_indices = @transform_12, window_bounds = array<i64: 128, 384>}, {pipeline_mode = #tpu.pipeline_mode<synchronous>, transform_indices = @transform_13, window_bounds = array<i64: 1, 384>}, {pipeline_mode = #tpu.pipeline_mode<synchronous>, transform_indices = @transform_14, window_bounds = array<i64: 128, 384>}, {pipeline_mode = #tpu.pipeline_mode<synchronous>, transform_indices = @transform_15, window_bounds = array<i64: 1, 128>}, {pipeline_mode = #tpu.pipeline_mode<synchronous>, transform_indices = @transform_16, window_bounds = array<i64: 128, 128>}, {pipeline_mode = #tpu.pipeline_mode<synchronous>, transform_indices = @transform_17, window_bounds = array<i64: 1, 128>}, {pipeline_mode = #tpu.pipeline_mode<synchronous>, transform_indices = @transform_18, window_bounds = array<i64: 8, 256>}, {pipeline_mode = #tpu.pipeline_mode<synchronous>, transform_indices = @transform_19, window_bounds = array<i64: 8, 128>}, {pipeline_mode = #tpu.pipeline_mode<synchronous>, transform_indices = @transform_20, window_bounds = array<i64: 8, 128>}, {transform_indices = @transform_21, window_bounds = array<i64: 1, 8, 128>}]} {
    %c0_i32 = arith.constant 0 : i32
    %0 = arith.cmpi eq, %arg0, %c0_i32 : i32
    %1 = arith.extui %0 : i1 to i32
    %c0_i32_0 = arith.constant 0 : i32
    %2 = arith.cmpi ne, %1, %c0_i32_0 : i32
    scf.if %2 {
      %c0_61 = arith.constant 0 : index
      %c0_62 = arith.constant 0 : index
      %140 = vector.load %arg2[%c0_61, %c0_62] : memref<8x256xf32, #tpu.memory_space<vmem>>, vector<8x256xf32>
      %c0_63 = arith.constant 0 : index
      %c0_64 = arith.constant 0 : index
      %141 = vector.load %arg23[%c0_63, %c0_64] : memref<8x256xf32, #tpu.memory_space<vmem>>, vector<8x256xf32>
      tpu.vector_store %arg23[%c0_63, %c0_64], %140 {strides = array<i32>} : memref<8x256xf32, #tpu.memory_space<vmem>>, vector<8x256xf32>,
      %c0_65 = arith.constant 0 : index
      %c0_66 = arith.constant 0 : index
      %142 = vector.load %arg3[%c0_65, %c0_66] : memref<8x128xf32, #tpu.memory_space<vmem>>, vector<8x128xf32>
      %c0_67 = arith.constant 0 : index
      %c0_68 = arith.constant 0 : index
      %143 = vector.load %arg24[%c0_67, %c0_68] : memref<8x128xf32, #tpu.memory_space<vmem>>, vector<8x128xf32>
      tpu.vector_store %arg24[%c0_67, %c0_68], %142 {strides = array<i32>} : memref<8x128xf32, #tpu.memory_space<vmem>>, vector<8x128xf32>,
      %c0_69 = arith.constant 0 : index
      %c0_70 = arith.constant 0 : index
      %144 = vector.load %arg4[%c0_69, %c0_70] : memref<8x128xf32, #tpu.memory_space<vmem>>, vector<8x128xf32>
      %c0_71 = arith.constant 0 : index
      %c0_72 = arith.constant 0 : index
      %145 = vector.load %arg25[%c0_71, %c0_72] : memref<8x128xf32, #tpu.memory_space<vmem>>, vector<8x128xf32>
      tpu.vector_store %arg25[%c0_71, %c0_72], %144 {strides = array<i32>} : memref<8x128xf32, #tpu.memory_space<vmem>>, vector<8x128xf32>,
    } else {
    }
    %c0 = arith.constant 0 : index
    %c0_1 = arith.constant 0 : index
    %c0_2 = arith.constant 0 : index
    %3 = vector.load %arg1[%c0, %c0_1, %c0_2] : memref<1x8x1xf32, #tpu.memory_space<vmem>>, vector<1x8x1xf32>
    %4 = vector.shape_cast %3 : vector<1x8x1xf32> to vector<8x1xf32>
    %c0_3 = arith.constant 0 : index
    %c0_4 = arith.constant 0 : index
    %5 = vector.load %arg23[%c0_3, %c0_4] : memref<8x256xf32, #tpu.memory_space<vmem>>, vector<8x256xf32>
    %c0_5 = arith.constant 0 : index
    %c0_6 = arith.constant 0 : index
    %6 = vector.load %arg5[%c0_5, %c0_6] : memref<1x768xbf16, #tpu.memory_space<vmem>>, vector<1x768xbf16>
    %7 = arith.extf %6 : vector<1x768xbf16> to vector<1x768xf32>
    %8 = vector.broadcast %4 : vector<8x1xf32> to vector<8x768xf32>
    %9 = vector.broadcast %7 : vector<1x768xf32> to vector<8x768xf32>
    %10 = arith.mulf %8, %9 : vector<8x768xf32>
    %c0_7 = arith.constant 0 : index
    %c0_8 = arith.constant 0 : index
    %11 = vector.load %arg6[%c0_7, %c0_8] : memref<1x768xf32, #tpu.memory_space<vmem>>, vector<1x768xf32>
    %12 = vector.broadcast %11 : vector<1x768xf32> to vector<8x768xf32>
    %13 = arith.addf %10, %12 : vector<8x768xf32>
    %c0_9 = arith.constant 0 : index
    %c0_10 = arith.constant 0 : index
    %14 = vector.load %arg7[%c0_9, %c0_10] : memref<256x768xbf16, #tpu.memory_space<vmem>>, vector<256x768xbf16>
    %15 = arith.extf %14 : vector<256x768xbf16> to vector<256x768xf32>
    %cst = arith.constant dense<0.000000e+00> : vector<8x768xf32>
    %16 = tpu.matmul %5, %15, %cst {dimension_numbers = #tpu.dot_dimension_numbers<[1], [0], [0], [1], [0, 0, 1, 1], [], []>} : vector<8x256xf32>, vector<256x768xf32>, vector<8x768xf32> -> vector<8x768xf32>
    %c0_11 = arith.constant 0 : index
    %c0_12 = arith.constant 0 : index
    %17 = vector.load %arg8[%c0_11, %c0_12] : memref<1x256xf32, #tpu.memory_space<vmem>>, vector<1x256xf32>
    %18 = vector.extract_strided_slice %13 {offsets = [0, 0], sizes = [8, 256], strides = [1, 1]} : vector<8x768xf32> to vector<8x256xf32>
    %19 = vector.extract_strided_slice %16 {offsets = [0, 0], sizes = [8, 256], strides = [1, 1]} : vector<8x768xf32> to vector<8x256xf32>
    %20 = arith.addf %18, %19 : vector<8x256xf32>
    %21 = arith.negf %20 : vector<8x256xf32>
    %22 = math.exp %21 : vector<8x256xf32>
    %cst_13 = arith.constant 1.000000e+00 : f32
    %23 = vector.broadcast %cst_13 : f32 to vector<8x256xf32>
    %24 = arith.addf %23, %22 : vector<8x256xf32>
    %25 = arith.divf %23, %24 : vector<8x256xf32>
    %26 = vector.extract_strided_slice %13 {offsets = [0, 256], sizes = [8, 256], strides = [1, 1]} : vector<8x768xf32> to vector<8x256xf32>
    %27 = vector.extract_strided_slice %16 {offsets = [0, 256], sizes = [8, 256], strides = [1, 1]} : vector<8x768xf32> to vector<8x256xf32>
    %28 = arith.addf %26, %27 : vector<8x256xf32>
    %29 = arith.negf %28 : vector<8x256xf32>
    %30 = math.exp %29 : vector<8x256xf32>
    %cst_14 = arith.constant 1.000000e+00 : f32
    %31 = vector.broadcast %cst_14 : f32 to vector<8x256xf32>
    %32 = arith.addf %31, %30 : vector<8x256xf32>
    %33 = arith.divf %31, %32 : vector<8x256xf32>
    %34 = vector.extract_strided_slice %13 {offsets = [0, 512], sizes = [8, 256], strides = [1, 1]} : vector<8x768xf32> to vector<8x256xf32>
    %35 = vector.extract_strided_slice %16 {offsets = [0, 512], sizes = [8, 256], strides = [1, 1]} : vector<8x768xf32> to vector<8x256xf32>
    %36 = vector.broadcast %17 : vector<1x256xf32> to vector<8x256xf32>
    %37 = arith.addf %35, %36 : vector<8x256xf32>
    %38 = arith.mulf %25, %37 : vector<8x256xf32>
    %39 = arith.addf %34, %38 : vector<8x256xf32>
    %40 = math.tanh %39 : vector<8x256xf32>
    %cst_15 = arith.constant 1.000000e+00 : f32
    %41 = vector.broadcast %cst_15 : f32 to vector<8x256xf32>
    %42 = arith.subf %41, %33 : vector<8x256xf32>
    %43 = arith.mulf %42, %40 : vector<8x256xf32>
    %44 = arith.mulf %33, %5 : vector<8x256xf32>
    %45 = arith.addf %43, %44 : vector<8x256xf32>
    %c0_16 = arith.constant 0 : index
    %c0_17 = arith.constant 0 : index
    %46 = vector.load %arg23[%c0_16, %c0_17] : memref<8x256xf32, #tpu.memory_space<vmem>>, vector<8x256xf32>
    tpu.vector_store %arg23[%c0_16, %c0_17], %45 {strides = array<i32>} : memref<8x256xf32, #tpu.memory_space<vmem>>, vector<8x256xf32>,
    %c0_18 = arith.constant 0 : index
    %c0_19 = arith.constant 0 : index
    %47 = vector.load %arg24[%c0_18, %c0_19] : memref<8x128xf32, #tpu.memory_space<vmem>>, vector<8x128xf32>
    %c0_20 = arith.constant 0 : index
    %c0_21 = arith.constant 0 : index
    %48 = vector.load %arg9[%c0_20, %c0_21] : memref<256x384xbf16, #tpu.memory_space<vmem>>, vector<256x384xbf16>
    %49 = arith.extf %48 : vector<256x384xbf16> to vector<256x384xf32>
    %cst_22 = arith.constant dense<0.000000e+00> : vector<8x384xf32>
    %50 = tpu.matmul %45, %49, %cst_22 {dimension_numbers = #tpu.dot_dimension_numbers<[1], [0], [0], [1], [0, 0, 1, 1], [], []>} : vector<8x256xf32>, vector<256x384xf32>, vector<8x384xf32> -> vector<8x384xf32>
    %c0_23 = arith.constant 0 : index
    %c0_24 = arith.constant 0 : index
    %51 = vector.load %arg10[%c0_23, %c0_24] : memref<1x384xf32, #tpu.memory_space<vmem>>, vector<1x384xf32>
    %52 = vector.broadcast %51 : vector<1x384xf32> to vector<8x384xf32>
    %53 = arith.addf %50, %52 : vector<8x384xf32>
    %c0_25 = arith.constant 0 : index
    %c0_26 = arith.constant 0 : index
    %54 = vector.load %arg11[%c0_25, %c0_26] : memref<128x384xbf16, #tpu.memory_space<vmem>>, vector<128x384xbf16>
    %55 = arith.extf %54 : vector<128x384xbf16> to vector<128x384xf32>
    %cst_27 = arith.constant dense<0.000000e+00> : vector<8x384xf32>
    %56 = tpu.matmul %47, %55, %cst_27 {dimension_numbers = #tpu.dot_dimension_numbers<[1], [0], [0], [1], [0, 0, 1, 1], [], []>} : vector<8x128xf32>, vector<128x384xf32>, vector<8x384xf32> -> vector<8x384xf32>
    %c0_28 = arith.constant 0 : index
    %c0_29 = arith.constant 0 : index
    %57 = vector.load %arg12[%c0_28, %c0_29] : memref<1x128xf32, #tpu.memory_space<vmem>>, vector<1x128xf32>
    %58 = vector.extract_strided_slice %53 {offsets = [0, 0], sizes = [8, 128], strides = [1, 1]} : vector<8x384xf32> to vector<8x128xf32>
    %59 = vector.extract_strided_slice %56 {offsets = [0, 0], sizes = [8, 128], strides = [1, 1]} : vector<8x384xf32> to vector<8x128xf32>
    %60 = arith.addf %58, %59 : vector<8x128xf32>
    %61 = arith.negf %60 : vector<8x128xf32>
    %62 = math.exp %61 : vector<8x128xf32>
    %cst_30 = arith.constant 1.000000e+00 : f32
    %63 = vector.broadcast %cst_30 : f32 to vector<8x128xf32>
    %64 = arith.addf %63, %62 : vector<8x128xf32>
    %65 = arith.divf %63, %64 : vector<8x128xf32>
    %66 = vector.extract_strided_slice %53 {offsets = [0, 128], sizes = [8, 128], strides = [1, 1]} : vector<8x384xf32> to vector<8x128xf32>
    %67 = vector.extract_strided_slice %56 {offsets = [0, 128], sizes = [8, 128], strides = [1, 1]} : vector<8x384xf32> to vector<8x128xf32>
    %68 = arith.addf %66, %67 : vector<8x128xf32>
    %69 = arith.negf %68 : vector<8x128xf32>
    %70 = math.exp %69 : vector<8x128xf32>
    %cst_31 = arith.constant 1.000000e+00 : f32
    %71 = vector.broadcast %cst_31 : f32 to vector<8x128xf32>
    %72 = arith.addf %71, %70 : vector<8x128xf32>
    %73 = arith.divf %71, %72 : vector<8x128xf32>
    %74 = vector.extract_strided_slice %53 {offsets = [0, 256], sizes = [8, 128], strides = [1, 1]} : vector<8x384xf32> to vector<8x128xf32>
    %75 = vector.extract_strided_slice %56 {offsets = [0, 256], sizes = [8, 128], strides = [1, 1]} : vector<8x384xf32> to vector<8x128xf32>
    %76 = vector.broadcast %57 : vector<1x128xf32> to vector<8x128xf32>
    %77 = arith.addf %75, %76 : vector<8x128xf32>
    %78 = arith.mulf %65, %77 : vector<8x128xf32>
    %79 = arith.addf %74, %78 : vector<8x128xf32>
    %80 = math.tanh %79 : vector<8x128xf32>
    %cst_32 = arith.constant 1.000000e+00 : f32
    %81 = vector.broadcast %cst_32 : f32 to vector<8x128xf32>
    %82 = arith.subf %81, %73 : vector<8x128xf32>
    %83 = arith.mulf %82, %80 : vector<8x128xf32>
    %84 = arith.mulf %73, %47 : vector<8x128xf32>
    %85 = arith.addf %83, %84 : vector<8x128xf32>
    %c0_33 = arith.constant 0 : index
    %c0_34 = arith.constant 0 : index
    %86 = vector.load %arg24[%c0_33, %c0_34] : memref<8x128xf32, #tpu.memory_space<vmem>>, vector<8x128xf32>
    tpu.vector_store %arg24[%c0_33, %c0_34], %85 {strides = array<i32>} : memref<8x128xf32, #tpu.memory_space<vmem>>, vector<8x128xf32>,
    %c0_35 = arith.constant 0 : index
    %c0_36 = arith.constant 0 : index
    %87 = vector.load %arg25[%c0_35, %c0_36] : memref<8x128xf32, #tpu.memory_space<vmem>>, vector<8x128xf32>
    %c0_37 = arith.constant 0 : index
    %c0_38 = arith.constant 0 : index
    %88 = vector.load %arg13[%c0_37, %c0_38] : memref<128x384xbf16, #tpu.memory_space<vmem>>, vector<128x384xbf16>
    %89 = arith.extf %88 : vector<128x384xbf16> to vector<128x384xf32>
    %cst_39 = arith.constant dense<0.000000e+00> : vector<8x384xf32>
    %90 = tpu.matmul %85, %89, %cst_39 {dimension_numbers = #tpu.dot_dimension_numbers<[1], [0], [0], [1], [0, 0, 1, 1], [], []>} : vector<8x128xf32>, vector<128x384xf32>, vector<8x384xf32> -> vector<8x384xf32>
    %c0_40 = arith.constant 0 : index
    %c0_41 = arith.constant 0 : index
    %91 = vector.load %arg14[%c0_40, %c0_41] : memref<1x384xf32, #tpu.memory_space<vmem>>, vector<1x384xf32>
    %92 = vector.broadcast %91 : vector<1x384xf32> to vector<8x384xf32>
    %93 = arith.addf %90, %92 : vector<8x384xf32>
    %c0_42 = arith.constant 0 : index
    %c0_43 = arith.constant 0 : index
    %94 = vector.load %arg15[%c0_42, %c0_43] : memref<128x384xbf16, #tpu.memory_space<vmem>>, vector<128x384xbf16>
    %95 = arith.extf %94 : vector<128x384xbf16> to vector<128x384xf32>
    %cst_44 = arith.constant dense<0.000000e+00> : vector<8x384xf32>
    %96 = tpu.matmul %87, %95, %cst_44 {dimension_numbers = #tpu.dot_dimension_numbers<[1], [0], [0], [1], [0, 0, 1, 1], [], []>} : vector<8x128xf32>, vector<128x384xf32>, vector<8x384xf32> -> vector<8x384xf32>
    %c0_45 = arith.constant 0 : index
    %c0_46 = arith.constant 0 : index
    %97 = vector.load %arg16[%c0_45, %c0_46] : memref<1x128xf32, #tpu.memory_space<vmem>>, vector<1x128xf32>
    %98 = vector.extract_strided_slice %93 {offsets = [0, 0], sizes = [8, 128], strides = [1, 1]} : vector<8x384xf32> to vector<8x128xf32>
    %99 = vector.extract_strided_slice %96 {offsets = [0, 0], sizes = [8, 128], strides = [1, 1]} : vector<8x384xf32> to vector<8x128xf32>
    %100 = arith.addf %98, %99 : vector<8x128xf32>
    %101 = arith.negf %100 : vector<8x128xf32>
    %102 = math.exp %101 : vector<8x128xf32>
    %cst_47 = arith.constant 1.000000e+00 : f32
    %103 = vector.broadcast %cst_47 : f32 to vector<8x128xf32>
    %104 = arith.addf %103, %102 : vector<8x128xf32>
    %105 = arith.divf %103, %104 : vector<8x128xf32>
    %106 = vector.extract_strided_slice %93 {offsets = [0, 128], sizes = [8, 128], strides = [1, 1]} : vector<8x384xf32> to vector<8x128xf32>
    %107 = vector.extract_strided_slice %96 {offsets = [0, 128], sizes = [8, 128], strides = [1, 1]} : vector<8x384xf32> to vector<8x128xf32>
    %108 = arith.addf %106, %107 : vector<8x128xf32>
    %109 = arith.negf %108 : vector<8x128xf32>
    %110 = math.exp %109 : vector<8x128xf32>
    %cst_48 = arith.constant 1.000000e+00 : f32
    %111 = vector.broadcast %cst_48 : f32 to vector<8x128xf32>
    %112 = arith.addf %111, %110 : vector<8x128xf32>
    %113 = arith.divf %111, %112 : vector<8x128xf32>
    %114 = vector.extract_strided_slice %93 {offsets = [0, 256], sizes = [8, 128], strides = [1, 1]} : vector<8x384xf32> to vector<8x128xf32>
    %115 = vector.extract_strided_slice %96 {offsets = [0, 256], sizes = [8, 128], strides = [1, 1]} : vector<8x384xf32> to vector<8x128xf32>
    %116 = vector.broadcast %97 : vector<1x128xf32> to vector<8x128xf32>
    %117 = arith.addf %115, %116 : vector<8x128xf32>
    %118 = arith.mulf %105, %117 : vector<8x128xf32>
    %119 = arith.addf %114, %118 : vector<8x128xf32>
    %120 = math.tanh %119 : vector<8x128xf32>
    %cst_49 = arith.constant 1.000000e+00 : f32
    %121 = vector.broadcast %cst_49 : f32 to vector<8x128xf32>
    %122 = arith.subf %121, %113 : vector<8x128xf32>
    %123 = arith.mulf %122, %120 : vector<8x128xf32>
    %124 = arith.mulf %113, %87 : vector<8x128xf32>
    %125 = arith.addf %123, %124 : vector<8x128xf32>
    %c0_50 = arith.constant 0 : index
    %c0_51 = arith.constant 0 : index
    %126 = vector.load %arg25[%c0_50, %c0_51] : memref<8x128xf32, #tpu.memory_space<vmem>>, vector<8x128xf32>
    tpu.vector_store %arg25[%c0_50, %c0_51], %125 {strides = array<i32>} : memref<8x128xf32, #tpu.memory_space<vmem>>, vector<8x128xf32>,
    %c0_52 = arith.constant 0 : index
    %c0_53 = arith.constant 0 : index
    %127 = vector.load %arg17[%c0_52, %c0_53] : memref<128x128xbf16, #tpu.memory_space<vmem>>, vector<128x128xbf16>
    %128 = arith.extf %127 : vector<128x128xbf16> to vector<128x128xf32>
    %cst_54 = arith.constant dense<0.000000e+00> : vector<8x128xf32>
    %129 = tpu.matmul %125, %128, %cst_54 {dimension_numbers = #tpu.dot_dimension_numbers<[1], [0], [0], [1], [0, 0, 1, 1], [], []>} : vector<8x128xf32>, vector<128x128xf32>, vector<8x128xf32> -> vector<8x128xf32>
    %c0_55 = arith.constant 0 : index
    %c0_56 = arith.constant 0 : index
    %130 = vector.load %arg18[%c0_55, %c0_56] : memref<1x128xf32, #tpu.memory_space<vmem>>, vector<1x128xf32>
    %131 = vector.broadcast %130 : vector<1x128xf32> to vector<8x128xf32>
    %132 = arith.addf %129, %131 : vector<8x128xf32>
    %133 = math.tanh %132 : vector<8x128xf32>
    %c0_57 = arith.constant 0 : index
    %c0_58 = arith.constant 0 : index
    %c0_59 = arith.constant 0 : index
    %134 = vector.load %arg22[%c0_57, %c0_58, %c0_59] : memref<1x8x128xf32, #tpu.memory_space<vmem>>, vector<1x8x128xf32>
    %135 = vector.shape_cast %134 : vector<1x8x128xf32> to vector<8x128xf32>
    %136 = vector.shape_cast %133 : vector<8x128xf32> to vector<1x8x128xf32>
    tpu.vector_store %arg22[%c0_57, %c0_58, %c0_59], %136 {strides = array<i32>} : memref<1x8x128xf32, #tpu.memory_space<vmem>>, vector<1x8x128xf32>,
    %c7_i32 = arith.constant 7 : i32
    %137 = arith.cmpi eq, %arg0, %c7_i32 : i32
    %138 = arith.extui %137 : i1 to i32
    %c0_i32_60 = arith.constant 0 : i32
    %139 = arith.cmpi ne, %138, %c0_i32_60 : i32
    scf.if %139 {
      %c0_61 = arith.constant 0 : index
      %c0_62 = arith.constant 0 : index
      %140 = vector.load %arg23[%c0_61, %c0_62] : memref<8x256xf32, #tpu.memory_space<vmem>>, vector<8x256xf32>
      %c0_63 = arith.constant 0 : index
      %c0_64 = arith.constant 0 : index
      %141 = vector.load %arg19[%c0_63, %c0_64] : memref<8x256xf32, #tpu.memory_space<vmem>>, vector<8x256xf32>
      tpu.vector_store %arg19[%c0_63, %c0_64], %140 {strides = array<i32>} : memref<8x256xf32, #tpu.memory_space<vmem>>, vector<8x256xf32>,
      %c0_65 = arith.constant 0 : index
      %c0_66 = arith.constant 0 : index
      %142 = vector.load %arg24[%c0_65, %c0_66] : memref<8x128xf32, #tpu.memory_space<vmem>>, vector<8x128xf32>
      %c0_67 = arith.constant 0 : index
      %c0_68 = arith.constant 0 : index
      %143 = vector.load %arg20[%c0_67, %c0_68] : memref<8x128xf32, #tpu.memory_space<vmem>>, vector<8x128xf32>
      tpu.vector_store %arg20[%c0_67, %c0_68], %142 {strides = array<i32>} : memref<8x128xf32, #tpu.memory_space<vmem>>, vector<8x128xf32>,
      %c0_69 = arith.constant 0 : index
      %c0_70 = arith.constant 0 : index
      %144 = vector.load %arg25[%c0_69, %c0_70] : memref<8x128xf32, #tpu.memory_space<vmem>>, vector<8x128xf32>
      %c0_71 = arith.constant 0 : index
      %c0_72 = arith.constant 0 : index
      %145 = vector.load %arg21[%c0_71, %c0_72] : memref<8x128xf32, #tpu.memory_space<vmem>>, vector<8x128xf32>
      tpu.vector_store %arg21[%c0_71, %c0_72], %144 {strides = array<i32>} : memref<8x128xf32, #tpu.memory_space<vmem>>, vector<8x128xf32>,
    } else {
    }
    return
  }
  func.func @transform_0(%arg0: i32) -> (i32, i32, i32) {
    %c0_i32 = arith.constant 0 : i32
    %c0_i32_0 = arith.constant 0 : i32
    %c0_i32_1 = arith.constant 0 : i32
    return %arg0, %c0_i32, %c0_i32_0 : i32, i32, i32
  }
  func.func @transform_1(%arg0: i32) -> (i32, i32) {
    %c0_i32 = arith.constant 0 : i32
    %c0_i32_0 = arith.constant 0 : i32
    %c0_i32_1 = arith.constant 0 : i32
    return %c0_i32, %c0_i32_0 : i32, i32
  }
  func.func @transform_2(%arg0: i32) -> (i32, i32) {
    %c0_i32 = arith.constant 0 : i32
    %c0_i32_0 = arith.constant 0 : i32
    %c0_i32_1 = arith.constant 0 : i32
    return %c0_i32, %c0_i32_0 : i32, i32
  }
  func.func @transform_3(%arg0: i32) -> (i32, i32) {
    %c0_i32 = arith.constant 0 : i32
    %c0_i32_0 = arith.constant 0 : i32
    %c0_i32_1 = arith.constant 0 : i32
    return %c0_i32, %c0_i32_0 : i32, i32
  }
  func.func @transform_4(%arg0: i32) -> (i32, i32) {
    %c0_i32 = arith.constant 0 : i32
    %c0_i32_0 = arith.constant 0 : i32
    %c0_i32_1 = arith.constant 0 : i32
    return %c0_i32, %c0_i32_0 : i32, i32
  }
  func.func @transform_5(%arg0: i32) -> (i32, i32) {
    %c0_i32 = arith.constant 0 : i32
    %c0_i32_0 = arith.constant 0 : i32
    %c0_i32_1 = arith.constant 0 : i32
    return %c0_i32, %c0_i32_0 : i32, i32
  }
  func.func @transform_6(%arg0: i32) -> (i32, i32) {
    %c0_i32 = arith.constant 0 : i32
    %c0_i32_0 = arith.constant 0 : i32
    %c0_i32_1 = arith.constant 0 : i32
    return %c0_i32, %c0_i32_0 : i32, i32
  }
  func.func @transform_7(%arg0: i32) -> (i32, i32) {
    %c0_i32 = arith.constant 0 : i32
    %c0_i32_0 = arith.constant 0 : i32
    %c0_i32_1 = arith.constant 0 : i32
    return %c0_i32, %c0_i32_0 : i32, i32
  }
  func.func @transform_8(%arg0: i32) -> (i32, i32) {
    %c0_i32 = arith.constant 0 : i32
    %c0_i32_0 = arith.constant 0 : i32
    %c0_i32_1 = arith.constant 0 : i32
    return %c0_i32, %c0_i32_0 : i32, i32
  }
  func.func @transform_9(%arg0: i32) -> (i32, i32) {
    %c0_i32 = arith.constant 0 : i32
    %c0_i32_0 = arith.constant 0 : i32
    %c0_i32_1 = arith.constant 0 : i32
    return %c0_i32, %c0_i32_0 : i32, i32
  }
  func.func @transform_10(%arg0: i32) -> (i32, i32) {
    %c0_i32 = arith.constant 0 : i32
    %c0_i32_0 = arith.constant 0 : i32
    %c0_i32_1 = arith.constant 0 : i32
    return %c0_i32, %c0_i32_0 : i32, i32
  }
  func.func @transform_11(%arg0: i32) -> (i32, i32) {
    %c0_i32 = arith.constant 0 : i32
    %c0_i32_0 = arith.constant 0 : i32
    %c0_i32_1 = arith.constant 0 : i32
    return %c0_i32, %c0_i32_0 : i32, i32
  }
  func.func @transform_12(%arg0: i32) -> (i32, i32) {
    %c0_i32 = arith.constant 0 : i32
    %c0_i32_0 = arith.constant 0 : i32
    %c0_i32_1 = arith.constant 0 : i32
    return %c0_i32, %c0_i32_0 : i32, i32
  }
  func.func @transform_13(%arg0: i32) -> (i32, i32) {
    %c0_i32 = arith.constant 0 : i32
    %c0_i32_0 = arith.constant 0 : i32
    %c0_i32_1 = arith.constant 0 : i32
    return %c0_i32, %c0_i32_0 : i32, i32
  }
  func.func @transform_14(%arg0: i32) -> (i32, i32) {
    %c0_i32 = arith.constant 0 : i32
    %c0_i32_0 = arith.constant 0 : i32
    %c0_i32_1 = arith.constant 0 : i32
    return %c0_i32, %c0_i32_0 : i32, i32
  }
  func.func @transform_15(%arg0: i32) -> (i32, i32) {
    %c0_i32 = arith.constant 0 : i32
    %c0_i32_0 = arith.constant 0 : i32
    %c0_i32_1 = arith.constant 0 : i32
    return %c0_i32, %c0_i32_0 : i32, i32
  }
  func.func @transform_16(%arg0: i32) -> (i32, i32) {
    %c0_i32 = arith.constant 0 : i32
    %c0_i32_0 = arith.constant 0 : i32
    %c0_i32_1 = arith.constant 0 : i32
    return %c0_i32, %c0_i32_0 : i32, i32
  }
  func.func @transform_17(%arg0: i32) -> (i32, i32) {
    %c0_i32 = arith.constant 0 : i32
    %c0_i32_0 = arith.constant 0 : i32
    %c0_i32_1 = arith.constant 0 : i32
    return %c0_i32, %c0_i32_0 : i32, i32
  }
  func.func @transform_18(%arg0: i32) -> (i32, i32) {
    %c0_i32 = arith.constant 0 : i32
    %c0_i32_0 = arith.constant 0 : i32
    %c0_i32_1 = arith.constant 0 : i32
    return %c0_i32, %c0_i32_0 : i32, i32
  }
  func.func @transform_19(%arg0: i32) -> (i32, i32) {
    %c0_i32 = arith.constant 0 : i32
    %c0_i32_0 = arith.constant 0 : i32
    %c0_i32_1 = arith.constant 0 : i32
    return %c0_i32, %c0_i32_0 : i32, i32
  }
  func.func @transform_20(%arg0: i32) -> (i32, i32) {
    %c0_i32 = arith.constant 0 : i32
    %c0_i32_0 = arith.constant 0 : i32
    %c0_i32_1 = arith.constant 0 : i32
    return %c0_i32, %c0_i32_0 : i32, i32
  }
  func.func @transform_21(%arg0: i32) -> (i32, i32, i32) {
    %c0_i32 = arith.constant 0 : i32
    %c0_i32_0 = arith.constant 0 : i32
    %c0_i32_1 = arith.constant 0 : i32
    return %arg0, %c0_i32, %c0_i32_0 : i32, i32, i32
  }
}

</mosaic_0001>

<llo_original>
// kernel: custom_gru_forward_seq.1
$region0: #{custom_gru_forward_seq.1}
  #allocation0 [shape = 'u32[]', space=smem, size = 0x4, offset = 0x4, fixed_abs, tag = 'smem constant byte address 0x4 - core index']
  #allocation1 [shape = 'u32[144,128]{1,0:T(1,128)}', space=vmem, size = 0x12000, scoped, tag = 'internal scratch']
  #allocation2 [shape = 'f32[8,256]{1,0:T(8,128)}', space=vmem, size = 0x2000, scoped, tag = 'scratch operand']
  #allocation3 [shape = 'f32[8,128]{1,0:T(8,128)}', space=vmem, size = 0x1000, scoped, tag = 'scratch operand']
  #allocation4 [shape = 'f32[8,128]{1,0:T(8,128)}', space=vmem, size = 0x1000, scoped, tag = 'scratch operand']
  %s0 = inlined_call_operand.vmem [shape: f32[8,8,1], index: 0, kind: input, shape index: {}]
  %s1 = inlined_call_operand.vmem [shape: f32[8,256], index: 1, kind: input, shape index: {}]
  %s2 = inlined_call_operand.vmem [shape: f32[8,128], index: 2, kind: input, shape index: {}]
  %s3 = inlined_call_operand.vmem [shape: f32[8,128], index: 3, kind: input, shape index: {}]
  %s4 = inlined_call_operand.vmem [shape: bf16[1,768], index: 4, kind: input, shape index: {}]
  %s5 = inlined_call_operand.vmem [shape: f32[1,768], index: 5, kind: input, shape index: {}]
  %s6 = inlined_call_operand.hbm [shape: bf16[256,768], index: 6, kind: input, shape index: {}]
  %s7 = inlined_call_operand.vmem [shape: f32[1,256], index: 7, kind: input, shape index: {}]
  %s8 = inlined_call_operand.hbm [shape: bf16[256,384], index: 8, kind: input, shape index: {}]
  %s9 = inlined_call_operand.vmem [shape: f32[1,384], index: 9, kind: input, shape index: {}]
  %s10 = inlined_call_operand.hbm [shape: bf16[128,384], index: 10, kind: input, shape index: {}]
  %s11 = inlined_call_operand.vmem [shape: f32[1,128], index: 11, kind: input, shape index: {}]
  %s12 = inlined_call_operand.hbm [shape: bf16[128,384], index: 12, kind: input, shape index: {}]
  %s13 = inlined_call_operand.vmem [shape: f32[1,384], index: 13, kind: input, shape index: {}]
  %s14 = inlined_call_operand.hbm [shape: bf16[128,384], index: 14, kind: input, shape index: {}]
  %s15 = inlined_call_operand.vmem [shape: f32[1,128], index: 15, kind: input, shape index: {}]
  %s16 = inlined_call_operand.vmem [shape: bf16[128,128], index: 16, kind: input, shape index: {}]
  %s17 = inlined_call_operand.vmem [shape: f32[1,128], index: 17, kind: input, shape index: {}]
  %s18 = inlined_call_operand.hbm [shape: f32[8,256], index: 18, kind: output, shape index: {0}]
  %s19 = inlined_call_operand.hbm [shape: f32[8,128], index: 19, kind: output, shape index: {1}]
  %s20 = inlined_call_operand.hbm [shape: f32[8,128], index: 20, kind: output, shape index: {2}]
  %s21 = inlined_call_operand.vmem [shape: f32[8,8,128], index: 21, kind: output, shape index: {3}]
  %22 = xla_tuple %s18, %s19, %s20, %s21
  %s23 = sld [smem:[#allocation0]]
  $region157: #{custom_gru_forward_seq.1} parent=0
    _
  %s25 = ssub.s32 1, %s23
  %s26 = scalar_select 0, %s25, %s23
  $region1: #{custom_gru_forward_seq.1} parent=0
    #allocation5 [shape = 'u8[393216]{0}', space=vmem, size = 0x60000, scoped, tag = 'input window, operand 6, single buffered']
    #allocation6 [shape = 's32[2]{0}', space=sflag, size = 0x8, scoped, tag = 'scoped memory for custom_gru_forward_seq.1']
    #allocation7 [shape = 's32[2]{0}', space=sflag, size = 0x8, scoped, tag = 'scoped memory for custom_gru_forward_seq.1']
    #allocation8 [shape = 'u8[196608]{0}', space=vmem, size = 0x30000, scoped, tag = 'input window, operand 8, single buffered']
    #allocation9 [shape = 's32[1]{0}', space=sflag, size = 0x4, scoped, tag = 'scoped memory for custom_gru_forward_seq.1']
    #allocation10 [shape = 'u8[98304]{0}', space=vmem, size = 0x18000, scoped, tag = 'input window, operand 10, single buffered']
    #allocation11 [shape = 'u8[98304]{0}', space=vmem, size = 0x18000, scoped, tag = 'input window, operand 12, single buffered']
    #allocation12 [shape = 's32[1]{0}', space=sflag, size = 0x4, scoped, tag = 'scoped memory for custom_gru_forward_seq.1']
    #allocation13 [shape = 'u8[98304]{0}', space=vmem, size = 0x18000, scoped, tag = 'input window, operand 14, single buffered']
    #allocation14 [shape = 'u8[8192]{0}', space=vmem, size = 0x2000, scoped, tag = 'output window, operand 0, single buffered']
    #allocation15 [shape = 'u8[4096]{0}', space=vmem, size = 0x1000, scoped, tag = 'output window, operand 1, single buffered']
    #allocation16 [shape = 's32[1]{0}', space=sflag, size = 0x4, scoped, tag = 'scoped memory for custom_gru_forward_seq.1']
    #allocation17 [shape = 'u8[4096]{0}', space=vmem, size = 0x1000, scoped, tag = 'output window, operand 2, single buffered']
    %27 = vsyncpa [#allocation6], 0
    %28 = vsyncpa [#allocation9], 0
    %29 = vsyncpa [#allocation12], 0
    %30 = vsyncpa [#allocation7], 0
    %31 = vsyncpa [#allocation16], 0
    loop: start=0, step=1, limit=10
    $region2: #{custom_gru_forward_seq.1} parent=1 // loop_pre_header
      _
    $region3: #{custom_gru_forward_seq.1} parent=1 // loop_header
      %s33 = sphi 0, %s37
      %p34 = scmp.ge.s32.totalorder %s33, 10
      %s43 = sphi 0, %s45
      %s46 = sphi 0, %s43
      %s47 = sphi 0, %s46
      %s63 = sphi 0, %s47
      %s67 = sphi 0, %s67
      %s69 = sphi 0, %s67
      %s70 = sphi 0, %s69
      %s84 = sphi 0, %s70
      %s88 = sphi 0, %s88
      %s90 = sphi 0, %s88
      %s91 = sphi 0, %s90
      %s105 = sphi 0, %s91
      %s109 = sphi 0, %s109
      %s111 = sphi 0, %s109
      %s112 = sphi 0, %s111
      %s126 = sphi 0, %s112
      %s130 = sphi 0, %s130
      %s132 = sphi 0, %s130
      %s133 = sphi 0, %s132
      %s147 = sphi 0, %s133
      %s151 = sphi 0, %s151
      %s153 = sphi 0, %s151
      %s154 = sphi 0, %s153
      %s168 = sphi 0, %s154
      %s172 = sphi 0, %s172
      %s174 = sphi 0, %s172
      %s175 = sphi 0, %s174
      %s189 = sphi 0, %s175
      %s193 = sphi 0, %s193
      %s195 = sphi 0, %s193
      %s196 = sphi 0, %s195
      %s210 = sphi 0, %s196
      %s214 = sphi 0, %s214
      %s216 = sphi 0, %s214
      %s217 = sphi 0, %s216
      %s231 = sphi 0, %s217
      %s235 = sphi 0, %s235
      %s237 = sphi 0, %s235
      %s238 = sphi 0, %s237
      %s252 = sphi 0, %s238
      %s256 = sphi 0, %s256
      %s258 = sphi 0, %s256
      %s259 = sphi 0, %s258
      %s273 = sphi 0, %s259
      %s277 = sphi 0, %s277
      %s279 = sphi 0, %s277
      %s280 = sphi 0, %s279
      %s294 = sphi 0, %s280
      %s298 = sphi 0, %s298
      %s300 = sphi 0, %s298
      %s301 = sphi 0, %s300
      %s315 = sphi 0, %s301
      %s319 = sphi 0, %s319
      %s321 = sphi 0, %s319
      %s322 = sphi 0, %s321
      %s336 = sphi 0, %s322
      %s340 = sphi 0, %s340
      %s342 = sphi 0, %s340
      %s343 = sphi 0, %s342
      %s357 = sphi 0, %s343
      %s361 = sphi 0, %s361
      %s363 = sphi 0, %s361
      %s364 = sphi 0, %s363
      %s378 = sphi 0, %s364
      %s382 = sphi 0, %s382
      %s384 = sphi 0, %s382
      %s385 = sphi 0, %s384
      %s399 = sphi 0, %s385
      %s403 = sphi 0, %s403
      %s405 = sphi 0, %s403
      %s406 = sphi 0, %s405
      %s420 = sphi 0, %s406
      %s424 = sphi 0, %s424
      %s426 = sphi 0, %s424
      %s427 = sphi 0, %s426
      %s441 = sphi 0, %s427
      %s445 = sphi 0, %s445
      %s447 = sphi 0, %s445
      %s448 = sphi 0, %s447
      %s462 = sphi 0, %s448
      %s466 = sphi 0, %s466
      %s468 = sphi 0, %s466
      %s469 = sphi 0, %s468
      %s483 = sphi 0, %s469
      %s489 = sphi 0, %s491
      %s492 = sphi 0, %s489
      %s493 = sphi 0, %s492
      %s509 = sphi 0, %s493
    $region4: #{custom_gru_forward_seq.1} parent=1 // loop_header_branch
      %36 = sbr.rel (%p34) target = $region8
    $region5: #{custom_gru_forward_seq.1} parent=1 // loop_body
      %s38 = ssub.s32 %s33, 1
      %s39 = ssub.s32 %s33, 2
      %s40 = sadd.s32 %s33, 1
      %s41 = ssub.s32 %s33, %s40
      %p42 = scmp.eq.s32.totalorder %s41, 0
      %s44 = sadd.s32 %s43, 1
      %s45 = scalar_select %p42, %s43, %s44
      %p48 = pneg %p42
      %p49 = scmp.eq.s32.totalorder %s33, 7
      %p50 = por %p48, %p49
      %p51 = scmp.ne.s32.totalorder %s43, %s46
      %p52 = scmp.eq.s32.totalorder %s33, 0
      %p53 = por %p51, %p52
      %p54 = scmp.ne.s32.totalorder %s43, %s46
      %p55 = scmp.eq.s32.totalorder %s38, 7
      %p56 = por %p54, %p55
      %p57 = scmp.ne.s32.totalorder %s46, %s47
      %p58 = scmp.eq.s32.totalorder %s38, 0
      %p59 = por %p57, %p58
      %p60 = scmp.ne.s32.totalorder %s46, %s47
      %p61 = scmp.eq.s32.totalorder %s39, 7
      %p62 = por %p60, %p61
      %p64 = scmp.ne.s32.totalorder %s47, %s63
      %p65 = scmp.eq.s32.totalorder %s39, 0
      %p66 = por %p64, %p65
      %s68 = sadd.s32 %s67, 1
      %p71 = scmp.eq.s32.totalorder %s33, 7
      %p72 = scmp.ne.s32.totalorder %s67, %s69
      %p73 = scmp.eq.s32.totalorder %s33, 0
      %p74 = por %p72, %p73
      %p75 = scmp.ne.s32.totalorder %s67, %s69
      %p76 = scmp.eq.s32.totalorder %s38, 7
      %p77 = por %p75, %p76
      %p78 = scmp.ne.s32.totalorder %s69, %s70
      %p79 = scmp.eq.s32.totalorder %s38, 0
      %p80 = por %p78, %p79
      %p81 = scmp.ne.s32.totalorder %s69, %s70
      %p82 = scmp.eq.s32.totalorder %s39, 7
      %p83 = por %p81, %p82
      %p85 = scmp.ne.s32.totalorder %s70, %s84
      %p86 = scmp.eq.s32.totalorder %s39, 0
      %p87 = por %p85, %p86
      %s89 = sadd.s32 %s88, 1
      %p92 = scmp.eq.s32.totalorder %s33, 7
      %p93 = scmp.ne.s32.totalorder %s88, %s90
      %p94 = scmp.eq.s32.totalorder %s33, 0
      %p95 = por %p93, %p94
      %p96 = scmp.ne.s32.totalorder %s88, %s90
      %p97 = scmp.eq.s32.totalorder %s38, 7
      %p98 = por %p96, %p97
      %p99 = scmp.ne.s32.totalorder %s90, %s91
      %p100 = scmp.eq.s32.totalorder %s38, 0
      %p101 = por %p99, %p100
      %p102 = scmp.ne.s32.totalorder %s90, %s91
      %p103 = scmp.eq.s32.totalorder %s39, 7
      %p104 = por %p102, %p103
      %p106 = scmp.ne.s32.totalorder %s91, %s105
      %p107 = scmp.eq.s32.totalorder %s39, 0
      %p108 = por %p106, %p107
      %s110 = sadd.s32 %s109, 1
      %p113 = scmp.eq.s32.totalorder %s33, 7
      %p114 = scmp.ne.s32.totalorder %s109, %s111
      %p115 = scmp.eq.s32.totalorder %s33, 0
      %p116 = por %p114, %p115
      %p117 = scmp.ne.s32.totalorder %s109, %s111
      %p118 = scmp.eq.s32.totalorder %s38, 7
      %p119 = por %p117, %p118
      %p120 = scmp.ne.s32.totalorder %s111, %s112
      %p121 = scmp.eq.s32.totalorder %s38, 0
      %p122 = por %p120, %p121
      %p123 = scmp.ne.s32.totalorder %s111, %s112
      %p124 = scmp.eq.s32.totalorder %s39, 7
      %p125 = por %p123, %p124
      %p127 = scmp.ne.s32.totalorder %s112, %s126
      %p128 = scmp.eq.s32.totalorder %s39, 0
      %p129 = por %p127, %p128
      %s131 = sadd.s32 %s130, 1
      %p134 = scmp.eq.s32.totalorder %s33, 7
      %p135 = scmp.ne.s32.totalorder %s130, %s132
      %p136 = scmp.eq.s32.totalorder %s33, 0
      %p137 = por %p135, %p136
      %p138 = scmp.ne.s32.totalorder %s130, %s132
      %p139 = scmp.eq.s32.totalorder %s38, 7
      %p140 = por %p138, %p139
      %p141 = scmp.ne.s32.totalorder %s132, %s133
      %p142 = scmp.eq.s32.totalorder %s38, 0
      %p143 = por %p141, %p142
      %p144 = scmp.ne.s32.totalorder %s132, %s133
      %p145 = scmp.eq.s32.totalorder %s39, 7
      %p146 = por %p144, %p145
      %p148 = scmp.ne.s32.totalorder %s133, %s147
      %p149 = scmp.eq.s32.totalorder %s39, 0
      %p150 = por %p148, %p149
      %s152 = sadd.s32 %s151, 1
      %p155 = scmp.eq.s32.totalorder %s33, 7
      %p156 = scmp.ne.s32.totalorder %s151, %s153
      %p157 = scmp.eq.s32.totalorder %s33, 0
      %p158 = por %p156, %p157
      %p159 = scmp.ne.s32.totalorder %s151, %s153
      %p160 = scmp.eq.s32.totalorder %s38, 7
      %p161 = por %p159, %p160
      %p162 = scmp.ne.s32.totalorder %s153, %s154
      %p163 = scmp.eq.s32.totalorder %s38, 0
      %p164 = por %p162, %p163
      %p165 = scmp.ne.s32.totalorder %s153, %s154
      %p166 = scmp.eq.s32.totalorder %s39, 7
      %p167 = por %p165, %p166
      %p169 = scmp.ne.s32.totalorder %s154, %s168
      %p170 = scmp.eq.s32.totalorder %s39, 0
      %p171 = por %p169, %p170
      %s173 = sadd.s32 %s172, 1
      %p176 = scmp.eq.s32.totalorder %s33, 7
      %p177 = scmp.ne.s32.totalorder %s172, %s174
      %p178 = scmp.eq.s32.totalorder %s33, 0
      %p179 = por %p177, %p178
      %p180 = scmp.ne.s32.totalorder %s172, %s174
      %p181 = scmp.eq.s32.totalorder %s38, 7
      %p182 = por %p180, %p181
      %p183 = scmp.ne.s32.totalorder %s174, %s175
      %p184 = scmp.eq.s32.totalorder %s38, 0
      %p185 = por %p183, %p184
      %p186 = scmp.ne.s32.totalorder %s174, %s175
      %p187 = scmp.eq.s32.totalorder %s39, 7
      %p188 = por %p186, %p187
      %p190 = scmp.ne.s32.totalorder %s175, %s189
      %p191 = scmp.eq.s32.totalorder %s39, 0
      %p192 = por %p190, %p191
      %s194 = sadd.s32 %s193, 1
      %p197 = scmp.eq.s32.totalorder %s33, 7
      %p198 = scmp.ne.s32.totalorder %s193, %s195
      %p199 = scmp.eq.s32.totalorder %s33, 0
      %p200 = por %p198, %p199
      %p201 = scmp.ne.s32.totalorder %s193, %s195
      %p202 = scmp.eq.s32.totalorder %s38, 7
      %p203 = por %p201, %p202
      %p204 = scmp.ne.s32.totalorder %s195, %s196
      %p205 = scmp.eq.s32.totalorder %s38, 0
      %p206 = por %p204, %p205
      %p207 = scmp.ne.s32.totalorder %s195, %s196
      %p208 = scmp.eq.s32.totalorder %s39, 7
      %p209 = por %p207, %p208
      %p211 = scmp.ne.s32.totalorder %s196, %s210
      %p212 = scmp.eq.s32.totalorder %s39, 0
      %p213 = por %p211, %p212
      %s215 = sadd.s32 %s214, 1
      %p218 = scmp.eq.s32.totalorder %s33, 7
      %p219 = scmp.ne.s32.totalorder %s214, %s216
      %p220 = scmp.eq.s32.totalorder %s33, 0
      %p221 = por %p219, %p220
      %p222 = scmp.ne.s32.totalorder %s214, %s216
      %p223 = scmp.eq.s32.totalorder %s38, 7
      %p224 = por %p222, %p223
      %p225 = scmp.ne.s32.totalorder %s216, %s217
      %p226 = scmp.eq.s32.totalorder %s38, 0
      %p227 = por %p225, %p226
      %p228 = scmp.ne.s32.totalorder %s216, %s217
      %p229 = scmp.eq.s32.totalorder %s39, 7
      %p230 = por %p228, %p229
      %p232 = scmp.ne.s32.totalorder %s217, %s231
      %p233 = scmp.eq.s32.totalorder %s39, 0
      %p234 = por %p232, %p233
      %s236 = sadd.s32 %s235, 1
      %p239 = scmp.eq.s32.totalorder %s33, 7
      %p240 = scmp.ne.s32.totalorder %s235, %s237
      %p241 = scmp.eq.s32.totalorder %s33, 0
      %p242 = por %p240, %p241
      %p243 = scmp.ne.s32.totalorder %s235, %s237
      %p244 = scmp.eq.s32.totalorder %s38, 7
      %p245 = por %p243, %p244
      %p246 = scmp.ne.s32.totalorder %s237, %s238
      %p247 = scmp.eq.s32.totalorder %s38, 0
      %p248 = por %p246, %p247
      %p249 = scmp.ne.s32.totalorder %s237, %s238
      %p250 = scmp.eq.s32.totalorder %s39, 7
      %p251 = por %p249, %p250
      %p253 = scmp.ne.s32.totalorder %s238, %s252
      %p254 = scmp.eq.s32.totalorder %s39, 0
      %p255 = por %p253, %p254
      %s257 = sadd.s32 %s256, 1
      %p260 = scmp.eq.s32.totalorder %s33, 7
      %p261 = scmp.ne.s32.totalorder %s256, %s258
      %p262 = scmp.eq.s32.totalorder %s33, 0
      %p263 = por %p261, %p262
      %p264 = scmp.ne.s32.totalorder %s256, %s258
      %p265 = scmp.eq.s32.totalorder %s38, 7
      %p266 = por %p264, %p265
      %p267 = scmp.ne.s32.totalorder %s258, %s259
      %p268 = scmp.eq.s32.totalorder %s38, 0
      %p269 = por %p267, %p268
      %p270 = scmp.ne.s32.totalorder %s258, %s259
      %p271 = scmp.eq.s32.totalorder %s39, 7
      %p272 = por %p270, %p271
      %p274 = scmp.ne.s32.totalorder %s259, %s273
      %p275 = scmp.eq.s32.totalorder %s39, 0
      %p276 = por %p274, %p275
      %s278 = sadd.s32 %s277, 1
      %p281 = scmp.eq.s32.totalorder %s33, 7
      %p282 = scmp.ne.s32.totalorder %s277, %s279
      %p283 = scmp.eq.s32.totalorder %s33, 0
      %p284 = por %p282, %p283
      %p285 = scmp.ne.s32.totalorder %s277, %s279
      %p286 = scmp.eq.s32.totalorder %s38, 7
      %p287 = por %p285, %p286
      %p288 = scmp.ne.s32.totalorder %s279, %s280
      %p289 = scmp.eq.s32.totalorder %s38, 0
      %p290 = por %p288, %p289
      %p291 = scmp.ne.s32.totalorder %s279, %s280
      %p292 = scmp.eq.s32.totalorder %s39, 7
      %p293 = por %p291, %p292
      %p295 = scmp.ne.s32.totalorder %s280, %s294
      %p296 = scmp.eq.s32.totalorder %s39, 0
      %p297 = por %p295, %p296
      %s299 = sadd.s32 %s298, 1
      %p302 = scmp.eq.s32.totalorder %s33, 7
      %p303 = scmp.ne.s32.totalorder %s298, %s300
      %p304 = scmp.eq.s32.totalorder %s33, 0
      %p305 = por %p303, %p304
      %p306 = scmp.ne.s32.totalorder %s298, %s300
      %p307 = scmp.eq.s32.totalorder %s38, 7
      %p308 = por %p306, %p307
      %p309 = scmp.ne.s32.totalorder %s300, %s301
      %p310 = scmp.eq.s32.totalorder %s38, 0
      %p311 = por %p309, %p310
      %p312 = scmp.ne.s32.totalorder %s300, %s301
      %p313 = scmp.eq.s32.totalorder %s39, 7
      %p314 = por %p312, %p313
      %p316 = scmp.ne.s32.totalorder %s301, %s315
      %p317 = scmp.eq.s32.totalorder %s39, 0
      %p318 = por %p316, %p317
      %s320 = sadd.s32 %s319, 1
      %p323 = scmp.eq.s32.totalorder %s33, 7
      %p324 = scmp.ne.s32.totalorder %s319, %s321
      %p325 = scmp.eq.s32.totalorder %s33, 0
      %p326 = por %p324, %p325
      %p327 = scmp.ne.s32.totalorder %s319, %s321
      %p328 = scmp.eq.s32.totalorder %s38, 7
      %p329 = por %p327, %p328
      %p330 = scmp.ne.s32.totalorder %s321, %s322
      %p331 = scmp.eq.s32.totalorder %s38, 0
      %p332 = por %p330, %p331
      %p333 = scmp.ne.s32.totalorder %s321, %s322
      %p334 = scmp.eq.s32.totalorder %s39, 7
      %p335 = por %p333, %p334
      %p337 = scmp.ne.s32.totalorder %s322, %s336
      %p338 = scmp.eq.s32.totalorder %s39, 0
      %p339 = por %p337, %p338
      %s341 = sadd.s32 %s340, 1
      %p344 = scmp.eq.s32.totalorder %s33, 7
      %p345 = scmp.ne.s32.totalorder %s340, %s342
      %p346 = scmp.eq.s32.totalorder %s33, 0
      %p347 = por %p345, %p346
      %p348 = scmp.ne.s32.totalorder %s340, %s342
      %p349 = scmp.eq.s32.totalorder %s38, 7
      %p350 = por %p348, %p349
      %p351 = scmp.ne.s32.totalorder %s342, %s343
      %p352 = scmp.eq.s32.totalorder %s38, 0
      %p353 = por %p351, %p352
      %p354 = scmp.ne.s32.totalorder %s342, %s343
      %p355 = scmp.eq.s32.totalorder %s39, 7
      %p356 = por %p354, %p355
      %p358 = scmp.ne.s32.totalorder %s343, %s357
      %p359 = scmp.eq.s32.totalorder %s39, 0
      %p360 = por %p358, %p359
      %s362 = sadd.s32 %s361, 1
      %p365 = scmp.eq.s32.totalorder %s33, 7
      %p366 = scmp.ne.s32.totalorder %s361, %s363
      %p367 = scmp.eq.s32.totalorder %s33, 0
      %p368 = por %p366, %p367
      %p369 = scmp.ne.s32.totalorder %s361, %s363
      %p370 = scmp.eq.s32.totalorder %s38, 7
      %p371 = por %p369, %p370
      %p372 = scmp.ne.s32.totalorder %s363, %s364
      %p373 = scmp.eq.s32.totalorder %s38, 0
      %p374 = por %p372, %p373
      %p375 = scmp.ne.s32.totalorder %s363, %s364
      %p376 = scmp.eq.s32.totalorder %s39, 7
      %p377 = por %p375, %p376
      %p379 = scmp.ne.s32.totalorder %s364, %s378
      %p380 = scmp.eq.s32.totalorder %s39, 0
      %p381 = por %p379, %p380
      %s383 = sadd.s32 %s382, 1
      %p386 = scmp.eq.s32.totalorder %s33, 7
      %p387 = scmp.ne.s32.totalorder %s382, %s384
      %p388 = scmp.eq.s32.totalorder %s33, 0
      %p389 = por %p387, %p388
      %p390 = scmp.ne.s32.totalorder %s382, %s384
      %p391 = scmp.eq.s32.totalorder %s38, 7
      %p392 = por %p390, %p391
      %p393 = scmp.ne.s32.totalorder %s384, %s385
      %p394 = scmp.eq.s32.totalorder %s38, 0
      %p395 = por %p393, %p394
      %p396 = scmp.ne.s32.totalorder %s384, %s385
      %p397 = scmp.eq.s32.totalorder %s39, 7
      %p398 = por %p396, %p397
      %p400 = scmp.ne.s32.totalorder %s385, %s399
      %p401 = scmp.eq.s32.totalorder %s39, 0
      %p402 = por %p400, %p401
      %s404 = sadd.s32 %s403, 1
      %p407 = scmp.eq.s32.totalorder %s33, 7
      %p408 = scmp.ne.s32.totalorder %s403, %s405
      %p409 = scmp.eq.s32.totalorder %s33, 0
      %p410 = por %p408, %p409
      %p411 = scmp.ne.s32.totalorder %s403, %s405
      %p412 = scmp.eq.s32.totalorder %s38, 7
      %p413 = por %p411, %p412
      %p414 = scmp.ne.s32.totalorder %s405, %s406
      %p415 = scmp.eq.s32.totalorder %s38, 0
      %p416 = por %p414, %p415
      %p417 = scmp.ne.s32.totalorder %s405, %s406
      %p418 = scmp.eq.s32.totalorder %s39, 7
      %p419 = por %p417, %p418
      %p421 = scmp.ne.s32.totalorder %s406, %s420
      %p422 = scmp.eq.s32.totalorder %s39, 0
      %p423 = por %p421, %p422
      %s425 = sadd.s32 %s424, 1
      %p428 = scmp.eq.s32.totalorder %s33, 7
      %p429 = scmp.ne.s32.totalorder %s424, %s426
      %p430 = scmp.eq.s32.totalorder %s33, 0
      %p431 = por %p429, %p430
      %p432 = scmp.ne.s32.totalorder %s424, %s426
      %p433 = scmp.eq.s32.totalorder %s38, 7
      %p434 = por %p432, %p433
      %p435 = scmp.ne.s32.totalorder %s426, %s427
      %p436 = scmp.eq.s32.totalorder %s38, 0
      %p437 = por %p435, %p436
      %p438 = scmp.ne.s32.totalorder %s426, %s427
      %p439 = scmp.eq.s32.totalorder %s39, 7
      %p440 = por %p438, %p439
      %p442 = scmp.ne.s32.totalorder %s427, %s441
      %p443 = scmp.eq.s32.totalorder %s39, 0
      %p444 = por %p442, %p443
      %s446 = sadd.s32 %s445, 1
      %p449 = scmp.eq.s32.totalorder %s33, 7
      %p450 = scmp.ne.s32.totalorder %s445, %s447
      %p451 = scmp.eq.s32.totalorder %s33, 0
      %p452 = por %p450, %p451
      %p453 = scmp.ne.s32.totalorder %s445, %s447
      %p454 = scmp.eq.s32.totalorder %s38, 7
      %p455 = por %p453, %p454
      %p456 = scmp.ne.s32.totalorder %s447, %s448
      %p457 = scmp.eq.s32.totalorder %s38, 0
      %p458 = por %p456, %p457
      %p459 = scmp.ne.s32.totalorder %s447, %s448
      %p460 = scmp.eq.s32.totalorder %s39, 7
      %p461 = por %p459, %p460
      %p463 = scmp.ne.s32.totalorder %s448, %s462
      %p464 = scmp.eq.s32.totalorder %s39, 0
      %p465 = por %p463, %p464
      %s467 = sadd.s32 %s466, 1
      %p470 = scmp.eq.s32.totalorder %s33, 7
      %p471 = scmp.ne.s32.totalorder %s466, %s468
      %p472 = scmp.eq.s32.totalorder %s33, 0
      %p473 = por %p471, %p472
      %p474 = scmp.ne.s32.totalorder %s466, %s468
      %p475 = scmp.eq.s32.totalorder %s38, 7
      %p476 = por %p474, %p475
      %p477 = scmp.ne.s32.totalorder %s468, %s469
      %p478 = scmp.eq.s32.totalorder %s38, 0
      %p479 = por %p477, %p478
      %p480 = scmp.ne.s32.totalorder %s468, %s469
      %p481 = scmp.eq.s32.totalorder %s39, 7
      %p482 = por %p480, %p481
      %p484 = scmp.ne.s32.totalorder %s469, %s483
      %p485 = scmp.eq.s32.totalorder %s39, 0
      %p486 = por %p484, %p485
      %s487 = ssub.s32 %s33, %s40
      %p488 = scmp.eq.s32.totalorder %s487, 0
      %s490 = sadd.s32 %s489, 1
      %s491 = scalar_select %p488, %s489, %s490
      %p494 = pneg %p488
      %p495 = scmp.eq.s32.totalorder %s33, 7
      %p496 = por %p494, %p495
      %p497 = scmp.ne.s32.totalorder %s489, %s492
      %p498 = scmp.eq.s32.totalorder %s33, 0
      %p499 = por %p497, %p498
      %p500 = scmp.ne.s32.totalorder %s489, %s492
      %p501 = scmp.eq.s32.totalorder %s38, 7
      %p502 = por %p500, %p501
      %p503 = scmp.ne.s32.totalorder %s492, %s493
      %p504 = scmp.eq.s32.totalorder %s38, 0
      %p505 = por %p503, %p504
      %p506 = scmp.ne.s32.totalorder %s492, %s493
      %p507 = scmp.eq.s32.totalorder %s39, 7
      %p508 = por %p506, %p507
      %p510 = scmp.ne.s32.totalorder %s493, %s509
      %p511 = scmp.eq.s32.totalorder %s39, 0
      %p512 = por %p510, %p511
      %p513 = scmp.le.s32.totalorder 1, %s33
      %p514 = scmp.lt.s32.totalorder %s33, 9
      %p515 = pnand %p513, %p514
      %p516 = pneg %p515
      // Predicated region
      $region9: #{custom_gru_forward_seq.1} parent=5 // pred_check
        _
      $region10: #{custom_gru_forward_seq.1} parent=5 // pred_check_branch
        %518 = sbr.rel (%p515) target = $region12
      $region11: #{custom_gru_forward_seq.1} parent=5 // pred_region
        %s519 = ssub.s32 %s33, 1
        // Predicated region
        $region13: #{custom_gru_forward_seq.1} parent=11 // pred_check
          %p520 = pneg %p80
        $region14: #{custom_gru_forward_seq.1} parent=11 // pred_check_branch
          %522 = sbr.rel (%p520) target = $region16
        $region15: #{custom_gru_forward_seq.1} parent=11 // pred_region
          _
        $region16: #{custom_gru_forward_seq.1} parent=11 // pred_fallthru
          _
        // Predicated region
        $region17: #{custom_gru_forward_seq.1} parent=11 // pred_check
          %p523 = pneg %p101
        $region18: #{custom_gru_forward_seq.1} parent=11 // pred_check_branch
          %525 = sbr.rel (%p523) target = $region20
        $region19: #{custom_gru_forward_seq.1} parent=11 // pred_region
          _
        $region20: #{custom_gru_forward_seq.1} parent=11 // pred_fallthru
          _
        // Predicated region
        $region21: #{custom_gru_forward_seq.1} parent=11 // pred_check
          %p526 = pneg %p122
        $region22: #{custom_gru_forward_seq.1} parent=11 // pred_check_branch
          %528 = sbr.rel (%p526) target = $region24
        $region23: #{custom_gru_forward_seq.1} parent=11 // pred_region
          _
        $region24: #{custom_gru_forward_seq.1} parent=11 // pred_fallthru
          _
        // Predicated region
        $region25: #{custom_gru_forward_seq.1} parent=11 // pred_check
          %p529 = pneg %p143
        $region26: #{custom_gru_forward_seq.1} parent=11 // pred_check_branch
          %531 = sbr.rel (%p529) target = $region28
        $region27: #{custom_gru_forward_seq.1} parent=11 // pred_region
          _
        $region28: #{custom_gru_forward_seq.1} parent=11 // pred_fallthru
          _
        // Predicated region
        $region29: #{custom_gru_forward_seq.1} parent=11 // pred_check
          %p532 = pneg %p164
        $region30: #{custom_gru_forward_seq.1} parent=11 // pred_check_branch
          %534 = sbr.rel (%p532) target = $region32
        $region31: #{custom_gru_forward_seq.1} parent=11 // pred_region
          _
        $region32: #{custom_gru_forward_seq.1} parent=11 // pred_fallthru
          _
        // Predicated region
        $region33: #{custom_gru_forward_seq.1} parent=11 // pred_check
          %p535 = pneg %p185
        $region34: #{custom_gru_forward_seq.1} parent=11 // pred_check_branch
          %537 = sbr.rel (%p535) target = $region36
        $region35: #{custom_gru_forward_seq.1} parent=11 // pred_region
          %s539 = ssub.s32 12288, 12288
          %540 = vsyncadd [#allocation6], %s539
          %s541 = sshll.u32 [#allocation5], 4
          %s542 = int_to_ptr.vmem [resolvable:$true] %s541
          %547 = dma.hbm_to_vmem [thread:$0]  %s6, 12288, %s542, [#allocation6], 384, 384, 24
        $region36: #{custom_gru_forward_seq.1} parent=11 // pred_fallthru
          _
        // Predicated region
        $region37: #{custom_gru_forward_seq.1} parent=11 // pred_check
          %p548 = pneg %p206
        $region38: #{custom_gru_forward_seq.1} parent=11 // pred_check_branch
          %550 = sbr.rel (%p548) target = $region40
        $region39: #{custom_gru_forward_seq.1} parent=11 // pred_region
          _
        $region40: #{custom_gru_forward_seq.1} parent=11 // pred_fallthru
          _
        // Predicated region
        $region41: #{custom_gru_forward_seq.1} parent=11 // pred_check
          %p551 = pneg %p227
        $region42: #{custom_gru_forward_seq.1} parent=11 // pred_check_branch
          %553 = sbr.rel (%p551) target = $region44
        $region43: #{custom_gru_forward_seq.1} parent=11 // pred_region
          %s555 = ssub.s32 6144, 6144
          %556 = vsyncadd [#allocation9], %s555
          %s557 = sshll.u32 [#allocation8], 4
          %s558 = int_to_ptr.vmem [resolvable:$true] %s557
          %563 = dma.hbm_to_vmem [thread:$0]  %s8, 6144, %s558, [#allocation9], 192, 192, 12
        $region44: #{custom_gru_forward_seq.1} parent=11 // pred_fallthru
          _
        // Predicated region
        $region45: #{custom_gru_forward_seq.1} parent=11 // pred_check
          %p564 = pneg %p248
        $region46: #{custom_gru_forward_seq.1} parent=11 // pred_check_branch
          %566 = sbr.rel (%p564) target = $region48
        $region47: #{custom_gru_forward_seq.1} parent=11 // pred_region
          _
        $region48: #{custom_gru_forward_seq.1} parent=11 // pred_fallthru
          _
        // Predicated region
        $region49: #{custom_gru_forward_seq.1} parent=11 // pred_check
          %p567 = pneg %p269
        $region50: #{custom_gru_forward_seq.1} parent=11 // pred_check_branch
          %569 = sbr.rel (%p567) target = $region52
        $region51: #{custom_gru_forward_seq.1} parent=11 // pred_region
          %s571 = ssub.s32 3072, 3072
          %572 = vsyncadd [#allocation9], %s571
          %s573 = sshll.u32 [#allocation10], 4
          %s574 = int_to_ptr.vmem [resolvable:$true] %s573
          %579 = dma.hbm_to_vmem [thread:$0]  %s10, 3072, %s574, [#allocation9], 192, 192, 12
        $region52: #{custom_gru_forward_seq.1} parent=11 // pred_fallthru
          _
        // Predicated region
        $region53: #{custom_gru_forward_seq.1} parent=11 // pred_check
          %p580 = pneg %p290
        $region54: #{custom_gru_forward_seq.1} parent=11 // pred_check_branch
          %582 = sbr.rel (%p580) target = $region56
        $region55: #{custom_gru_forward_seq.1} parent=11 // pred_region
          _
        $region56: #{custom_gru_forward_seq.1} parent=11 // pred_fallthru
          _
        // Predicated region
        $region57: #{custom_gru_forward_seq.1} parent=11 // pred_check
          %p583 = pneg %p311
        $region58: #{custom_gru_forward_seq.1} parent=11 // pred_check_branch
          %585 = sbr.rel (%p583) target = $region60
        $region59: #{custom_gru_forward_seq.1} parent=11 // pred_region
          %s587 = ssub.s32 3072, 3072
          %588 = vsyncadd [#allocation12], %s587
          %s589 = sshll.u32 [#allocation11], 4
          %s590 = int_to_ptr.vmem [resolvable:$true] %s589
          %595 = dma.hbm_to_vmem [thread:$0]  %s12, 3072, %s590, [#allocation12], 192, 192, 12
        $region60: #{custom_gru_forward_seq.1} parent=11 // pred_fallthru
          _
        // Predicated region
        $region61: #{custom_gru_forward_seq.1} parent=11 // pred_check
          %p596 = pneg %p332
        $region62: #{custom_gru_forward_seq.1} parent=11 // pred_check_branch
          %598 = sbr.rel (%p596) target = $region64
        $region63: #{custom_gru_forward_seq.1} parent=11 // pred_region
          _
        $region64: #{custom_gru_forward_seq.1} parent=11 // pred_fallthru
          _
        // Predicated region
        $region65: #{custom_gru_forward_seq.1} parent=11 // pred_check
          %p599 = pneg %p353
        $region66: #{custom_gru_forward_seq.1} parent=11 // pred_check_branch
          %601 = sbr.rel (%p599) target = $region68
        $region67: #{custom_gru_forward_seq.1} parent=11 // pred_region
          %s603 = ssub.s32 3072, 3072
          %604 = vsyncadd [#allocation12], %s603
          %s605 = sshll.u32 [#allocation13], 4
          %s606 = int_to_ptr.vmem [resolvable:$true] %s605
          %611 = dma.hbm_to_vmem [thread:$0]  %s14, 3072, %s606, [#allocation12], 192, 192, 12
        $region68: #{custom_gru_forward_seq.1} parent=11 // pred_fallthru
          _
        // Predicated region
        $region69: #{custom_gru_forward_seq.1} parent=11 // pred_check
          %p612 = pneg %p374
        $region70: #{custom_gru_forward_seq.1} parent=11 // pred_check_branch
          %614 = sbr.rel (%p612) target = $region72
        $region71: #{custom_gru_forward_seq.1} parent=11 // pred_region
          _
        $region72: #{custom_gru_forward_seq.1} parent=11 // pred_fallthru
          _
        // Predicated region
        $region73: #{custom_gru_forward_seq.1} parent=11 // pred_check
          %p615 = pneg %p395
        $region74: #{custom_gru_forward_seq.1} parent=11 // pred_check_branch
          %617 = sbr.rel (%p615) target = $region76
        $region75: #{custom_gru_forward_seq.1} parent=11 // pred_region
          _
        $region76: #{custom_gru_forward_seq.1} parent=11 // pred_fallthru
          _
        // Predicated region
        $region77: #{custom_gru_forward_seq.1} parent=11 // pred_check
          %p618 = pneg %p416
        $region78: #{custom_gru_forward_seq.1} parent=11 // pred_check_branch
          %620 = sbr.rel (%p618) target = $region80
        $region79: #{custom_gru_forward_seq.1} parent=11 // pred_region
          _
        $region80: #{custom_gru_forward_seq.1} parent=11 // pred_fallthru
          _
      $region12: #{custom_gru_forward_seq.1} parent=5 // pred_fallthru
        _
      %p621 = scmp.lt.s32.totalorder %s33, 8
      // Predicated region
      $region81: #{custom_gru_forward_seq.1} parent=5 // pred_check
        %p622 = pneg %p621
      $region82: #{custom_gru_forward_seq.1} parent=5 // pred_check_branch
        %624 = sbr.rel (%p622) target = $region84
      $region83: #{custom_gru_forward_seq.1} parent=5 // pred_region
        // Predicated region
        $region85: #{custom_gru_forward_seq.1} parent=83 // pred_check
          %p625 = pneg %p53
        $region86: #{custom_gru_forward_seq.1} parent=83 // pred_check_branch
          %627 = sbr.rel (%p625) target = $region88
        $region87: #{custom_gru_forward_seq.1} parent=83 // pred_region
          %p628 = scmp.lt.s32.totalorder %s33, 7
          %s629 = scalar_select %p628, %s33, 7
          %s630 = smul.addr %s629, 8
          %s631 = scalar_lea.vmem %s0, %s630
        $region88: #{custom_gru_forward_seq.1} parent=83 // pred_fallthru
          _
      $region84: #{custom_gru_forward_seq.1} parent=5 // pred_fallthru
        _
      %p632 = scmp.le.s32.totalorder 1, %s33
      %p633 = scmp.lt.s32.totalorder %s33, 9
      %p634 = pnand %p632, %p633
      %p635 = pneg %p634
      // Predicated region
      $region89: #{custom_gru_forward_seq.1} parent=5 // pred_check
        _
      $region90: #{custom_gru_forward_seq.1} parent=5 // pred_check_branch
        %637 = sbr.rel (%p634) target = $region92
      $region91: #{custom_gru_forward_seq.1} parent=5 // pred_region
        %s638 = ssub.s32 %s33, 1
        // Predicated region
        $region93: #{custom_gru_forward_seq.1} parent=91 // pred_check
          %p639 = pneg %p185
        $region94: #{custom_gru_forward_seq.1} parent=91 // pred_check_branch
          %641 = sbr.rel (%p639) target = $region96
        $region95: #{custom_gru_forward_seq.1} parent=91 // pred_region
          %642 = dma.done [#allocation6], 12288
        $region96: #{custom_gru_forward_seq.1} parent=91 // pred_fallthru
          _
        // Predicated region
        $region97: #{custom_gru_forward_seq.1} parent=91 // pred_check
          %p643 = pneg %p227
        $region98: #{custom_gru_forward_seq.1} parent=91 // pred_check_branch
          %645 = sbr.rel (%p643) target = $region100
        $region99: #{custom_gru_forward_seq.1} parent=91 // pred_region
          %646 = dma.done [#allocation9], 6144
        $region100: #{custom_gru_forward_seq.1} parent=91 // pred_fallthru
          _
        // Predicated region
        $region101: #{custom_gru_forward_seq.1} parent=91 // pred_check
          %p647 = pneg %p269
        $region102: #{custom_gru_forward_seq.1} parent=91 // pred_check_branch
          %649 = sbr.rel (%p647) target = $region104
        $region103: #{custom_gru_forward_seq.1} parent=91 // pred_region
          %650 = dma.done [#allocation9], 3072
        $region104: #{custom_gru_forward_seq.1} parent=91 // pred_fallthru
          _
        // Predicated region
        $region105: #{custom_gru_forward_seq.1} parent=91 // pred_check
          %p651 = pneg %p311
        $region106: #{custom_gru_forward_seq.1} parent=91 // pred_check_branch
          %653 = sbr.rel (%p651) target = $region108
        $region107: #{custom_gru_forward_seq.1} parent=91 // pred_region
          %654 = dma.done [#allocation12], 3072
        $region108: #{custom_gru_forward_seq.1} parent=91 // pred_fallthru
          _
        // Predicated region
        $region109: #{custom_gru_forward_seq.1} parent=91 // pred_check
          %p655 = pneg %p353
        $region110: #{custom_gru_forward_seq.1} parent=91 // pred_check_branch
          %657 = sbr.rel (%p655) target = $region112
        $region111: #{custom_gru_forward_seq.1} parent=91 // pred_region
          %658 = dma.done [#allocation12], 3072
        $region112: #{custom_gru_forward_seq.1} parent=91 // pred_fallthru
          _
        %p659 = scmp.lt.s32.totalorder %s38, 7
        %s660 = scalar_select %p659, %s38, 7
        %s661 = smul.addr %s660, 8
        %s662 = scalar_lea.vmem %s0, %s661
        %p663 = pneg %p59
        %p664 = pneg %p56
        %p665 = pneg %p80
        %p666 = pneg %p77
        %p667 = pneg %p101
        %p668 = pneg %p98
        %p669 = pneg %p122
        %p670 = pneg %p119
        %p671 = pneg %p143
        %p672 = pneg %p140
        %p673 = pneg %p164
        %p674 = pneg %p161
        %p675 = pneg %p185
        %p676 = pneg %p182
        %p677 = pneg %p206
        %p678 = pneg %p203
        %p679 = pneg %p227
        %p680 = pneg %p224
        %p681 = pneg %p248
        %p682 = pneg %p245
        %p683 = pneg %p269
        %p684 = pneg %p266
        %p685 = pneg %p290
        %p686 = pneg %p287
        %p687 = pneg %p311
        %p688 = pneg %p308
        %p689 = pneg %p332
        %p690 = pneg %p329
        %p691 = pneg %p353
        %p692 = pneg %p350
        %p693 = pneg %p374
        %p694 = pneg %p371
        %p695 = pneg %p395
        %p696 = pneg %p392
        %p697 = pneg %p416
        %p698 = pneg %p413
        %p699 = pneg %p437
        %p700 = pneg %p434
        %p701 = pneg %p458
        %p702 = pneg %p455
        %p703 = pneg %p479
        %p704 = pneg %p476
        %p705 = pneg %p505
        %p706 = pneg %p502
        %p707 = scmp.lt.s32.totalorder %s38, 7
        %s708 = scalar_select %p707, %s38, 7
        %s709 = smul.addr %s708, 8
        %s710 = scalar_lea.vmem %s21, %s709
        %p711 = scmp.lt.s32.totalorder %s38, 7
        %s712 = scalar_select %p711, %s38, 7
        %s713 = smul.addr %s712, 8
        %s714 = scalar_lea.vmem %s0, %s713
        %p715 = scmp.lt.s32.totalorder %s38, 7
        %s716 = scalar_select %p715, %s38, 7
        %s717 = smul.addr %s716, 8
        %s718 = scalar_lea.vmem %s21, %s717
        %p719 = scmp.eq.s32.totalorder %s38, 0
        // Predicated region
        $region113: #{custom_gru_forward_seq.1} parent=91 // pred_check
          %p720 = pneg %p719
        $region114: #{custom_gru_forward_seq.1} parent=91 // pred_check_branch
          %722 = sbr.rel (%p720) target = $region116
        $region115: #{custom_gru_forward_seq.1} parent=91 // pred_region
          %v723 = vld [vmem:[%s1] sm:$0xff]
          %v724 = vld [vmem:[%s1 + $0x8] sm:$0xff]
          %725 = vst [vmem:[#allocation2] sm:$0xff] %v723
          %726 = vst [vmem:[#allocation2 + $0x8] sm:$0xff] %v724
          %v727 = vld [vmem:[%s2] sm:$0xff]
          %728 = vst [vmem:[#allocation3] sm:$0xff] %v727
          %v729 = vld [vmem:[%s3] sm:$0xff]
          %730 = vst [vmem:[#allocation4] sm:$0xff] %v729
        $region116: #{custom_gru_forward_seq.1} parent=91 // pred_fallthru
          _
        %v731 = vld [vmem:[%s714] sm:$0xff]
        %v732 = vld [vmem:[#allocation2] sm:$0xff]
        %v733 = vld [vmem:[#allocation2 + $0x8] sm:$0xff]
        %v734 = vld [vmem:[%s4] sm:$0x3f]
        %v735 = vunpack.c.l.bf16 %v734
        %v736 = vunpack.c.h.bf16 %v734
        %738 = vset.pattern.permute.xlu0 0
        %739 = vperm.xlu0 %738, %v731
        %v740 = vpop.permute.xlu0 %739
        %v744 = vlaneseq
        %v745 = vshrl.u32 %v744, 7
        %v746 = vsub.s32 0, %v745
        %v747 = vrot.slane %v735, %v746
        %v748 = vlaneseq
        %v749 = vshrl.u32 %v748, 7
        %v750 = vsub.s32 2, %v749
        %v751 = vrot.slane %v735, %v750
        %v752 = vlaneseq
        %v753 = vshrl.u32 %v752, 7
        %v754 = vsub.s32 4, %v753
        %v755 = vrot.slane %v735, %v754
        %v756 = vlaneseq
        %v757 = vshrl.u32 %v756, 7
        %v758 = vsub.s32 6, %v757
        %v759 = vrot.slane %v735, %v758
        %v760 = vlaneseq
        %v761 = vshrl.u32 %v760, 7
        %v762 = vsub.s32 0, %v761
        %v763 = vrot.slane %v736, %v762
        %v764 = vlaneseq
        %v765 = vshrl.u32 %v764, 7
        %v766 = vsub.s32 2, %v765
        %v767 = vrot.slane %v736, %v766
        %v774 = vlaneseq
        %v775 = vshrl.u32 %v774, 7
        %v776 = vsub.s32 0, %v775
        %v777 = vrot.slane %v747, %v776
        %v778 = vlaneseq
        %v779 = vshrl.u32 %v778, 7
        %v780 = vsub.s32 0, %v779
        %v781 = vrot.slane %v751, %v780
        %v782 = vlaneseq
        %v783 = vshrl.u32 %v782, 7
        %v784 = vsub.s32 0, %v783
        %v785 = vrot.slane %v755, %v784
        %v786 = vlaneseq
        %v787 = vshrl.u32 %v786, 7
        %v788 = vsub.s32 0, %v787
        %v789 = vrot.slane %v759, %v788
        %v790 = vlaneseq
        %v791 = vshrl.u32 %v790, 7
        %v792 = vsub.s32 0, %v791
        %v793 = vrot.slane %v763, %v792
        %v794 = vlaneseq
        %v795 = vshrl.u32 %v794, 7
        %v796 = vsub.s32 0, %v795
        %v797 = vrot.slane %v767, %v796
        %v798 = vmul.f32 %v740, %v777
        %v799 = vmul.f32 %v740, %v781
        %v800 = vmul.f32 %v740, %v785
        %v801 = vmul.f32 %v740, %v789
        %v802 = vmul.f32 %v740, %v793
        %v803 = vmul.f32 %v740, %v797
        %v804 = vld [vmem:[%s5] sm:$0x3f]
        %v806 = vlaneseq
        %v807 = vshrl.u32 %v806, 7
        %v808 = vsub.s32 0, %v807
        %v809 = vrot.slane %v804, %v808
        %v810 = vlaneseq
        %v811 = vshrl.u32 %v810, 7
        %v812 = vsub.s32 1, %v811
        %v813 = vrot.slane %v804, %v812
        %v814 = vlaneseq
        %v815 = vshrl.u32 %v814, 7
        %v816 = vsub.s32 2, %v815
        %v817 = vrot.slane %v804, %v816
        %v818 = vlaneseq
        %v819 = vshrl.u32 %v818, 7
        %v820 = vsub.s32 3, %v819
        %v821 = vrot.slane %v804, %v820
        %v822 = vlaneseq
        %v823 = vshrl.u32 %v822, 7
        %v824 = vsub.s32 4, %v823
        %v825 = vrot.slane %v804, %v824
        %v826 = vlaneseq
        %v827 = vshrl.u32 %v826, 7
        %v828 = vsub.s32 5, %v827
        %v829 = vrot.slane %v804, %v828
        %v836 = vadd.f32 %v798, %v809
        %v837 = vadd.f32 %v799, %v813
        %v838 = vadd.f32 %v800, %v817
        %v839 = vadd.f32 %v801, %v821
        %v840 = vadd.f32 %v802, %v825
        %v841 = vadd.f32 %v803, %v829
        %v842 = vld [vmem:[#allocation5] sm:$0xff]
        %v843 = vld [vmem:[#allocation5 + $0x8] sm:$0xff]
        %v844 = vld [vmem:[#allocation5 + $0x10] sm:$0xff]
        %v845 = vld [vmem:[#allocation5 + $0x18] sm:$0xff]
        %v846 = vld [vmem:[#allocation5 + $0x20] sm:$0xff]
        %v847 = vld [vmem:[#allocation5 + $0x28] sm:$0xff]
        %v848 = vld [vmem:[#allocation5 + $0x30] sm:$0xff]
        %v849 = vld [vmem:[#allocation5 + $0x38] sm:$0xff]
        %v850 = vld [vmem:[#allocation5 + $0x40] sm:$0xff]
        %v851 = vld [vmem:[#allocation5 + $0x48] sm:$0xff]
        %v852 = vld [vmem:[#allocation5 + $0x50] sm:$0xff]
        %v853 = vld [vmem:[#allocation5 + $0x58] sm:$0xff]
        %v854 = vld [vmem:[#allocation5 + $0x60] sm:$0xff]
        %v855 = vld [vmem:[#allocation5 + $0x68] sm:$0xff]
        %v856 = vld [vmem:[#allocation5 + $0x70] sm:$0xff]
        %v857 = vld [vmem:[#allocation5 + $0x78] sm:$0xff]
        %v858 = vld [vmem:[#allocation5 + $0x80] sm:$0xff]
        %v859 = vld [vmem:[#allocation5 + $0x88] sm:$0xff]
        %v860 = vld [vmem:[#allocation5 + $0x90] sm:$0xff]
        %v861 = vld [vmem:[#allocation5 + $0x98] sm:$0xff]
        %v862 = vld [vmem:[#allocation5 + $0xa0] sm:$0xff]
        %v863 = vld [vmem:[#allocation5 + $0xa8] sm:$0xff]
        %v864 = vld [vmem:[#allocation5 + $0xb0] sm:$0xff]
        %v865 = vld [vmem:[#allocation5 + $0xb8] sm:$0xff]
        %v866 = vld [vmem:[#allocation5 + $0xc0] sm:$0xff]
        %v867 = vld [vmem:[#allocation5 + $0xc8] sm:$0xff]
        %v868 = vld [vmem:[#allocation5 + $0xd0] sm:$0xff]
        %v869 = vld [vmem:[#allocation5 + $0xd8] sm:$0xff]
        %v870 = vld [vmem:[#allocation5 + $0xe0] sm:$0xff]
        %v871 = vld [vmem:[#allocation5 + $0xe8] sm:$0xff]
        %v872 = vld [vmem:[#allocation5 + $0xf0] sm:$0xff]
        %v873 = vld [vmem:[#allocation5 + $0xf8] sm:$0xff]
        %v874 = vld [vmem:[#allocation5 + $0x100] sm:$0xff]
        %v875 = vld [vmem:[#allocation5 + $0x108] sm:$0xff]
        %v876 = vld [vmem:[#allocation5 + $0x110] sm:$0xff]
        %v877 = vld [vmem:[#allocation5 + $0x118] sm:$0xff]
        %v878 = vld [vmem:[#allocation5 + $0x120] sm:$0xff]
        %v879 = vld [vmem:[#allocation5 + $0x128] sm:$0xff]
        %v880 = vld [vmem:[#allocation5 + $0x130] sm:$0xff]
        %v881 = vld [vmem:[#allocation5 + $0x138] sm:$0xff]
        %v882 = vld [vmem:[#allocation5 + $0x140] sm:$0xff]
        %v883 = vld [vmem:[#allocation5 + $0x148] sm:$0xff]
        %v884 = vld [vmem:[#allocation5 + $0x150] sm:$0xff]
        %v885 = vld [vmem:[#allocation5 + $0x158] sm:$0xff]
        %v886 = vld [vmem:[#allocation5 + $0x160] sm:$0xff]
        %v887 = vld [vmem:[#allocation5 + $0x168] sm:$0xff]
        %v888 = vld [vmem:[#allocation5 + $0x170] sm:$0xff]
        %v889 = vld [vmem:[#allocation5 + $0x178] sm:$0xff]
        %v890 = vld [vmem:[#allocation5 + $0x180] sm:$0xff]
        %v891 = vld [vmem:[#allocation5 + $0x188] sm:$0xff]
        %v892 = vld [vmem:[#allocation5 + $0x190] sm:$0xff]
        %v893 = vld [vmem:[#allocation5 + $0x198] sm:$0xff]
        %v894 = vld [vmem:[#allocation5 + $0x1a0] sm:$0xff]
        %v895 = vld [vmem:[#allocation5 + $0x1a8] sm:$0xff]
        %v896 = vld [vmem:[#allocation5 + $0x1b0] sm:$0xff]
        %v897 = vld [vmem:[#allocation5 + $0x1b8] sm:$0xff]
        %v898 = vld [vmem:[#allocation5 + $0x1c0] sm:$0xff]
        %v899 = vld [vmem:[#allocation5 + $0x1c8] sm:$0xff]
        %v900 = vld [vmem:[#allocation5 + $0x1d0] sm:$0xff]
        %v901 = vld [vmem:[#allocation5 + $0x1d8] sm:$0xff]
        %v902 = vld [vmem:[#allocation5 + $0x1e0] sm:$0xff]
        %v903 = vld [vmem:[#allocation5 + $0x1e8] sm:$0xff]
        %v904 = vld [vmem:[#allocation5 + $0x1f0] sm:$0xff]
        %v905 = vld [vmem:[#allocation5 + $0x1f8] sm:$0xff]
        %v906 = vld [vmem:[#allocation5 + $0x200] sm:$0xff]
        %v907 = vld [vmem:[#allocation5 + $0x208] sm:$0xff]
        %v908 = vld [vmem:[#allocation5 + $0x210] sm:$0xff]
        %v909 = vld [vmem:[#allocation5 + $0x218] sm:$0xff]
        %v910 = vld [vmem:[#allocation5 + $0x220] sm:$0xff]
        %v911 = vld [vmem:[#allocation5 + $0x228] sm:$0xff]
        %v912 = vld [vmem:[#allocation5 + $0x230] sm:$0xff]
        %v913 = vld [vmem:[#allocation5 + $0x238] sm:$0xff]
        %v914 = vld [vmem:[#allocation5 + $0x240] sm:$0xff]
        %v915 = vld [vmem:[#allocation5 + $0x248] sm:$0xff]
        %v916 = vld [vmem:[#allocation5 + $0x250] sm:$0xff]
        %v917 = vld [vmem:[#allocation5 + $0x258] sm:$0xff]
        %v918 = vld [vmem:[#allocation5 + $0x260] sm:$0xff]
        %v919 = vld [vmem:[#allocation5 + $0x268] sm:$0xff]
        %v920 = vld [vmem:[#allocation5 + $0x270] sm:$0xff]
        %v921 = vld [vmem:[#allocation5 + $0x278] sm:$0xff]
        %v922 = vld [vmem:[#allocation5 + $0x280] sm:$0xff]
        %v923 = vld [vmem:[#allocation5 + $0x288] sm:$0xff]
        %v924 = vld [vmem:[#allocation5 + $0x290] sm:$0xff]
        %v925 = vld [vmem:[#allocation5 + $0x298] sm:$0xff]
        %v926 = vld [vmem:[#allocation5 + $0x2a0] sm:$0xff]
        %v927 = vld [vmem:[#allocation5 + $0x2a8] sm:$0xff]
        %v928 = vld [vmem:[#allocation5 + $0x2b0] sm:$0xff]
        %v929 = vld [vmem:[#allocation5 + $0x2b8] sm:$0xff]
        %v930 = vld [vmem:[#allocation5 + $0x2c0] sm:$0xff]
        %v931 = vld [vmem:[#allocation5 + $0x2c8] sm:$0xff]
        %v932 = vld [vmem:[#allocation5 + $0x2d0] sm:$0xff]
        %v933 = vld [vmem:[#allocation5 + $0x2d8] sm:$0xff]
        %v934 = vld [vmem:[#allocation5 + $0x2e0] sm:$0xff]
        %v935 = vld [vmem:[#allocation5 + $0x2e8] sm:$0xff]
        %v936 = vld [vmem:[#allocation5 + $0x2f0] sm:$0xff]
        %v937 = vld [vmem:[#allocation5 + $0x2f8] sm:$0xff]
        %v938 = vunpack.c.l.bf16 %v842
        %v939 = vunpack.c.h.bf16 %v842
        %v940 = vunpack.c.l.bf16 %v843
        %v941 = vunpack.c.h.bf16 %v843
        %v942 = vunpack.c.l.bf16 %v844
        %v943 = vunpack.c.h.bf16 %v844
        %v944 = vunpack.c.l.bf16 %v845
        %v945 = vunpack.c.h.bf16 %v845
        %v946 = vunpack.c.l.bf16 %v846
        %v947 = vunpack.c.h.bf16 %v846
        %v948 = vunpack.c.l.bf16 %v847
        %v949 = vunpack.c.h.bf16 %v847
        %v950 = vunpack.c.l.bf16 %v848
        %v951 = vunpack.c.h.bf16 %v848
        %v952 = vunpack.c.l.bf16 %v849
        %v953 = vunpack.c.h.bf16 %v849
        %v954 = vunpack.c.l.bf16 %v850
        %v955 = vunpack.c.h.bf16 %v850
        %v956 = vunpack.c.l.bf16 %v851
        %v957 = vunpack.c.h.bf16 %v851
        %v958 = vunpack.c.l.bf16 %v852
        %v959 = vunpack.c.h.bf16 %v852
        %v960 = vunpack.c.l.bf16 %v853
        %v961 = vunpack.c.h.bf16 %v853
        %v962 = vunpack.c.l.bf16 %v854
        %v963 = vunpack.c.h.bf16 %v854
        %v964 = vunpack.c.l.bf16 %v855
        %v965 = vunpack.c.h.bf16 %v855
        %v966 = vunpack.c.l.bf16 %v856
        %v967 = vunpack.c.h.bf16 %v856
        %v968 = vunpack.c.l.bf16 %v857
        %v969 = vunpack.c.h.bf16 %v857
        %v970 = vunpack.c.l.bf16 %v858
        %v971 = vunpack.c.h.bf16 %v858
        %v972 = vunpack.c.l.bf16 %v859
        %v973 = vunpack.c.h.bf16 %v859
        %v974 = vunpack.c.l.bf16 %v860
        %v975 = vunpack.c.h.bf16 %v860
        %v976 = vunpack.c.l.bf16 %v861
        %v977 = vunpack.c.h.bf16 %v861
        %v978 = vunpack.c.l.bf16 %v862
        %v979 = vunpack.c.h.bf16 %v862
        %v980 = vunpack.c.l.bf16 %v863
        %v981 = vunpack.c.h.bf16 %v863
        %v982 = vunpack.c.l.bf16 %v864
        %v983 = vunpack.c.h.bf16 %v864
        %v984 = vunpack.c.l.bf16 %v865
        %v985 = vunpack.c.h.bf16 %v865
        %v986 = vunpack.c.l.bf16 %v866
        %v987 = vunpack.c.h.bf16 %v866
        %v988 = vunpack.c.l.bf16 %v867
        %v989 = vunpack.c.h.bf16 %v867
        %v990 = vunpack.c.l.bf16 %v868
        %v991 = vunpack.c.h.bf16 %v868
        %v992 = vunpack.c.l.bf16 %v869
        %v993 = vunpack.c.h.bf16 %v869
        %v994 = vunpack.c.l.bf16 %v870
        %v995 = vunpack.c.h.bf16 %v870
        %v996 = vunpack.c.l.bf16 %v871
        %v997 = vunpack.c.h.bf16 %v871
        %v998 = vunpack.c.l.bf16 %v872
        %v999 = vunpack.c.h.bf16 %v872
        %v1000 = vunpack.c.l.bf16 %v873
        %v1001 = vunpack.c.h.bf16 %v873
        %v1002 = vunpack.c.l.bf16 %v874
        %v1003 = vunpack.c.h.bf16 %v874
        %v1004 = vunpack.c.l.bf16 %v875
        %v1005 = vunpack.c.h.bf16 %v875
        %v1006 = vunpack.c.l.bf16 %v876
        %v1007 = vunpack.c.h.bf16 %v876
        %v1008 = vunpack.c.l.bf16 %v877
        %v1009 = vunpack.c.h.bf16 %v877
        %v1010 = vunpack.c.l.bf16 %v878
        %v1011 = vunpack.c.h.bf16 %v878
        %v1012 = vunpack.c.l.bf16 %v879
        %v1013 = vunpack.c.h.bf16 %v879
        %v1014 = vunpack.c.l.bf16 %v880
        %v1015 = vunpack.c.h.bf16 %v880
        %v1016 = vunpack.c.l.bf16 %v881
        %v1017 = vunpack.c.h.bf16 %v881
        %v1018 = vunpack.c.l.bf16 %v882
        %v1019 = vunpack.c.h.bf16 %v882
        %v1020 = vunpack.c.l.bf16 %v883
        %v1021 = vunpack.c.h.bf16 %v883
        %v1022 = vunpack.c.l.bf16 %v884
        %v1023 = vunpack.c.h.bf16 %v884
        %v1024 = vunpack.c.l.bf16 %v885
        %v1025 = vunpack.c.h.bf16 %v885
        %v1026 = vunpack.c.l.bf16 %v886
        %v1027 = vunpack.c.h.bf16 %v886
        %v1028 = vunpack.c.l.bf16 %v887
        %v1029 = vunpack.c.h.bf16 %v887
        %v1030 = vunpack.c.l.bf16 %v888
        %v1031 = vunpack.c.h.bf16 %v888
        %v1032 = vunpack.c.l.bf16 %v889
        %v1033 = vunpack.c.h.bf16 %v889
        %v1034 = vunpack.c.l.bf16 %v890
        %v1035 = vunpack.c.h.bf16 %v890
        %v1036 = vunpack.c.l.bf16 %v891
        %v1037 = vunpack.c.h.bf16 %v891
        %v1038 = vunpack.c.l.bf16 %v892
        %v1039 = vunpack.c.h.bf16 %v892
        %v1040 = vunpack.c.l.bf16 %v893
        %v1041 = vunpack.c.h.bf16 %v893
        %v1042 = vunpack.c.l.bf16 %v894
        %v1043 = vunpack.c.h.bf16 %v894
        %v1044 = vunpack.c.l.bf16 %v895
        %v1045 = vunpack.c.h.bf16 %v895
        %v1046 = vunpack.c.l.bf16 %v896
        %v1047 = vunpack.c.h.bf16 %v896
        %v1048 = vunpack.c.l.bf16 %v897
        %v1049 = vunpack.c.h.bf16 %v897
        %v1050 = vunpack.c.l.bf16 %v898
        %v1051 = vunpack.c.h.bf16 %v898
        %v1052 = vunpack.c.l.bf16 %v899
        %v1053 = vunpack.c.h.bf16 %v899
        %v1054 = vunpack.c.l.bf16 %v900
        %v1055 = vunpack.c.h.bf16 %v900
        %v1056 = vunpack.c.l.bf16 %v901
        %v1057 = vunpack.c.h.bf16 %v901
        %v1058 = vunpack.c.l.bf16 %v902
        %v1059 = vunpack.c.h.bf16 %v902
        %v1060 = vunpack.c.l.bf16 %v903
        %v1061 = vunpack.c.h.bf16 %v903
        %v1062 = vunpack.c.l.bf16 %v904
        %v1063 = vunpack.c.h.bf16 %v904
        %v1064 = vunpack.c.l.bf16 %v905
        %v1065 = vunpack.c.h.bf16 %v905
        %v1066 = vunpack.c.l.bf16 %v906
        %v1067 = vunpack.c.h.bf16 %v906
        %v1068 = vunpack.c.l.bf16 %v907
        %v1069 = vunpack.c.h.bf16 %v907
        %v1070 = vunpack.c.l.bf16 %v908
        %v1071 = vunpack.c.h.bf16 %v908
        %v1072 = vunpack.c.l.bf16 %v909
        %v1073 = vunpack.c.h.bf16 %v909
        %v1074 = vunpack.c.l.bf16 %v910
        %v1075 = vunpack.c.h.bf16 %v910
        %v1076 = vunpack.c.l.bf16 %v911
        %v1077 = vunpack.c.h.bf16 %v911
        %v1078 = vunpack.c.l.bf16 %v912
        %v1079 = vunpack.c.h.bf16 %v912
        %v1080 = vunpack.c.l.bf16 %v913
        %v1081 = vunpack.c.h.bf16 %v913
        %v1082 = vunpack.c.l.bf16 %v914
        %v1083 = vunpack.c.h.bf16 %v914
        %v1084 = vunpack.c.l.bf16 %v915
        %v1085 = vunpack.c.h.bf16 %v915
        %v1086 = vunpack.c.l.bf16 %v916
        %v1087 = vunpack.c.h.bf16 %v916
        %v1088 = vunpack.c.l.bf16 %v917
        %v1089 = vunpack.c.h.bf16 %v917
        %v1090 = vunpack.c.l.bf16 %v918
        %v1091 = vunpack.c.h.bf16 %v918
        %v1092 = vunpack.c.l.bf16 %v919
        %v1093 = vunpack.c.h.bf16 %v919
        %v1094 = vunpack.c.l.bf16 %v920
        %v1095 = vunpack.c.h.bf16 %v920
        %v1096 = vunpack.c.l.bf16 %v921
        %v1097 = vunpack.c.h.bf16 %v921
        %v1098 = vunpack.c.l.bf16 %v922
        %v1099 = vunpack.c.h.bf16 %v922
        %v1100 = vunpack.c.l.bf16 %v923
        %v1101 = vunpack.c.h.bf16 %v923
        %v1102 = vunpack.c.l.bf16 %v924
        %v1103 = vunpack.c.h.bf16 %v924
        %v1104 = vunpack.c.l.bf16 %v925
        %v1105 = vunpack.c.h.bf16 %v925
        %v1106 = vunpack.c.l.bf16 %v926
        %v1107 = vunpack.c.h.bf16 %v926
        %v1108 = vunpack.c.l.bf16 %v927
        %v1109 = vunpack.c.h.bf16 %v927
        %v1110 = vunpack.c.l.bf16 %v928
        %v1111 = vunpack.c.h.bf16 %v928
        %v1112 = vunpack.c.l.bf16 %v929
        %v1113 = vunpack.c.h.bf16 %v929
        %v1114 = vunpack.c.l.bf16 %v930
        %v1115 = vunpack.c.h.bf16 %v930
        %v1116 = vunpack.c.l.bf16 %v931
        %v1117 = vunpack.c.h.bf16 %v931
        %v1118 = vunpack.c.l.bf16 %v932
        %v1119 = vunpack.c.h.bf16 %v932
        %v1120 = vunpack.c.l.bf16 %v933
        %v1121 = vunpack.c.h.bf16 %v933
        %v1122 = vunpack.c.l.bf16 %v934
        %v1123 = vunpack.c.h.bf16 %v934
        %v1124 = vunpack.c.l.bf16 %v935
        %v1125 = vunpack.c.h.bf16 %v935
        %v1126 = vunpack.c.l.bf16 %v936
        %v1127 = vunpack.c.h.bf16 %v936
        %v1128 = vunpack.c.l.bf16 %v937
        %v1129 = vunpack.c.h.bf16 %v937
        %1130 = vmatprep.subr.mxu0 %v939
        %1131 = vmatpush1.msra.mxu0 %v938
        %1132 = vmatprep.subr.mxu0 %v945
        %1133 = vmatpush1.msra.mxu0 %v944
        %1134 = vmatprep.subr.mxu0 %v951
        %1135 = vmatpush1.msra.mxu0 %v950
        %1136 = vmatprep.subr.mxu0 %v957
        %1137 = vmatpush1.msra.mxu0 %v956
        %1138 = vmatprep.subr.mxu0 %v963
        %1139 = vmatpush1.msra.mxu0 %v962
        %1140 = vmatprep.subr.mxu0 %v969
        %1141 = vmatpush1.msra.mxu0 %v968
        %1142 = vmatprep.subr.mxu0 %v975
        %1143 = vmatpush1.msra.mxu0 %v974
        %1144 = vmatprep.subr.mxu0 %v981
        %1145 = vmatpush1.msra.mxu0 %v980
        %1146 = vmatprep.subr.mxu0 %v987
        %1147 = vmatpush1.msra.mxu0 %v986
        %1148 = vmatprep.subr.mxu0 %v993
        %1149 = vmatpush1.msra.mxu0 %v992
        %1150 = vmatprep.subr.mxu0 %v999
        %1151 = vmatpush1.msra.mxu0 %v998
        %1152 = vmatprep.subr.mxu0 %v1005
        %1153 = vmatpush1.msra.mxu0 %v1004
        %1154 = vmatprep.subr.mxu0 %v1011
        %1155 = vmatpush1.msra.mxu0 %v1010
        %1156 = vmatprep.subr.mxu0 %v1017
        %1157 = vmatpush1.msra.mxu0 %v1016
        %1158 = vmatprep.subr.mxu0 %v1023
        %1159 = vmatpush1.msra.mxu0 %v1022
        %1160 = vmatprep.subr.mxu0 %v1029
        %1161 = vmatpush1.msra.mxu0 %v1028
        %1162 = vmatprep.subr.mxu0 %v1035
        %1163 = vmatpush1.msra.mxu0 %v1034
        %1164 = vmatprep.subr.mxu0 %v1041
        %1165 = vmatpush1.msra.mxu0 %v1040
        %1166 = vmatprep.subr.mxu0 %v1047
        %1167 = vmatpush1.msra.mxu0 %v1046
        %1168 = vmatprep.subr.mxu0 %v1053
        %1169 = vmatpush1.msra.mxu0 %v1052
        %1170 = vmatprep.subr.mxu0 %v1059
        %1171 = vmatpush1.msra.mxu0 %v1058
        %1172 = vmatprep.subr.mxu0 %v1065
        %1173 = vmatpush1.msra.mxu0 %v1064
        %1174 = vmatprep.subr.mxu0 %v1071
        %1175 = vmatpush1.msra.mxu0 %v1070
        %1176 = vmatprep.subr.mxu0 %v1077
        %1177 = vmatpush1.msra.mxu0 %v1076
        %1178 = vmatprep.subr.mxu0 %v1083
        %1179 = vmatpush1.msra.mxu0 %v1082
        %1180 = vmatprep.subr.mxu0 %v1089
        %1181 = vmatpush1.msra.mxu0 %v1088
        %1182 = vmatprep.subr.mxu0 %v1095
        %1183 = vmatpush1.msra.mxu0 %v1094
        %1184 = vmatprep.subr.mxu0 %v1101
        %1185 = vmatpush1.msra.mxu0 %v1100
        %1186 = vmatprep.subr.mxu0 %v1107
        %1187 = vmatpush1.msra.mxu0 %v1106
        %1188 = vmatprep.subr.mxu0 %v1113
        %1189 = vmatpush1.msra.mxu0 %v1112
        %1190 = vmatprep.subr.mxu0 %v1119
        %1191 = vmatpush1.msra.mxu0 %v1118
        %1192 = vmatprep.subr.mxu0 %v1125
        %1193 = vmatpush1.msra.mxu0 %v1124
        %1194 = vmatprep.mubr.f32.mxu0 %v733
        %1195 = vmatmul.mubr.f32.gmra.mrb[0].mxu0 %v732
        %v1196 = vpop.f32.mrb[0].mxu0
        %v1197 = vadd.f32 0.0, %v1196
        %v1198 = vpop.f32.mrb[0].mxu0
        %v1199 = vadd.f32 0.0, %v1198
        %1200 = vdwg.mxu0
        %1201 = vmatprep.subr.mxu0 %v941
        %1202 = vmatpush1.msra.mxu0 %v940
        %1203 = vmatprep.subr.mxu0 %v947
        %1204 = vmatpush1.msra.mxu0 %v946
        %1205 = vmatprep.subr.mxu0 %v953
        %1206 = vmatpush1.msra.mxu0 %v952
        %1207 = vmatprep.subr.mxu0 %v959
        %1208 = vmatpush1.msra.mxu0 %v958
        %1209 = vmatprep.subr.mxu0 %v965
        %1210 = vmatpush1.msra.mxu0 %v964
        %1211 = vmatprep.subr.mxu0 %v971
        %1212 = vmatpush1.msra.mxu0 %v970
        %1213 = vmatprep.subr.mxu0 %v977
        %1214 = vmatpush1.msra.mxu0 %v976
        %1215 = vmatprep.subr.mxu0 %v983
        %1216 = vmatpush1.msra.mxu0 %v982
        %1217 = vmatprep.subr.mxu0 %v989
        %1218 = vmatpush1.msra.mxu0 %v988
        %1219 = vmatprep.subr.mxu0 %v995
        %1220 = vmatpush1.msra.mxu0 %v994
        %1221 = vmatprep.subr.mxu0 %v1001
        %1222 = vmatpush1.msra.mxu0 %v1000
        %1223 = vmatprep.subr.mxu0 %v1007
        %1224 = vmatpush1.msra.mxu0 %v1006
        %1225 = vmatprep.subr.mxu0 %v1013
        %1226 = vmatpush1.msra.mxu0 %v1012
        %1227 = vmatprep.subr.mxu0 %v1019
        %1228 = vmatpush1.msra.mxu0 %v1018
        %1229 = vmatprep.subr.mxu0 %v1025
        %1230 = vmatpush1.msra.mxu0 %v1024
        %1231 = vmatprep.subr.mxu0 %v1031
        %1232 = vmatpush1.msra.mxu0 %v1030
        %1233 = vmatprep.subr.mxu0 %v1037
        %1234 = vmatpush1.msra.mxu0 %v1036
        %1235 = vmatprep.subr.mxu0 %v1043
        %1236 = vmatpush1.msra.mxu0 %v1042
        %1237 = vmatprep.subr.mxu0 %v1049
        %1238 = vmatpush1.msra.mxu0 %v1048
        %1239 = vmatprep.subr.mxu0 %v1055
        %1240 = vmatpush1.msra.mxu0 %v1054
        %1241 = vmatprep.subr.mxu0 %v1061
        %1242 = vmatpush1.msra.mxu0 %v1060
        %1243 = vmatprep.subr.mxu0 %v1067
        %1244 = vmatpush1.msra.mxu0 %v1066
        %1245 = vmatprep.subr.mxu0 %v1073
        %1246 = vmatpush1.msra.mxu0 %v1072
        %1247 = vmatprep.subr.mxu0 %v1079
        %1248 = vmatpush1.msra.mxu0 %v1078
        %1249 = vmatprep.subr.mxu0 %v1085
        %1250 = vmatpush1.msra.mxu0 %v1084
        %1251 = vmatprep.subr.mxu0 %v1091
        %1252 = vmatpush1.msra.mxu0 %v1090
        %1253 = vmatprep.subr.mxu0 %v1097
        %1254 = vmatpush1.msra.mxu0 %v1096
        %1255 = vmatprep.subr.mxu0 %v1103
        %1256 = vmatpush1.msra.mxu0 %v1102
        %1257 = vmatprep.subr.mxu0 %v1109
        %1258 = vmatpush1.msra.mxu0 %v1108
        %1259 = vmatprep.subr.mxu0 %v1115
        %1260 = vmatpush1.msra.mxu0 %v1114
        %1261 = vmatprep.subr.mxu0 %v1121
        %1262 = vmatpush1.msra.mxu0 %v1120
        %1263 = vmatprep.subr.mxu0 %v1127
        %1264 = vmatpush1.msra.mxu0 %v1126
        %1265 = vmatprep.mubr.f32.mxu0 %v733
        %1266 = vmatmul.mubr.f32.gmra.mrb[0].mxu0 %v732
        %v1267 = vpop.f32.mrb[0].mxu0
        %v1268 = vadd.f32 0.0, %v1267
        %v1269 = vpop.f32.mrb[0].mxu0
        %v1270 = vadd.f32 0.0, %v1269
        %1271 = vdwg.mxu0
        %1272 = vmatprep.subr.mxu0 %v943
        %1273 = vmatpush1.msra.mxu0 %v942
        %1274 = vmatprep.subr.mxu0 %v949
        %1275 = vmatpush1.msra.mxu0 %v948
        %1276 = vmatprep.subr.mxu0 %v955
        %1277 = vmatpush1.msra.mxu0 %v954
        %1278 = vmatprep.subr.mxu0 %v961
        %1279 = vmatpush1.msra.mxu0 %v960
        %1280 = vmatprep.subr.mxu0 %v967
        %1281 = vmatpush1.msra.mxu0 %v966
        %1282 = vmatprep.subr.mxu0 %v973
        %1283 = vmatpush1.msra.mxu0 %v972
        %1284 = vmatprep.subr.mxu0 %v979
        %1285 = vmatpush1.msra.mxu0 %v978
        %1286 = vmatprep.subr.mxu0 %v985
        %1287 = vmatpush1.msra.mxu0 %v984
        %1288 = vmatprep.subr.mxu0 %v991
        %1289 = vmatpush1.msra.mxu0 %v990
        %1290 = vmatprep.subr.mxu0 %v997
        %1291 = vmatpush1.msra.mxu0 %v996
        %1292 = vmatprep.subr.mxu0 %v1003
        %1293 = vmatpush1.msra.mxu0 %v1002
        %1294 = vmatprep.subr.mxu0 %v1009
        %1295 = vmatpush1.msra.mxu0 %v1008
        %1296 = vmatprep.subr.mxu0 %v1015
        %1297 = vmatpush1.msra.mxu0 %v1014
        %1298 = vmatprep.subr.mxu0 %v1021
        %1299 = vmatpush1.msra.mxu0 %v1020
        %1300 = vmatprep.subr.mxu0 %v1027
        %1301 = vmatpush1.msra.mxu0 %v1026
        %1302 = vmatprep.subr.mxu0 %v1033
        %1303 = vmatpush1.msra.mxu0 %v1032
        %1304 = vmatprep.subr.mxu0 %v1039
        %1305 = vmatpush1.msra.mxu0 %v1038
        %1306 = vmatprep.subr.mxu0 %v1045
        %1307 = vmatpush1.msra.mxu0 %v1044
        %1308 = vmatprep.subr.mxu0 %v1051
        %1309 = vmatpush1.msra.mxu0 %v1050
        %1310 = vmatprep.subr.mxu0 %v1057
        %1311 = vmatpush1.msra.mxu0 %v1056
        %1312 = vmatprep.subr.mxu0 %v1063
        %1313 = vmatpush1.msra.mxu0 %v1062
        %1314 = vmatprep.subr.mxu0 %v1069
        %1315 = vmatpush1.msra.mxu0 %v1068
        %1316 = vmatprep.subr.mxu0 %v1075
        %1317 = vmatpush1.msra.mxu0 %v1074
        %1318 = vmatprep.subr.mxu0 %v1081
        %1319 = vmatpush1.msra.mxu0 %v1080
        %1320 = vmatprep.subr.mxu0 %v1087
        %1321 = vmatpush1.msra.mxu0 %v1086
        %1322 = vmatprep.subr.mxu0 %v1093
        %1323 = vmatpush1.msra.mxu0 %v1092
        %1324 = vmatprep.subr.mxu0 %v1099
        %1325 = vmatpush1.msra.mxu0 %v1098
        %1326 = vmatprep.subr.mxu0 %v1105
        %1327 = vmatpush1.msra.mxu0 %v1104
        %1328 = vmatprep.subr.mxu0 %v1111
        %1329 = vmatpush1.msra.mxu0 %v1110
        %1330 = vmatprep.subr.mxu0 %v1117
        %1331 = vmatpush1.msra.mxu0 %v1116
        %1332 = vmatprep.subr.mxu0 %v1123
        %1333 = vmatpush1.msra.mxu0 %v1122
        %1334 = vmatprep.subr.mxu0 %v1129
        %1335 = vmatpush1.msra.mxu0 %v1128
        %1336 = vmatprep.mubr.f32.mxu0 %v733
        %1337 = vmatmul.mubr.f32.gmra.mrb[0].mxu0 %v732
        %v1338 = vpop.f32.mrb[0].mxu0
        %v1339 = vadd.f32 0.0, %v1338
        %v1340 = vpop.f32.mrb[0].mxu0
        %v1341 = vadd.f32 0.0, %v1340
        %1342 = vdwg.mxu0
        %v1343 = vld [vmem:[%s7] sm:$0x3]
        %v1344 = vadd.f32 %v836, %v1197
        %v1345 = vadd.f32 %v837, %v1199
        %v1346 = vxor.u32 %v1344, 2147483648
        %v1347 = vxor.u32 %v1345, 2147483648
        %v1348 = vmul.f32 %v1346, 1.442695
        %v1349 = vpow.pop %v1348
        %v1350 = vmul.f32 %v1347, 1.442695
        %v1351 = vpow.pop %v1350
        %v1352 = vadd.f32 %v1349, 1.0
        %v1353 = vadd.f32 %v1351, 1.0
        %v1354 = vrcp.pop %v1352
        %v1355 = vmul.f32 1.0, %v1354
        %v1356 = vrcp.pop %v1353
        %v1357 = vmul.f32 1.0, %v1356
        %v1358 = vadd.f32 %v838, %v1268
        %v1359 = vadd.f32 %v839, %v1270
        %v1360 = vxor.u32 %v1358, 2147483648
        %v1361 = vxor.u32 %v1359, 2147483648
        %v1362 = vmul.f32 %v1360, 1.442695
        %v1363 = vpow.pop %v1362
        %v1364 = vmul.f32 %v1361, 1.442695
        %v1365 = vpow.pop %v1364
        %v1366 = vadd.f32 %v1363, 1.0
        %v1367 = vadd.f32 %v1365, 1.0
        %v1368 = vrcp.pop %v1366
        %v1369 = vmul.f32 1.0, %v1368
        %v1370 = vrcp.pop %v1367
        %v1371 = vmul.f32 1.0, %v1370
        %v1373 = vlaneseq
        %v1374 = vshrl.u32 %v1373, 7
        %v1375 = vsub.s32 0, %v1374
        %v1376 = vrot.slane %v1343, %v1375
        %v1377 = vlaneseq
        %v1378 = vshrl.u32 %v1377, 7
        %v1379 = vsub.s32 1, %v1378
        %v1380 = vrot.slane %v1343, %v1379
        %v1383 = vadd.f32 %v1339, %v1376
        %v1384 = vadd.f32 %v1341, %v1380
        %v1385 = vmul.f32 %v1355, %v1383
        %v1386 = vmul.f32 %v1357, %v1384
        %v1387 = vadd.f32 %v840, %v1385
        %v1388 = vadd.f32 %v841, %v1386
        %v1389 = vtanh.pop %v1387
        %v1390 = vtanh.pop %v1388
        %v1391 = vsub.f32 1.0, %v1369
        %v1392 = vsub.f32 1.0, %v1371
        %v1393 = vmul.f32 %v1391, %v1389
        %v1394 = vmul.f32 %v1392, %v1390
        %v1395 = vmul.f32 %v1369, %v732
        %v1396 = vmul.f32 %v1371, %v733
        %v1397 = vadd.f32 %v1393, %v1395
        %v1398 = vadd.f32 %v1394, %v1396
        %1399 = vst [vmem:[#allocation2] sm:$0xff] %v1397
        %1400 = vst [vmem:[#allocation2 + $0x8] sm:$0xff] %v1398
        %v1401 = vld [vmem:[#allocation3] sm:$0xff]
        %v1402 = vld [vmem:[#allocation8] sm:$0xff]
        %v1403 = vld [vmem:[#allocation8 + $0x8] sm:$0xf]
        %v1404 = vld [vmem:[#allocation8 + $0xc] sm:$0xff]
        %v1405 = vld [vmem:[#allocation8 + $0x14] sm:$0xf]
        %v1406 = vld [vmem:[#allocation8 + $0x18] sm:$0xff]
        %v1407 = vld [vmem:[#allocation8 + $0x20] sm:$0xf]
        %v1408 = vld [vmem:[#allocation8 + $0x24] sm:$0xff]
        %v1409 = vld [vmem:[#allocation8 + $0x2c] sm:$0xf]
        %v1410 = vld [vmem:[#allocation8 + $0x30] sm:$0xff]
        %v1411 = vld [vmem:[#allocation8 + $0x38] sm:$0xf]
        %v1412 = vld [vmem:[#allocation8 + $0x3c] sm:$0xff]
        %v1413 = vld [vmem:[#allocation8 + $0x44] sm:$0xf]
        %v1414 = vld [vmem:[#allocation8 + $0x48] sm:$0xff]
        %v1415 = vld [vmem:[#allocation8 + $0x50] sm:$0xf]
        %v1416 = vld [vmem:[#allocation8 + $0x54] sm:$0xff]
        %v1417 = vld [vmem:[#allocation8 + $0x5c] sm:$0xf]
        %v1418 = vld [vmem:[#allocation8 + $0x60] sm:$0xff]
        %v1419 = vld [vmem:[#allocation8 + $0x68] sm:$0xf]
        %v1420 = vld [vmem:[#allocation8 + $0x6c] sm:$0xff]
        %v1421 = vld [vmem:[#allocation8 + $0x74] sm:$0xf]
        %v1422 = vld [vmem:[#allocation8 + $0x78] sm:$0xff]
        %v1423 = vld [vmem:[#allocation8 + $0x80] sm:$0xf]
        %v1424 = vld [vmem:[#allocation8 + $0x84] sm:$0xff]
        %v1425 = vld [vmem:[#allocation8 + $0x8c] sm:$0xf]
        %v1426 = vld [vmem:[#allocation8 + $0x90] sm:$0xff]
        %v1427 = vld [vmem:[#allocation8 + $0x98] sm:$0xf]
        %v1428 = vld [vmem:[#allocation8 + $0x9c] sm:$0xff]
        %v1429 = vld [vmem:[#allocation8 + $0xa4] sm:$0xf]
        %v1430 = vld [vmem:[#allocation8 + $0xa8] sm:$0xff]
        %v1431 = vld [vmem:[#allocation8 + $0xb0] sm:$0xf]
        %v1432 = vld [vmem:[#allocation8 + $0xb4] sm:$0xff]
        %v1433 = vld [vmem:[#allocation8 + $0xbc] sm:$0xf]
        %v1434 = vld [vmem:[#allocation8 + $0xc0] sm:$0xff]
        %v1435 = vld [vmem:[#allocation8 + $0xc8] sm:$0xf]
        %v1436 = vld [vmem:[#allocation8 + $0xcc] sm:$0xff]
        %v1437 = vld [vmem:[#allocation8 + $0xd4] sm:$0xf]
        %v1438 = vld [vmem:[#allocation8 + $0xd8] sm:$0xff]
        %v1439 = vld [vmem:[#allocation8 + $0xe0] sm:$0xf]
        %v1440 = vld [vmem:[#allocation8 + $0xe4] sm:$0xff]
        %v1441 = vld [vmem:[#allocation8 + $0xec] sm:$0xf]
        %v1442 = vld [vmem:[#allocation8 + $0xf0] sm:$0xff]
        %v1443 = vld [vmem:[#allocation8 + $0xf8] sm:$0xf]
        %v1444 = vld [vmem:[#allocation8 + $0xfc] sm:$0xff]
        %v1445 = vld [vmem:[#allocation8 + $0x104] sm:$0xf]
        %v1446 = vld [vmem:[#allocation8 + $0x108] sm:$0xff]
        %v1447 = vld [vmem:[#allocation8 + $0x110] sm:$0xf]
        %v1448 = vld [vmem:[#allocation8 + $0x114] sm:$0xff]
        %v1449 = vld [vmem:[#allocation8 + $0x11c] sm:$0xf]
        %v1450 = vld [vmem:[#allocation8 + $0x120] sm:$0xff]
        %v1451 = vld [vmem:[#allocation8 + $0x128] sm:$0xf]
        %v1452 = vld [vmem:[#allocation8 + $0x12c] sm:$0xff]
        %v1453 = vld [vmem:[#allocation8 + $0x134] sm:$0xf]
        %v1454 = vld [vmem:[#allocation8 + $0x138] sm:$0xff]
        %v1455 = vld [vmem:[#allocation8 + $0x140] sm:$0xf]
        %v1456 = vld [vmem:[#allocation8 + $0x144] sm:$0xff]
        %v1457 = vld [vmem:[#allocation8 + $0x14c] sm:$0xf]
        %v1458 = vld [vmem:[#allocation8 + $0x150] sm:$0xff]
        %v1459 = vld [vmem:[#allocation8 + $0x158] sm:$0xf]
        %v1460 = vld [vmem:[#allocation8 + $0x15c] sm:$0xff]
        %v1461 = vld [vmem:[#allocation8 + $0x164] sm:$0xf]
        %v1462 = vld [vmem:[#allocation8 + $0x168] sm:$0xff]
        %v1463 = vld [vmem:[#allocation8 + $0x170] sm:$0xf]
        %v1464 = vld [vmem:[#allocation8 + $0x174] sm:$0xff]
        %v1465 = vld [vmem:[#allocation8 + $0x17c] sm:$0xf]
        %v1466 = vunpack.c.l.bf16 %v1402
        %v1467 = vunpack.c.h.bf16 %v1402
        %v1468 = vunpack.c.l.bf16 %v1403
        %v1469 = vunpack.c.l.bf16 %v1404
        %v1470 = vunpack.c.h.bf16 %v1404
        %v1471 = vunpack.c.l.bf16 %v1405
        %v1472 = vunpack.c.l.bf16 %v1406
        %v1473 = vunpack.c.h.bf16 %v1406
        %v1474 = vunpack.c.l.bf16 %v1407
        %v1475 = vunpack.c.l.bf16 %v1408
        %v1476 = vunpack.c.h.bf16 %v1408
        %v1477 = vunpack.c.l.bf16 %v1409
        %v1478 = vunpack.c.l.bf16 %v1410
        %v1479 = vunpack.c.h.bf16 %v1410
        %v1480 = vunpack.c.l.bf16 %v1411
        %v1481 = vunpack.c.l.bf16 %v1412
        %v1482 = vunpack.c.h.bf16 %v1412
        %v1483 = vunpack.c.l.bf16 %v1413
        %v1484 = vunpack.c.l.bf16 %v1414
        %v1485 = vunpack.c.h.bf16 %v1414
        %v1486 = vunpack.c.l.bf16 %v1415
        %v1487 = vunpack.c.l.bf16 %v1416
        %v1488 = vunpack.c.h.bf16 %v1416
        %v1489 = vunpack.c.l.bf16 %v1417
        %v1490 = vunpack.c.l.bf16 %v1418
        %v1491 = vunpack.c.h.bf16 %v1418
        %v1492 = vunpack.c.l.bf16 %v1419
        %v1493 = vunpack.c.l.bf16 %v1420
        %v1494 = vunpack.c.h.bf16 %v1420
        %v1495 = vunpack.c.l.bf16 %v1421
        %v1496 = vunpack.c.l.bf16 %v1422
        %v1497 = vunpack.c.h.bf16 %v1422
        %v1498 = vunpack.c.l.bf16 %v1423
        %v1499 = vunpack.c.l.bf16 %v1424
        %v1500 = vunpack.c.h.bf16 %v1424
        %v1501 = vunpack.c.l.bf16 %v1425
        %v1502 = vunpack.c.l.bf16 %v1426
        %v1503 = vunpack.c.h.bf16 %v1426
        %v1504 = vunpack.c.l.bf16 %v1427
        %v1505 = vunpack.c.l.bf16 %v1428
        %v1506 = vunpack.c.h.bf16 %v1428
        %v1507 = vunpack.c.l.bf16 %v1429
        %v1508 = vunpack.c.l.bf16 %v1430
        %v1509 = vunpack.c.h.bf16 %v1430
        %v1510 = vunpack.c.l.bf16 %v1431
        %v1511 = vunpack.c.l.bf16 %v1432
        %v1512 = vunpack.c.h.bf16 %v1432
        %v1513 = vunpack.c.l.bf16 %v1433
        %v1514 = vunpack.c.l.bf16 %v1434
        %v1515 = vunpack.c.h.bf16 %v1434
        %v1516 = vunpack.c.l.bf16 %v1435
        %v1517 = vunpack.c.l.bf16 %v1436
        %v1518 = vunpack.c.h.bf16 %v1436
        %v1519 = vunpack.c.l.bf16 %v1437
        %v1520 = vunpack.c.l.bf16 %v1438
        %v1521 = vunpack.c.h.bf16 %v1438
        %v1522 = vunpack.c.l.bf16 %v1439
        %v1523 = vunpack.c.l.bf16 %v1440
        %v1524 = vunpack.c.h.bf16 %v1440
        %v1525 = vunpack.c.l.bf16 %v1441
        %v1526 = vunpack.c.l.bf16 %v1442
        %v1527 = vunpack.c.h.bf16 %v1442
        %v1528 = vunpack.c.l.bf16 %v1443
        %v1529 = vunpack.c.l.bf16 %v1444
        %v1530 = vunpack.c.h.bf16 %v1444
        %v1531 = vunpack.c.l.bf16 %v1445
        %v1532 = vunpack.c.l.bf16 %v1446
        %v1533 = vunpack.c.h.bf16 %v1446
        %v1534 = vunpack.c.l.bf16 %v1447
        %v1535 = vunpack.c.l.bf16 %v1448
        %v1536 = vunpack.c.h.bf16 %v1448
        %v1537 = vunpack.c.l.bf16 %v1449
        %v1538 = vunpack.c.l.bf16 %v1450
        %v1539 = vunpack.c.h.bf16 %v1450
        %v1540 = vunpack.c.l.bf16 %v1451
        %v1541 = vunpack.c.l.bf16 %v1452
        %v1542 = vunpack.c.h.bf16 %v1452
        %v1543 = vunpack.c.l.bf16 %v1453
        %v1544 = vunpack.c.l.bf16 %v1454
        %v1545 = vunpack.c.h.bf16 %v1454
        %v1546 = vunpack.c.l.bf16 %v1455
        %v1547 = vunpack.c.l.bf16 %v1456
        %v1548 = vunpack.c.h.bf16 %v1456
        %v1549 = vunpack.c.l.bf16 %v1457
        %v1550 = vunpack.c.l.bf16 %v1458
        %v1551 = vunpack.c.h.bf16 %v1458
        %v1552 = vunpack.c.l.bf16 %v1459
        %v1553 = vunpack.c.l.bf16 %v1460
        %v1554 = vunpack.c.h.bf16 %v1460
        %v1555 = vunpack.c.l.bf16 %v1461
        %v1556 = vunpack.c.l.bf16 %v1462
        %v1557 = vunpack.c.h.bf16 %v1462
        %v1558 = vunpack.c.l.bf16 %v1463
        %v1559 = vunpack.c.l.bf16 %v1464
        %v1560 = vunpack.c.h.bf16 %v1464
        %v1561 = vunpack.c.l.bf16 %v1465
        %v1562 = vld [vmem:[%s9] sm:$0x7]
        %v1564 = vlaneseq
        %v1565 = vshrl.u32 %v1564, 7
        %v1566 = vsub.s32 0, %v1565
        %v1567 = vrot.slane %v1562, %v1566
        %v1568 = vlaneseq
        %v1569 = vshrl.u32 %v1568, 7
        %v1570 = vsub.s32 1, %v1569
        %v1571 = vrot.slane %v1562, %v1570
        %v1572 = vlaneseq
        %v1573 = vshrl.u32 %v1572, 7
        %v1574 = vsub.s32 2, %v1573
        %v1575 = vrot.slane %v1562, %v1574
        %1579 = vmatprep.subr.mxu0 %v1467
        %1580 = vmatpush1.msra.mxu0 %v1466
        %1581 = vmatprep.subr.mxu0 %v1470
        %1582 = vmatpush1.msra.mxu0 %v1469
        %1583 = vmatprep.subr.mxu0 %v1473
        %1584 = vmatpush1.msra.mxu0 %v1472
        %1585 = vmatprep.subr.mxu0 %v1476
        %1586 = vmatpush1.msra.mxu0 %v1475
        %1587 = vmatprep.subr.mxu0 %v1479
        %1588 = vmatpush1.msra.mxu0 %v1478
        %1589 = vmatprep.subr.mxu0 %v1482
        %1590 = vmatpush1.msra.mxu0 %v1481
        %1591 = vmatprep.subr.mxu0 %v1485
        %1592 = vmatpush1.msra.mxu0 %v1484
        %1593 = vmatprep.subr.mxu0 %v1488
        %1594 = vmatpush1.msra.mxu0 %v1487
        %1595 = vmatprep.subr.mxu0 %v1491
        %1596 = vmatpush1.msra.mxu0 %v1490
        %1597 = vmatprep.subr.mxu0 %v1494
        %1598 = vmatpush1.msra.mxu0 %v1493
        %1599 = vmatprep.subr.mxu0 %v1497
        %1600 = vmatpush1.msra.mxu0 %v1496
        %1601 = vmatprep.subr.mxu0 %v1500
        %1602 = vmatpush1.msra.mxu0 %v1499
        %1603 = vmatprep.subr.mxu0 %v1503
        %1604 = vmatpush1.msra.mxu0 %v1502
        %1605 = vmatprep.subr.mxu0 %v1506
        %1606 = vmatpush1.msra.mxu0 %v1505
        %1607 = vmatprep.subr.mxu0 %v1509
        %1608 = vmatpush1.msra.mxu0 %v1508
        %1609 = vmatprep.subr.mxu0 %v1512
        %1610 = vmatpush1.msra.mxu0 %v1511
        %1611 = vmatprep.subr.mxu0 %v1515
        %1612 = vmatpush1.msra.mxu0 %v1514
        %1613 = vmatprep.subr.mxu0 %v1518
        %1614 = vmatpush1.msra.mxu0 %v1517
        %1615 = vmatprep.subr.mxu0 %v1521
        %1616 = vmatpush1.msra.mxu0 %v1520
        %1617 = vmatprep.subr.mxu0 %v1524
        %1618 = vmatpush1.msra.mxu0 %v1523
        %1619 = vmatprep.subr.mxu0 %v1527
        %1620 = vmatpush1.msra.mxu0 %v1526
        %1621 = vmatprep.subr.mxu0 %v1530
        %1622 = vmatpush1.msra.mxu0 %v1529
        %1623 = vmatprep.subr.mxu0 %v1533
        %1624 = vmatpush1.msra.mxu0 %v1532
        %1625 = vmatprep.subr.mxu0 %v1536
        %1626 = vmatpush1.msra.mxu0 %v1535
        %1627 = vmatprep.subr.mxu0 %v1539
        %1628 = vmatpush1.msra.mxu0 %v1538
        %1629 = vmatprep.subr.mxu0 %v1542
        %1630 = vmatpush1.msra.mxu0 %v1541
        %1631 = vmatprep.subr.mxu0 %v1545
        %1632 = vmatpush1.msra.mxu0 %v1544
        %1633 = vmatprep.subr.mxu0 %v1548
        %1634 = vmatpush1.msra.mxu0 %v1547
        %1635 = vmatprep.subr.mxu0 %v1551
        %1636 = vmatpush1.msra.mxu0 %v1550
        %1637 = vmatprep.subr.mxu0 %v1554
        %1638 = vmatpush1.msra.mxu0 %v1553
        %1639 = vmatprep.subr.mxu0 %v1557
        %1640 = vmatpush1.msra.mxu0 %v1556
        %1641 = vmatprep.subr.mxu0 %v1560
        %1642 = vmatpush1.msra.mxu0 %v1559
        %1643 = vmatprep.mubr.f32.mxu0 %v1398
        %1644 = vmatmul.mubr.f32.gmra.mrb[0].mxu0 %v1397
        %v1645 = vpop.f32.mrb[0].mxu0
        %v1646 = vadd.f32 %v1567, %v1645
        %v1647 = vpop.f32.mrb[0].mxu0
        %v1648 = vadd.f32 %v1571, %v1647
        %1649 = vdwg.mxu0
        %1650 = vmatprep.subr.mxu0 0.0
        %1651 = vmatpush1.msra.mxu0 %v1468
        %1652 = vmatprep.subr.mxu0 0.0
        %1653 = vmatpush1.msra.mxu0 %v1471
        %1654 = vmatprep.subr.mxu0 0.0
        %1655 = vmatpush1.msra.mxu0 %v1474
        %1656 = vmatprep.subr.mxu0 0.0
        %1657 = vmatpush1.msra.mxu0 %v1477
        %1658 = vmatprep.subr.mxu0 0.0
        %1659 = vmatpush1.msra.mxu0 %v1480
        %1660 = vmatprep.subr.mxu0 0.0
        %1661 = vmatpush1.msra.mxu0 %v1483
        %1662 = vmatprep.subr.mxu0 0.0
        %1663 = vmatpush1.msra.mxu0 %v1486
        %1664 = vmatprep.subr.mxu0 0.0
        %1665 = vmatpush1.msra.mxu0 %v1489
        %1666 = vmatprep.subr.mxu0 0.0
        %1667 = vmatpush1.msra.mxu0 %v1492
        %1668 = vmatprep.subr.mxu0 0.0
        %1669 = vmatpush1.msra.mxu0 %v1495
        %1670 = vmatprep.subr.mxu0 0.0
        %1671 = vmatpush1.msra.mxu0 %v1498
        %1672 = vmatprep.subr.mxu0 0.0
        %1673 = vmatpush1.msra.mxu0 %v1501
        %1674 = vmatprep.subr.mxu0 0.0
        %1675 = vmatpush1.msra.mxu0 %v1504
        %1676 = vmatprep.subr.mxu0 0.0
        %1677 = vmatpush1.msra.mxu0 %v1507
        %1678 = vmatprep.subr.mxu0 0.0
        %1679 = vmatpush1.msra.mxu0 %v1510
        %1680 = vmatprep.subr.mxu0 0.0
        %1681 = vmatpush1.msra.mxu0 %v1513
        %1682 = vmatprep.subr.mxu0 0.0
        %1683 = vmatpush1.msra.mxu0 %v1516
        %1684 = vmatprep.subr.mxu0 0.0
        %1685 = vmatpush1.msra.mxu0 %v1519
        %1686 = vmatprep.subr.mxu0 0.0
        %1687 = vmatpush1.msra.mxu0 %v1522
        %1688 = vmatprep.subr.mxu0 0.0
        %1689 = vmatpush1.msra.mxu0 %v1525
        %1690 = vmatprep.subr.mxu0 0.0
        %1691 = vmatpush1.msra.mxu0 %v1528
        %1692 = vmatprep.subr.mxu0 0.0
        %1693 = vmatpush1.msra.mxu0 %v1531
        %1694 = vmatprep.subr.mxu0 0.0
        %1695 = vmatpush1.msra.mxu0 %v1534
        %1696 = vmatprep.subr.mxu0 0.0
        %1697 = vmatpush1.msra.mxu0 %v1537
        %1698 = vmatprep.subr.mxu0 0.0
        %1699 = vmatpush1.msra.mxu0 %v1540
        %1700 = vmatprep.subr.mxu0 0.0
        %1701 = vmatpush1.msra.mxu0 %v1543
        %1702 = vmatprep.subr.mxu0 0.0
        %1703 = vmatpush1.msra.mxu0 %v1546
        %1704 = vmatprep.subr.mxu0 0.0
        %1705 = vmatpush1.msra.mxu0 %v1549
        %1706 = vmatprep.subr.mxu0 0.0
        %1707 = vmatpush1.msra.mxu0 %v1552
        %1708 = vmatprep.subr.mxu0 0.0
        %1709 = vmatpush1.msra.mxu0 %v1555
        %1710 = vmatprep.subr.mxu0 0.0
        %1711 = vmatpush1.msra.mxu0 %v1558
        %1712 = vmatprep.subr.mxu0 0.0
        %1713 = vmatpush1.msra.mxu0 %v1561
        %1714 = vmatprep.mubr.f32.mxu0 %v1398
        %1715 = vmatmul.mubr.f32.gmra.mrb[0].mxu0 %v1397
        %v1716 = vpop.f32.mrb[0].mxu0
        %v1717 = vadd.f32 %v1575, %v1716
        %v1718 = vpop.f32.mrb[0].mxu0
        %1719 = vdwg.mxu0
        %v1720 = vld [vmem:[#allocation10] sm:$0xff]
        %v1721 = vld [vmem:[#allocation10 + $0x8] sm:$0xf]
        %v1722 = vld [vmem:[#allocation10 + $0xc] sm:$0xff]
        %v1723 = vld [vmem:[#allocation10 + $0x14] sm:$0xf]
        %v1724 = vld [vmem:[#allocation10 + $0x18] sm:$0xff]
        %v1725 = vld [vmem:[#allocation10 + $0x20] sm:$0xf]
        %v1726 = vld [vmem:[#allocation10 + $0x24] sm:$0xff]
        %v1727 = vld [vmem:[#allocation10 + $0x2c] sm:$0xf]
        %v1728 = vld [vmem:[#allocation10 + $0x30] sm:$0xff]
        %v1729 = vld [vmem:[#allocation10 + $0x38] sm:$0xf]
        %v1730 = vld [vmem:[#allocation10 + $0x3c] sm:$0xff]
        %v1731 = vld [vmem:[#allocation10 + $0x44] sm:$0xf]
        %v1732 = vld [vmem:[#allocation10 + $0x48] sm:$0xff]
        %v1733 = vld [vmem:[#allocation10 + $0x50] sm:$0xf]
        %v1734 = vld [vmem:[#allocation10 + $0x54] sm:$0xff]
        %v1735 = vld [vmem:[#allocation10 + $0x5c] sm:$0xf]
        %v1736 = vld [vmem:[#allocation10 + $0x60] sm:$0xff]
        %v1737 = vld [vmem:[#allocation10 + $0x68] sm:$0xf]
        %v1738 = vld [vmem:[#allocation10 + $0x6c] sm:$0xff]
        %v1739 = vld [vmem:[#allocation10 + $0x74] sm:$0xf]
        %v1740 = vld [vmem:[#allocation10 + $0x78] sm:$0xff]
        %v1741 = vld [vmem:[#allocation10 + $0x80] sm:$0xf]
        %v1742 = vld [vmem:[#allocation10 + $0x84] sm:$0xff]
        %v1743 = vld [vmem:[#allocation10 + $0x8c] sm:$0xf]
        %v1744 = vld [vmem:[#allocation10 + $0x90] sm:$0xff]
        %v1745 = vld [vmem:[#allocation10 + $0x98] sm:$0xf]
        %v1746 = vld [vmem:[#allocation10 + $0x9c] sm:$0xff]
        %v1747 = vld [vmem:[#allocation10 + $0xa4] sm:$0xf]
        %v1748 = vld [vmem:[#allocation10 + $0xa8] sm:$0xff]
        %v1749 = vld [vmem:[#allocation10 + $0xb0] sm:$0xf]
        %v1750 = vld [vmem:[#allocation10 + $0xb4] sm:$0xff]
        %v1751 = vld [vmem:[#allocation10 + $0xbc] sm:$0xf]
        %v1752 = vunpack.c.l.bf16 %v1720
        %v1753 = vunpack.c.h.bf16 %v1720
        %v1754 = vunpack.c.l.bf16 %v1721
        %v1755 = vunpack.c.l.bf16 %v1722
        %v1756 = vunpack.c.h.bf16 %v1722
        %v1757 = vunpack.c.l.bf16 %v1723
        %v1758 = vunpack.c.l.bf16 %v1724
        %v1759 = vunpack.c.h.bf16 %v1724
        %v1760 = vunpack.c.l.bf16 %v1725
        %v1761 = vunpack.c.l.bf16 %v1726
        %v1762 = vunpack.c.h.bf16 %v1726
        %v1763 = vunpack.c.l.bf16 %v1727
        %v1764 = vunpack.c.l.bf16 %v1728
        %v1765 = vunpack.c.h.bf16 %v1728
        %v1766 = vunpack.c.l.bf16 %v1729
        %v1767 = vunpack.c.l.bf16 %v1730
        %v1768 = vunpack.c.h.bf16 %v1730
        %v1769 = vunpack.c.l.bf16 %v1731
        %v1770 = vunpack.c.l.bf16 %v1732
        %v1771 = vunpack.c.h.bf16 %v1732
        %v1772 = vunpack.c.l.bf16 %v1733
        %v1773 = vunpack.c.l.bf16 %v1734
        %v1774 = vunpack.c.h.bf16 %v1734
        %v1775 = vunpack.c.l.bf16 %v1735
        %v1776 = vunpack.c.l.bf16 %v1736
        %v1777 = vunpack.c.h.bf16 %v1736
        %v1778 = vunpack.c.l.bf16 %v1737
        %v1779 = vunpack.c.l.bf16 %v1738
        %v1780 = vunpack.c.h.bf16 %v1738
        %v1781 = vunpack.c.l.bf16 %v1739
        %v1782 = vunpack.c.l.bf16 %v1740
        %v1783 = vunpack.c.h.bf16 %v1740
        %v1784 = vunpack.c.l.bf16 %v1741
        %v1785 = vunpack.c.l.bf16 %v1742
        %v1786 = vunpack.c.h.bf16 %v1742
        %v1787 = vunpack.c.l.bf16 %v1743
        %v1788 = vunpack.c.l.bf16 %v1744
        %v1789 = vunpack.c.h.bf16 %v1744
        %v1790 = vunpack.c.l.bf16 %v1745
        %v1791 = vunpack.c.l.bf16 %v1746
        %v1792 = vunpack.c.h.bf16 %v1746
        %v1793 = vunpack.c.l.bf16 %v1747
        %v1794 = vunpack.c.l.bf16 %v1748
        %v1795 = vunpack.c.h.bf16 %v1748
        %v1796 = vunpack.c.l.bf16 %v1749
        %v1797 = vunpack.c.l.bf16 %v1750
        %v1798 = vunpack.c.h.bf16 %v1750
        %v1799 = vunpack.c.l.bf16 %v1751
        %1800 = vmatprep.subr.mxu0 %v1753
        %1801 = vmatpush1.msra.mxu0 %v1752
        %1802 = vmatprep.subr.mxu0 %v1756
        %1803 = vmatpush1.msra.mxu0 %v1755
        %1804 = vmatprep.subr.mxu0 %v1759
        %1805 = vmatpush1.msra.mxu0 %v1758
        %1806 = vmatprep.subr.mxu0 %v1762
        %1807 = vmatpush1.msra.mxu0 %v1761
        %1808 = vmatprep.subr.mxu0 %v1765
        %1809 = vmatpush1.msra.mxu0 %v1764
        %1810 = vmatprep.subr.mxu0 %v1768
        %1811 = vmatpush1.msra.mxu0 %v1767
        %1812 = vmatprep.subr.mxu0 %v1771
        %1813 = vmatpush1.msra.mxu0 %v1770
        %1814 = vmatprep.subr.mxu0 %v1774
        %1815 = vmatpush1.msra.mxu0 %v1773
        %1816 = vmatprep.subr.mxu0 %v1777
        %1817 = vmatpush1.msra.mxu0 %v1776
        %1818 = vmatprep.subr.mxu0 %v1780
        %1819 = vmatpush1.msra.mxu0 %v1779
        %1820 = vmatprep.subr.mxu0 %v1783
        %1821 = vmatpush1.msra.mxu0 %v1782
        %1822 = vmatprep.subr.mxu0 %v1786
        %1823 = vmatpush1.msra.mxu0 %v1785
        %1824 = vmatprep.subr.mxu0 %v1789
        %1825 = vmatpush1.msra.mxu0 %v1788
        %1826 = vmatprep.subr.mxu0 %v1792
        %1827 = vmatpush1.msra.mxu0 %v1791
        %1828 = vmatprep.subr.mxu0 %v1795
        %1829 = vmatpush1.msra.mxu0 %v1794
        %1830 = vmatprep.subr.mxu0 %v1798
        %1831 = vmatpush1.msra.mxu0 %v1797
        %1832 = vmatprep.subr.mxu0 0.0
        %1833 = vmatpush1.msra.mxu0 0.0
        %1834 = vmatprep.subr.mxu0 0.0
        %1835 = vmatpush1.msra.mxu0 0.0
        %1836 = vmatprep.subr.mxu0 0.0
        %1837 = vmatpush1.msra.mxu0 0.0
        %1838 = vmatprep.subr.mxu0 0.0
        %1839 = vmatpush1.msra.mxu0 0.0
        %1840 = vmatprep.subr.mxu0 0.0
        %1841 = vmatpush1.msra.mxu0 0.0
        %1842 = vmatprep.subr.mxu0 0.0
        %1843 = vmatpush1.msra.mxu0 0.0
        %1844 = vmatprep.subr.mxu0 0.0
        %1845 = vmatpush1.msra.mxu0 0.0
        %1846 = vmatprep.subr.mxu0 0.0
        %1847 = vmatpush1.msra.mxu0 0.0
        %1848 = vmatprep.subr.mxu0 0.0
        %1849 = vmatpush1.msra.mxu0 0.0
        %1850 = vmatprep.subr.mxu0 0.0
        %1851 = vmatpush1.msra.mxu0 0.0
        %1852 = vmatprep.subr.mxu0 0.0
        %1853 = vmatpush1.msra.mxu0 0.0
        %1854 = vmatprep.subr.mxu0 0.0
        %1855 = vmatpush1.msra.mxu0 0.0
        %1856 = vmatprep.subr.mxu0 0.0
        %1857 = vmatpush1.msra.mxu0 0.0
        %1858 = vmatprep.subr.mxu0 0.0
        %1859 = vmatpush1.msra.mxu0 0.0
        %1860 = vmatprep.subr.mxu0 0.0
        %1861 = vmatpush1.msra.mxu0 0.0
        %1862 = vmatprep.subr.mxu0 0.0
        %1863 = vmatpush1.msra.mxu0 0.0
        %1864 = vmatprep.mubr.f32.mxu0 0.0
        %1865 = vmatmul.mubr.f32.gmra.mrb[0].mxu0 %v1401
        %v1866 = vpop.f32.mrb[0].mxu0
        %v1867 = vadd.f32 0.0, %v1866
        %v1868 = vpop.f32.mrb[0].mxu0
        %v1869 = vadd.f32 0.0, %v1868
        %1870 = vdwg.mxu0
        %1871 = vmatprep.subr.mxu0 0.0
        %1872 = vmatpush1.msra.mxu0 %v1754
        %1873 = vmatprep.subr.mxu0 0.0
        %1874 = vmatpush1.msra.mxu0 %v1757
        %1875 = vmatprep.subr.mxu0 0.0
        %1876 = vmatpush1.msra.mxu0 %v1760
        %1877 = vmatprep.subr.mxu0 0.0
        %1878 = vmatpush1.msra.mxu0 %v1763
        %1879 = vmatprep.subr.mxu0 0.0
        %1880 = vmatpush1.msra.mxu0 %v1766
        %1881 = vmatprep.subr.mxu0 0.0
        %1882 = vmatpush1.msra.mxu0 %v1769
        %1883 = vmatprep.subr.mxu0 0.0
        %1884 = vmatpush1.msra.mxu0 %v1772
        %1885 = vmatprep.subr.mxu0 0.0
        %1886 = vmatpush1.msra.mxu0 %v1775
        %1887 = vmatprep.subr.mxu0 0.0
        %1888 = vmatpush1.msra.mxu0 %v1778
        %1889 = vmatprep.subr.mxu0 0.0
        %1890 = vmatpush1.msra.mxu0 %v1781
        %1891 = vmatprep.subr.mxu0 0.0
        %1892 = vmatpush1.msra.mxu0 %v1784
        %1893 = vmatprep.subr.mxu0 0.0
        %1894 = vmatpush1.msra.mxu0 %v1787
        %1895 = vmatprep.subr.mxu0 0.0
        %1896 = vmatpush1.msra.mxu0 %v1790
        %1897 = vmatprep.subr.mxu0 0.0
        %1898 = vmatpush1.msra.mxu0 %v1793
        %1899 = vmatprep.subr.mxu0 0.0
        %1900 = vmatpush1.msra.mxu0 %v1796
        %1901 = vmatprep.subr.mxu0 0.0
        %1902 = vmatpush1.msra.mxu0 %v1799
        %1903 = vmatprep.subr.mxu0 0.0
        %1904 = vmatpush1.msra.mxu0 0.0
        %1905 = vmatprep.subr.mxu0 0.0
        %1906 = vmatpush1.msra.mxu0 0.0
        %1907 = vmatprep.subr.mxu0 0.0
        %1908 = vmatpush1.msra.mxu0 0.0
        %1909 = vmatprep.subr.mxu0 0.0
        %1910 = vmatpush1.msra.mxu0 0.0
        %1911 = vmatprep.subr.mxu0 0.0
        %1912 = vmatpush1.msra.mxu0 0.0
        %1913 = vmatprep.subr.mxu0 0.0
        %1914 = vmatpush1.msra.mxu0 0.0
        %1915 = vmatprep.subr.mxu0 0.0
        %1916 = vmatpush1.msra.mxu0 0.0
        %1917 = vmatprep.subr.mxu0 0.0
        %1918 = vmatpush1.msra.mxu0 0.0
        %1919 = vmatprep.subr.mxu0 0.0
        %1920 = vmatpush1.msra.mxu0 0.0
        %1921 = vmatprep.subr.mxu0 0.0
        %1922 = vmatpush1.msra.mxu0 0.0
        %1923 = vmatprep.subr.mxu0 0.0
        %1924 = vmatpush1.msra.mxu0 0.0
        %1925 = vmatprep.subr.mxu0 0.0
        %1926 = vmatpush1.msra.mxu0 0.0
        %1927 = vmatprep.subr.mxu0 0.0
        %1928 = vmatpush1.msra.mxu0 0.0
        %1929 = vmatprep.subr.mxu0 0.0
        %1930 = vmatpush1.msra.mxu0 0.0
        %1931 = vmatprep.subr.mxu0 0.0
        %1932 = vmatpush1.msra.mxu0 0.0
        %1933 = vmatprep.subr.mxu0 0.0
        %1934 = vmatpush1.msra.mxu0 0.0
        %1935 = vmatprep.mubr.f32.mxu0 0.0
        %1936 = vmatmul.mubr.f32.gmra.mrb[0].mxu0 %v1401
        %v1937 = vpop.f32.mrb[0].mxu0
        %v1938 = vadd.f32 0.0, %v1937
        %v1939 = vpop.f32.mrb[0].mxu0
        %1940 = vdwg.mxu0
        %v1941 = vld [vmem:[%s11] sm:$0x1]
        %v1942 = vadd.f32 %v1646, %v1867
        %v1943 = vxor.u32 %v1942, 2147483648
        %v1944 = vmul.f32 %v1943, 1.442695
        %v1945 = vpow.pop %v1944
        %v1946 = vadd.f32 %v1945, 1.0
        %v1947 = vrcp.pop %v1946
        %v1948 = vmul.f32 1.0, %v1947
        %v1949 = vadd.f32 %v1648, %v1869
        %v1950 = vxor.u32 %v1949, 2147483648
        %v1951 = vmul.f32 %v1950, 1.442695
        %v1952 = vpow.pop %v1951
        %v1953 = vadd.f32 %v1952, 1.0
        %v1954 = vrcp.pop %v1953
        %v1955 = vmul.f32 1.0, %v1954
        %v1957 = vlaneseq
        %v1958 = vshrl.u32 %v1957, 7
        %v1959 = vsub.s32 0, %v1958
        %v1960 = vrot.slane %v1941, %v1959
        %v1962 = vadd.f32 %v1938, %v1960
        %v1963 = vmul.f32 %v1948, %v1962
        %v1964 = vadd.f32 %v1717, %v1963
        %v1965 = vtanh.pop %v1964
        %v1966 = vsub.f32 1.0, %v1955
        %v1967 = vmul.f32 %v1966, %v1965
        %v1968 = vmul.f32 %v1955, %v1401
        %v1969 = vadd.f32 %v1967, %v1968
        %1970 = vst [vmem:[#allocation3] sm:$0xff] %v1969
        %v1971 = vld [vmem:[#allocation4] sm:$0xff]
        %v1972 = vld [vmem:[#allocation11] sm:$0xff]
        %v1973 = vld [vmem:[#allocation11 + $0x8] sm:$0xf]
        %v1974 = vld [vmem:[#allocation11 + $0xc] sm:$0xff]
        %v1975 = vld [vmem:[#allocation11 + $0x14] sm:$0xf]
        %v1976 = vld [vmem:[#allocation11 + $0x18] sm:$0xff]
        %v1977 = vld [vmem:[#allocation11 + $0x20] sm:$0xf]
        %v1978 = vld [vmem:[#allocation11 + $0x24] sm:$0xff]
        %v1979 = vld [vmem:[#allocation11 + $0x2c] sm:$0xf]
        %v1980 = vld [vmem:[#allocation11 + $0x30] sm:$0xff]
        %v1981 = vld [vmem:[#allocation11 + $0x38] sm:$0xf]
        %v1982 = vld [vmem:[#allocation11 + $0x3c] sm:$0xff]
        %v1983 = vld [vmem:[#allocation11 + $0x44] sm:$0xf]
        %v1984 = vld [vmem:[#allocation11 + $0x48] sm:$0xff]
        %v1985 = vld [vmem:[#allocation11 + $0x50] sm:$0xf]
        %v1986 = vld [vmem:[#allocation11 + $0x54] sm:$0xff]
        %v1987 = vld [vmem:[#allocation11 + $0x5c] sm:$0xf]
        %v1988 = vld [vmem:[#allocation11 + $0x60] sm:$0xff]
        %v1989 = vld [vmem:[#allocation11 + $0x68] sm:$0xf]
        %v1990 = vld [vmem:[#allocation11 + $0x6c] sm:$0xff]
        %v1991 = vld [vmem:[#allocation11 + $0x74] sm:$0xf]
        %v1992 = vld [vmem:[#allocation11 + $0x78] sm:$0xff]
        %v1993 = vld [vmem:[#allocation11 + $0x80] sm:$0xf]
        %v1994 = vld [vmem:[#allocation11 + $0x84] sm:$0xff]
        %v1995 = vld [vmem:[#allocation11 + $0x8c] sm:$0xf]
        %v1996 = vld [vmem:[#allocation11 + $0x90] sm:$0xff]
        %v1997 = vld [vmem:[#allocation11 + $0x98] sm:$0xf]
        %v1998 = vld [vmem:[#allocation11 + $0x9c] sm:$0xff]
        %v1999 = vld [vmem:[#allocation11 + $0xa4] sm:$0xf]
        %v2000 = vld [vmem:[#allocation11 + $0xa8] sm:$0xff]
        %v2001 = vld [vmem:[#allocation11 + $0xb0] sm:$0xf]
        %v2002 = vld [vmem:[#allocation11 + $0xb4] sm:$0xff]
        %v2003 = vld [vmem:[#allocation11 + $0xbc] sm:$0xf]
        %v2004 = vunpack.c.l.bf16 %v1972
        %v2005 = vunpack.c.h.bf16 %v1972
        %v2006 = vunpack.c.l.bf16 %v1973
        %v2007 = vunpack.c.l.bf16 %v1974
        %v2008 = vunpack.c.h.bf16 %v1974
        %v2009 = vunpack.c.l.bf16 %v1975
        %v2010 = vunpack.c.l.bf16 %v1976
        %v2011 = vunpack.c.h.bf16 %v1976
        %v2012 = vunpack.c.l.bf16 %v1977
        %v2013 = vunpack.c.l.bf16 %v1978
        %v2014 = vunpack.c.h.bf16 %v1978
        %v2015 = vunpack.c.l.bf16 %v1979
        %v2016 = vunpack.c.l.bf16 %v1980
        %v2017 = vunpack.c.h.bf16 %v1980
        %v2018 = vunpack.c.l.bf16 %v1981
        %v2019 = vunpack.c.l.bf16 %v1982
        %v2020 = vunpack.c.h.bf16 %v1982
        %v2021 = vunpack.c.l.bf16 %v1983
        %v2022 = vunpack.c.l.bf16 %v1984
        %v2023 = vunpack.c.h.bf16 %v1984
        %v2024 = vunpack.c.l.bf16 %v1985
        %v2025 = vunpack.c.l.bf16 %v1986
        %v2026 = vunpack.c.h.bf16 %v1986
        %v2027 = vunpack.c.l.bf16 %v1987
        %v2028 = vunpack.c.l.bf16 %v1988
        %v2029 = vunpack.c.h.bf16 %v1988
        %v2030 = vunpack.c.l.bf16 %v1989
        %v2031 = vunpack.c.l.bf16 %v1990
        %v2032 = vunpack.c.h.bf16 %v1990
        %v2033 = vunpack.c.l.bf16 %v1991
        %v2034 = vunpack.c.l.bf16 %v1992
        %v2035 = vunpack.c.h.bf16 %v1992
        %v2036 = vunpack.c.l.bf16 %v1993
        %v2037 = vunpack.c.l.bf16 %v1994
        %v2038 = vunpack.c.h.bf16 %v1994
        %v2039 = vunpack.c.l.bf16 %v1995
        %v2040 = vunpack.c.l.bf16 %v1996
        %v2041 = vunpack.c.h.bf16 %v1996
        %v2042 = vunpack.c.l.bf16 %v1997
        %v2043 = vunpack.c.l.bf16 %v1998
        %v2044 = vunpack.c.h.bf16 %v1998
        %v2045 = vunpack.c.l.bf16 %v1999
        %v2046 = vunpack.c.l.bf16 %v2000
        %v2047 = vunpack.c.h.bf16 %v2000
        %v2048 = vunpack.c.l.bf16 %v2001
        %v2049 = vunpack.c.l.bf16 %v2002
        %v2050 = vunpack.c.h.bf16 %v2002
        %v2051 = vunpack.c.l.bf16 %v2003
        %v2052 = vld [vmem:[%s13] sm:$0x7]
        %v2054 = vlaneseq
        %v2055 = vshrl.u32 %v2054, 7
        %v2056 = vsub.s32 0, %v2055
        %v2057 = vrot.slane %v2052, %v2056
        %v2058 = vlaneseq
        %v2059 = vshrl.u32 %v2058, 7
        %v2060 = vsub.s32 1, %v2059
        %v2061 = vrot.slane %v2052, %v2060
        %v2062 = vlaneseq
        %v2063 = vshrl.u32 %v2062, 7
        %v2064 = vsub.s32 2, %v2063
        %v2065 = vrot.slane %v2052, %v2064
        %2069 = vmatprep.subr.mxu0 %v2005
        %2070 = vmatpush1.msra.mxu0 %v2004
        %2071 = vmatprep.subr.mxu0 %v2008
        %2072 = vmatpush1.msra.mxu0 %v2007
        %2073 = vmatprep.subr.mxu0 %v2011
        %2074 = vmatpush1.msra.mxu0 %v2010
        %2075 = vmatprep.subr.mxu0 %v2014
        %2076 = vmatpush1.msra.mxu0 %v2013
        %2077 = vmatprep.subr.mxu0 %v2017
        %2078 = vmatpush1.msra.mxu0 %v2016
        %2079 = vmatprep.subr.mxu0 %v2020
        %2080 = vmatpush1.msra.mxu0 %v2019
        %2081 = vmatprep.subr.mxu0 %v2023
        %2082 = vmatpush1.msra.mxu0 %v2022
        %2083 = vmatprep.subr.mxu0 %v2026
        %2084 = vmatpush1.msra.mxu0 %v2025
        %2085 = vmatprep.subr.mxu0 %v2029
        %2086 = vmatpush1.msra.mxu0 %v2028
        %2087 = vmatprep.subr.mxu0 %v2032
        %2088 = vmatpush1.msra.mxu0 %v2031
        %2089 = vmatprep.subr.mxu0 %v2035
        %2090 = vmatpush1.msra.mxu0 %v2034
        %2091 = vmatprep.subr.mxu0 %v2038
        %2092 = vmatpush1.msra.mxu0 %v2037
        %2093 = vmatprep.subr.mxu0 %v2041
        %2094 = vmatpush1.msra.mxu0 %v2040
        %2095 = vmatprep.subr.mxu0 %v2044
        %2096 = vmatpush1.msra.mxu0 %v2043
        %2097 = vmatprep.subr.mxu0 %v2047
        %2098 = vmatpush1.msra.mxu0 %v2046
        %2099 = vmatprep.subr.mxu0 %v2050
        %2100 = vmatpush1.msra.mxu0 %v2049
        %2101 = vmatprep.subr.mxu0 0.0
        %2102 = vmatpush1.msra.mxu0 0.0
        %2103 = vmatprep.subr.mxu0 0.0
        %2104 = vmatpush1.msra.mxu0 0.0
        %2105 = vmatprep.subr.mxu0 0.0
        %2106 = vmatpush1.msra.mxu0 0.0
        %2107 = vmatprep.subr.mxu0 0.0
        %2108 = vmatpush1.msra.mxu0 0.0
        %2109 = vmatprep.subr.mxu0 0.0
        %2110 = vmatpush1.msra.mxu0 0.0
        %2111 = vmatprep.subr.mxu0 0.0
        %2112 = vmatpush1.msra.mxu0 0.0
        %2113 = vmatprep.subr.mxu0 0.0
        %2114 = vmatpush1.msra.mxu0 0.0
        %2115 = vmatprep.subr.mxu0 0.0
        %2116 = vmatpush1.msra.mxu0 0.0
        %2117 = vmatprep.subr.mxu0 0.0
        %2118 = vmatpush1.msra.mxu0 0.0
        %2119 = vmatprep.subr.mxu0 0.0
        %2120 = vmatpush1.msra.mxu0 0.0
        %2121 = vmatprep.subr.mxu0 0.0
        %2122 = vmatpush1.msra.mxu0 0.0
        %2123 = vmatprep.subr.mxu0 0.0
        %2124 = vmatpush1.msra.mxu0 0.0
        %2125 = vmatprep.subr.mxu0 0.0
        %2126 = vmatpush1.msra.mxu0 0.0
        %2127 = vmatprep.subr.mxu0 0.0
        %2128 = vmatpush1.msra.mxu0 0.0
        %2129 = vmatprep.subr.mxu0 0.0
        %2130 = vmatpush1.msra.mxu0 0.0
        %2131 = vmatprep.subr.mxu0 0.0
        %2132 = vmatpush1.msra.mxu0 0.0
        %2133 = vmatprep.mubr.f32.mxu0 0.0
        %2134 = vmatmul.mubr.f32.gmra.mrb[0].mxu0 %v1969
        %v2135 = vpop.f32.mrb[0].mxu0
        %v2136 = vadd.f32 %v2057, %v2135
        %v2137 = vpop.f32.mrb[0].mxu0
        %v2138 = vadd.f32 %v2061, %v2137
        %2139 = vdwg.mxu0
        %2140 = vmatprep.subr.mxu0 0.0
        %2141 = vmatpush1.msra.mxu0 %v2006
        %2142 = vmatprep.subr.mxu0 0.0
        %2143 = vmatpush1.msra.mxu0 %v2009
        %2144 = vmatprep.subr.mxu0 0.0
        %2145 = vmatpush1.msra.mxu0 %v2012
        %2146 = vmatprep.subr.mxu0 0.0
        %2147 = vmatpush1.msra.mxu0 %v2015
        %2148 = vmatprep.subr.mxu0 0.0
        %2149 = vmatpush1.msra.mxu0 %v2018
        %2150 = vmatprep.subr.mxu0 0.0
        %2151 = vmatpush1.msra.mxu0 %v2021
        %2152 = vmatprep.subr.mxu0 0.0
        %2153 = vmatpush1.msra.mxu0 %v2024
        %2154 = vmatprep.subr.mxu0 0.0
        %2155 = vmatpush1.msra.mxu0 %v2027
        %2156 = vmatprep.subr.mxu0 0.0
        %2157 = vmatpush1.msra.mxu0 %v2030
        %2158 = vmatprep.subr.mxu0 0.0
        %2159 = vmatpush1.msra.mxu0 %v2033
        %2160 = vmatprep.subr.mxu0 0.0
        %2161 = vmatpush1.msra.mxu0 %v2036
        %2162 = vmatprep.subr.mxu0 0.0
        %2163 = vmatpush1.msra.mxu0 %v2039
        %2164 = vmatprep.subr.mxu0 0.0
        %2165 = vmatpush1.msra.mxu0 %v2042
        %2166 = vmatprep.subr.mxu0 0.0
        %2167 = vmatpush1.msra.mxu0 %v2045
        %2168 = vmatprep.subr.mxu0 0.0
        %2169 = vmatpush1.msra.mxu0 %v2048
        %2170 = vmatprep.subr.mxu0 0.0
        %2171 = vmatpush1.msra.mxu0 %v2051
        %2172 = vmatprep.subr.mxu0 0.0
        %2173 = vmatpush1.msra.mxu0 0.0
        %2174 = vmatprep.subr.mxu0 0.0
        %2175 = vmatpush1.msra.mxu0 0.0
        %2176 = vmatprep.subr.mxu0 0.0
        %2177 = vmatpush1.msra.mxu0 0.0
        %2178 = vmatprep.subr.mxu0 0.0
        %2179 = vmatpush1.msra.mxu0 0.0
        %2180 = vmatprep.subr.mxu0 0.0
        %2181 = vmatpush1.msra.mxu0 0.0
        %2182 = vmatprep.subr.mxu0 0.0
        %2183 = vmatpush1.msra.mxu0 0.0
        %2184 = vmatprep.subr.mxu0 0.0
        %2185 = vmatpush1.msra.mxu0 0.0
        %2186 = vmatprep.subr.mxu0 0.0
        %2187 = vmatpush1.msra.mxu0 0.0
        %2188 = vmatprep.subr.mxu0 0.0
        %2189 = vmatpush1.msra.mxu0 0.0
        %2190 = vmatprep.subr.mxu0 0.0
        %2191 = vmatpush1.msra.mxu0 0.0
        %2192 = vmatprep.subr.mxu0 0.0
        %2193 = vmatpush1.msra.mxu0 0.0
        %2194 = vmatprep.subr.mxu0 0.0
        %2195 = vmatpush1.msra.mxu0 0.0
        %2196 = vmatprep.subr.mxu0 0.0
        %2197 = vmatpush1.msra.mxu0 0.0
        %2198 = vmatprep.subr.mxu0 0.0
        %2199 = vmatpush1.msra.mxu0 0.0
        %2200 = vmatprep.subr.mxu0 0.0
        %2201 = vmatpush1.msra.mxu0 0.0
        %2202 = vmatprep.subr.mxu0 0.0
        %2203 = vmatpush1.msra.mxu0 0.0
        %2204 = vmatprep.mubr.f32.mxu0 0.0
        %2205 = vmatmul.mubr.f32.gmra.mrb[0].mxu0 %v1969
        %v2206 = vpop.f32.mrb[0].mxu0
        %v2207 = vadd.f32 %v2065, %v2206
        %v2208 = vpop.f32.mrb[0].mxu0
        %2209 = vdwg.mxu0
        %v2210 = vld [vmem:[#allocation13] sm:$0xff]
        %v2211 = vld [vmem:[#allocation13 + $0x8] sm:$0xf]
        %v2212 = vld [vmem:[#allocation13 + $0xc] sm:$0xff]
        %v2213 = vld [vmem:[#allocation13 + $0x14] sm:$0xf]
        %v2214 = vld [vmem:[#allocation13 + $0x18] sm:$0xff]
        %v2215 = vld [vmem:[#allocation13 + $0x20] sm:$0xf]
        %v2216 = vld [vmem:[#allocation13 + $0x24] sm:$0xff]
        %v2217 = vld [vmem:[#allocation13 + $0x2c] sm:$0xf]
        %v2218 = vld [vmem:[#allocation13 + $0x30] sm:$0xff]
        %v2219 = vld [vmem:[#allocation13 + $0x38] sm:$0xf]
        %v2220 = vld [vmem:[#allocation13 + $0x3c] sm:$0xff]
        %v2221 = vld [vmem:[#allocation13 + $0x44] sm:$0xf]
        %v2222 = vld [vmem:[#allocation13 + $0x48] sm:$0xff]
        %v2223 = vld [vmem:[#allocation13 + $0x50] sm:$0xf]
        %v2224 = vld [vmem:[#allocation13 + $0x54] sm:$0xff]
        %v2225 = vld [vmem:[#allocation13 + $0x5c] sm:$0xf]
        %v2226 = vld [vmem:[#allocation13 + $0x60] sm:$0xff]
        %v2227 = vld [vmem:[#allocation13 + $0x68] sm:$0xf]
        %v2228 = vld [vmem:[#allocation13 + $0x6c] sm:$0xff]
        %v2229 = vld [vmem:[#allocation13 + $0x74] sm:$0xf]
        %v2230 = vld [vmem:[#allocation13 + $0x78] sm:$0xff]
        %v2231 = vld [vmem:[#allocation13 + $0x80] sm:$0xf]
        %v2232 = vld [vmem:[#allocation13 + $0x84] sm:$0xff]
        %v2233 = vld [vmem:[#allocation13 + $0x8c] sm:$0xf]
        %v2234 = vld [vmem:[#allocation13 + $0x90] sm:$0xff]
        %v2235 = vld [vmem:[#allocation13 + $0x98] sm:$0xf]
        %v2236 = vld [vmem:[#allocation13 + $0x9c] sm:$0xff]
        %v2237 = vld [vmem:[#allocation13 + $0xa4] sm:$0xf]
        %v2238 = vld [vmem:[#allocation13 + $0xa8] sm:$0xff]
        %v2239 = vld [vmem:[#allocation13 + $0xb0] sm:$0xf]
        %v2240 = vld [vmem:[#allocation13 + $0xb4] sm:$0xff]
        %v2241 = vld [vmem:[#allocation13 + $0xbc] sm:$0xf]
        %v2242 = vunpack.c.l.bf16 %v2210
        %v2243 = vunpack.c.h.bf16 %v2210
        %v2244 = vunpack.c.l.bf16 %v2211
        %v2245 = vunpack.c.l.bf16 %v2212
        %v2246 = vunpack.c.h.bf16 %v2212
        %v2247 = vunpack.c.l.bf16 %v2213
        %v2248 = vunpack.c.l.bf16 %v2214
        %v2249 = vunpack.c.h.bf16 %v2214
        %v2250 = vunpack.c.l.bf16 %v2215
        %v2251 = vunpack.c.l.bf16 %v2216
        %v2252 = vunpack.c.h.bf16 %v2216
        %v2253 = vunpack.c.l.bf16 %v2217
        %v2254 = vunpack.c.l.bf16 %v2218
        %v2255 = vunpack.c.h.bf16 %v2218
        %v2256 = vunpack.c.l.bf16 %v2219
        %v2257 = vunpack.c.l.bf16 %v2220
        %v2258 = vunpack.c.h.bf16 %v2220
        %v2259 = vunpack.c.l.bf16 %v2221
        %v2260 = vunpack.c.l.bf16 %v2222
        %v2261 = vunpack.c.h.bf16 %v2222
        %v2262 = vunpack.c.l.bf16 %v2223
        %v2263 = vunpack.c.l.bf16 %v2224
        %v2264 = vunpack.c.h.bf16 %v2224
        %v2265 = vunpack.c.l.bf16 %v2225
        %v2266 = vunpack.c.l.bf16 %v2226
        %v2267 = vunpack.c.h.bf16 %v2226
        %v2268 = vunpack.c.l.bf16 %v2227
        %v2269 = vunpack.c.l.bf16 %v2228
        %v2270 = vunpack.c.h.bf16 %v2228
        %v2271 = vunpack.c.l.bf16 %v2229
        %v2272 = vunpack.c.l.bf16 %v2230
        %v2273 = vunpack.c.h.bf16 %v2230
        %v2274 = vunpack.c.l.bf16 %v2231
        %v2275 = vunpack.c.l.bf16 %v2232
        %v2276 = vunpack.c.h.bf16 %v2232
        %v2277 = vunpack.c.l.bf16 %v2233
        %v2278 = vunpack.c.l.bf16 %v2234
        %v2279 = vunpack.c.h.bf16 %v2234
        %v2280 = vunpack.c.l.bf16 %v2235
        %v2281 = vunpack.c.l.bf16 %v2236
        %v2282 = vunpack.c.h.bf16 %v2236
        %v2283 = vunpack.c.l.bf16 %v2237
        %v2284 = vunpack.c.l.bf16 %v2238
        %v2285 = vunpack.c.h.bf16 %v2238
        %v2286 = vunpack.c.l.bf16 %v2239
        %v2287 = vunpack.c.l.bf16 %v2240
        %v2288 = vunpack.c.h.bf16 %v2240
        %v2289 = vunpack.c.l.bf16 %v2241
        %2290 = vmatprep.subr.mxu0 %v2243
        %2291 = vmatpush1.msra.mxu0 %v2242
        %2292 = vmatprep.subr.mxu0 %v2246
        %2293 = vmatpush1.msra.mxu0 %v2245
        %2294 = vmatprep.subr.mxu0 %v2249
        %2295 = vmatpush1.msra.mxu0 %v2248
        %2296 = vmatprep.subr.mxu0 %v2252
        %2297 = vmatpush1.msra.mxu0 %v2251
        %2298 = vmatprep.subr.mxu0 %v2255
        %2299 = vmatpush1.msra.mxu0 %v2254
        %2300 = vmatprep.subr.mxu0 %v2258
        %2301 = vmatpush1.msra.mxu0 %v2257
        %2302 = vmatprep.subr.mxu0 %v2261
        %2303 = vmatpush1.msra.mxu0 %v2260
        %2304 = vmatprep.subr.mxu0 %v2264
        %2305 = vmatpush1.msra.mxu0 %v2263
        %2306 = vmatprep.subr.mxu0 %v2267
        %2307 = vmatpush1.msra.mxu0 %v2266
        %2308 = vmatprep.subr.mxu0 %v2270
        %2309 = vmatpush1.msra.mxu0 %v2269
        %2310 = vmatprep.subr.mxu0 %v2273
        %2311 = vmatpush1.msra.mxu0 %v2272
        %2312 = vmatprep.subr.mxu0 %v2276
        %2313 = vmatpush1.msra.mxu0 %v2275
        %2314 = vmatprep.subr.mxu0 %v2279
        %2315 = vmatpush1.msra.mxu0 %v2278
        %2316 = vmatprep.subr.mxu0 %v2282
        %2317 = vmatpush1.msra.mxu0 %v2281
        %2318 = vmatprep.subr.mxu0 %v2285
        %2319 = vmatpush1.msra.mxu0 %v2284
        %2320 = vmatprep.subr.mxu0 %v2288
        %2321 = vmatpush1.msra.mxu0 %v2287
        %2322 = vmatprep.subr.mxu0 0.0
        %2323 = vmatpush1.msra.mxu0 0.0
        %2324 = vmatprep.subr.mxu0 0.0
        %2325 = vmatpush1.msra.mxu0 0.0
        %2326 = vmatprep.subr.mxu0 0.0
        %2327 = vmatpush1.msra.mxu0 0.0
        %2328 = vmatprep.subr.mxu0 0.0
        %2329 = vmatpush1.msra.mxu0 0.0
        %2330 = vmatprep.subr.mxu0 0.0
        %2331 = vmatpush1.msra.mxu0 0.0
        %2332 = vmatprep.subr.mxu0 0.0
        %2333 = vmatpush1.msra.mxu0 0.0
        %2334 = vmatprep.subr.mxu0 0.0
        %2335 = vmatpush1.msra.mxu0 0.0
        %2336 = vmatprep.subr.mxu0 0.0
        %2337 = vmatpush1.msra.mxu0 0.0
        %2338 = vmatprep.subr.mxu0 0.0
        %2339 = vmatpush1.msra.mxu0 0.0
        %2340 = vmatprep.subr.mxu0 0.0
        %2341 = vmatpush1.msra.mxu0 0.0
        %2342 = vmatprep.subr.mxu0 0.0
        %2343 = vmatpush1.msra.mxu0 0.0
        %2344 = vmatprep.subr.mxu0 0.0
        %2345 = vmatpush1.msra.mxu0 0.0
        %2346 = vmatprep.subr.mxu0 0.0
        %2347 = vmatpush1.msra.mxu0 0.0
        %2348 = vmatprep.subr.mxu0 0.0
        %2349 = vmatpush1.msra.mxu0 0.0
        %2350 = vmatprep.subr.mxu0 0.0
        %2351 = vmatpush1.msra.mxu0 0.0
        %2352 = vmatprep.subr.mxu0 0.0
        %2353 = vmatpush1.msra.mxu0 0.0
        %2354 = vmatprep.mubr.f32.mxu0 0.0
        %2355 = vmatmul.mubr.f32.gmra.mrb[0].mxu0 %v1971
        %v2356 = vpop.f32.mrb[0].mxu0
        %v2357 = vadd.f32 0.0, %v2356
        %v2358 = vpop.f32.mrb[0].mxu0
        %v2359 = vadd.f32 0.0, %v2358
        %2360 = vdwg.mxu0
        %2361 = vmatprep.subr.mxu0 0.0
        %2362 = vmatpush1.msra.mxu0 %v2244
        %2363 = vmatprep.subr.mxu0 0.0
        %2364 = vmatpush1.msra.mxu0 %v2247
        %2365 = vmatprep.subr.mxu0 0.0
        %2366 = vmatpush1.msra.mxu0 %v2250
        %2367 = vmatprep.subr.mxu0 0.0
        %2368 = vmatpush1.msra.mxu0 %v2253
        %2369 = vmatprep.subr.mxu0 0.0
        %2370 = vmatpush1.msra.mxu0 %v2256
        %2371 = vmatprep.subr.mxu0 0.0
        %2372 = vmatpush1.msra.mxu0 %v2259
        %2373 = vmatprep.subr.mxu0 0.0
        %2374 = vmatpush1.msra.mxu0 %v2262
        %2375 = vmatprep.subr.mxu0 0.0
        %2376 = vmatpush1.msra.mxu0 %v2265
        %2377 = vmatprep.subr.mxu0 0.0
        %2378 = vmatpush1.msra.mxu0 %v2268
        %2379 = vmatprep.subr.mxu0 0.0
        %2380 = vmatpush1.msra.mxu0 %v2271
        %2381 = vmatprep.subr.mxu0 0.0
        %2382 = vmatpush1.msra.mxu0 %v2274
        %2383 = vmatprep.subr.mxu0 0.0
        %2384 = vmatpush1.msra.mxu0 %v2277
        %2385 = vmatprep.subr.mxu0 0.0
        %2386 = vmatpush1.msra.mxu0 %v2280
        %2387 = vmatprep.subr.mxu0 0.0
        %2388 = vmatpush1.msra.mxu0 %v2283
        %2389 = vmatprep.subr.mxu0 0.0
        %2390 = vmatpush1.msra.mxu0 %v2286
        %2391 = vmatprep.subr.mxu0 0.0
        %2392 = vmatpush1.msra.mxu0 %v2289
        %2393 = vmatprep.subr.mxu0 0.0
        %2394 = vmatpush1.msra.mxu0 0.0
        %2395 = vmatprep.subr.mxu0 0.0
        %2396 = vmatpush1.msra.mxu0 0.0
        %2397 = vmatprep.subr.mxu0 0.0
        %2398 = vmatpush1.msra.mxu0 0.0
        %2399 = vmatprep.subr.mxu0 0.0
        %2400 = vmatpush1.msra.mxu0 0.0
        %2401 = vmatprep.subr.mxu0 0.0
        %2402 = vmatpush1.msra.mxu0 0.0
        %2403 = vmatprep.subr.mxu0 0.0
        %2404 = vmatpush1.msra.mxu0 0.0
        %2405 = vmatprep.subr.mxu0 0.0
        %2406 = vmatpush1.msra.mxu0 0.0
        %2407 = vmatprep.subr.mxu0 0.0
        %2408 = vmatpush1.msra.mxu0 0.0
        %2409 = vmatprep.subr.mxu0 0.0
        %2410 = vmatpush1.msra.mxu0 0.0
        %2411 = vmatprep.subr.mxu0 0.0
        %2412 = vmatpush1.msra.mxu0 0.0
        %2413 = vmatprep.subr.mxu0 0.0
        %2414 = vmatpush1.msra.mxu0 0.0
        %2415 = vmatprep.subr.mxu0 0.0
        %2416 = vmatpush1.msra.mxu0 0.0
        %2417 = vmatprep.subr.mxu0 0.0
        %2418 = vmatpush1.msra.mxu0 0.0
        %2419 = vmatprep.subr.mxu0 0.0
        %2420 = vmatpush1.msra.mxu0 0.0
        %2421 = vmatprep.subr.mxu0 0.0
        %2422 = vmatpush1.msra.mxu0 0.0
        %2423 = vmatprep.subr.mxu0 0.0
        %2424 = vmatpush1.msra.mxu0 0.0
        %2425 = vmatprep.mubr.f32.mxu0 0.0
        %2426 = vmatmul.mubr.f32.gmra.mrb[0].mxu0 %v1971
        %v2427 = vpop.f32.mrb[0].mxu0
        %v2428 = vadd.f32 0.0, %v2427
        %v2429 = vpop.f32.mrb[0].mxu0
        %2430 = vdwg.mxu0
        %v2431 = vld [vmem:[%s15] sm:$0x1]
        %v2432 = vadd.f32 %v2136, %v2357
        %v2433 = vxor.u32 %v2432, 2147483648
        %v2434 = vmul.f32 %v2433, 1.442695
        %v2435 = vpow.pop %v2434
        %v2436 = vadd.f32 %v2435, 1.0
        %v2437 = vrcp.pop %v2436
        %v2438 = vmul.f32 1.0, %v2437
        %v2439 = vadd.f32 %v2138, %v2359
        %v2440 = vxor.u32 %v2439, 2147483648
        %v2441 = vmul.f32 %v2440, 1.442695
        %v2442 = vpow.pop %v2441
        %v2443 = vadd.f32 %v2442, 1.0
        %v2444 = vrcp.pop %v2443
        %v2445 = vmul.f32 1.0, %v2444
        %v2447 = vlaneseq
        %v2448 = vshrl.u32 %v2447, 7
        %v2449 = vsub.s32 0, %v2448
        %v2450 = vrot.slane %v2431, %v2449
        %v2452 = vadd.f32 %v2428, %v2450
        %v2453 = vmul.f32 %v2438, %v2452
        %v2454 = vadd.f32 %v2207, %v2453
        %v2455 = vtanh.pop %v2454
        %v2456 = vsub.f32 1.0, %v2445
        %v2457 = vmul.f32 %v2456, %v2455
        %v2458 = vmul.f32 %v2445, %v1971
        %v2459 = vadd.f32 %v2457, %v2458
        %2460 = vst [vmem:[#allocation4] sm:$0xff] %v2459
        %v2461 = vld [vmem:[%s16] sm:$0xf]
        %v2462 = vld [vmem:[%s16 + $0x4] sm:$0xf]
        %v2463 = vld [vmem:[%s16 + $0x8] sm:$0xf]
        %v2464 = vld [vmem:[%s16 + $0xc] sm:$0xf]
        %v2465 = vld [vmem:[%s16 + $0x10] sm:$0xf]
        %v2466 = vld [vmem:[%s16 + $0x14] sm:$0xf]
        %v2467 = vld [vmem:[%s16 + $0x18] sm:$0xf]
        %v2468 = vld [vmem:[%s16 + $0x1c] sm:$0xf]
        %v2469 = vld [vmem:[%s16 + $0x20] sm:$0xf]
        %v2470 = vld [vmem:[%s16 + $0x24] sm:$0xf]
        %v2471 = vld [vmem:[%s16 + $0x28] sm:$0xf]
        %v2472 = vld [vmem:[%s16 + $0x2c] sm:$0xf]
        %v2473 = vld [vmem:[%s16 + $0x30] sm:$0xf]
        %v2474 = vld [vmem:[%s16 + $0x34] sm:$0xf]
        %v2475 = vld [vmem:[%s16 + $0x38] sm:$0xf]
        %v2476 = vld [vmem:[%s16 + $0x3c] sm:$0xf]
        %v2477 = vunpack.c.l.bf16 %v2461
        %v2478 = vunpack.c.l.bf16 %v2462
        %v2479 = vunpack.c.l.bf16 %v2463
        %v2480 = vunpack.c.l.bf16 %v2464
        %v2481 = vunpack.c.l.bf16 %v2465
        %v2482 = vunpack.c.l.bf16 %v2466
        %v2483 = vunpack.c.l.bf16 %v2467
        %v2484 = vunpack.c.l.bf16 %v2468
        %v2485 = vunpack.c.l.bf16 %v2469
        %v2486 = vunpack.c.l.bf16 %v2470
        %v2487 = vunpack.c.l.bf16 %v2471
        %v2488 = vunpack.c.l.bf16 %v2472
        %v2489 = vunpack.c.l.bf16 %v2473
        %v2490 = vunpack.c.l.bf16 %v2474
        %v2491 = vunpack.c.l.bf16 %v2475
        %v2492 = vunpack.c.l.bf16 %v2476
        %v2493 = vld [vmem:[%s17] sm:$0x1]
        %v2495 = vlaneseq
        %v2496 = vshrl.u32 %v2495, 7
        %v2497 = vsub.s32 0, %v2496
        %v2498 = vrot.slane %v2493, %v2497
        %2500 = vmatprep.subr.mxu0 0.0
        %2501 = vmatpush1.msra.mxu0 %v2477
        %2502 = vmatprep.subr.mxu0 0.0
        %2503 = vmatpush1.msra.mxu0 %v2478
        %2504 = vmatprep.subr.mxu0 0.0
        %2505 = vmatpush1.msra.mxu0 %v2479
        %2506 = vmatprep.subr.mxu0 0.0
        %2507 = vmatpush1.msra.mxu0 %v2480
        %2508 = vmatprep.subr.mxu0 0.0
        %2509 = vmatpush1.msra.mxu0 %v2481
        %2510 = vmatprep.subr.mxu0 0.0
        %2511 = vmatpush1.msra.mxu0 %v2482
        %2512 = vmatprep.subr.mxu0 0.0
        %2513 = vmatpush1.msra.mxu0 %v2483
        %2514 = vmatprep.subr.mxu0 0.0
        %2515 = vmatpush1.msra.mxu0 %v2484
        %2516 = vmatprep.subr.mxu0 0.0
        %2517 = vmatpush1.msra.mxu0 %v2485
        %2518 = vmatprep.subr.mxu0 0.0
        %2519 = vmatpush1.msra.mxu0 %v2486
        %2520 = vmatprep.subr.mxu0 0.0
        %2521 = vmatpush1.msra.mxu0 %v2487
        %2522 = vmatprep.subr.mxu0 0.0
        %2523 = vmatpush1.msra.mxu0 %v2488
        %2524 = vmatprep.subr.mxu0 0.0
        %2525 = vmatpush1.msra.mxu0 %v2489
        %2526 = vmatprep.subr.mxu0 0.0
        %2527 = vmatpush1.msra.mxu0 %v2490
        %2528 = vmatprep.subr.mxu0 0.0
        %2529 = vmatpush1.msra.mxu0 %v2491
        %2530 = vmatprep.subr.mxu0 0.0
        %2531 = vmatpush1.msra.mxu0 %v2492
        %2532 = vmatprep.subr.mxu0 0.0
        %2533 = vmatpush1.msra.mxu0 0.0
        %2534 = vmatprep.subr.mxu0 0.0
        %2535 = vmatpush1.msra.mxu0 0.0
        %2536 = vmatprep.subr.mxu0 0.0
        %2537 = vmatpush1.msra.mxu0 0.0
        %2538 = vmatprep.subr.mxu0 0.0
        %2539 = vmatpush1.msra.mxu0 0.0
        %2540 = vmatprep.subr.mxu0 0.0
        %2541 = vmatpush1.msra.mxu0 0.0
        %2542 = vmatprep.subr.mxu0 0.0
        %2543 = vmatpush1.msra.mxu0 0.0
        %2544 = vmatprep.subr.mxu0 0.0
        %2545 = vmatpush1.msra.mxu0 0.0
        %2546 = vmatprep.subr.mxu0 0.0
        %2547 = vmatpush1.msra.mxu0 0.0
        %2548 = vmatprep.subr.mxu0 0.0
        %2549 = vmatpush1.msra.mxu0 0.0
        %2550 = vmatprep.subr.mxu0 0.0
        %2551 = vmatpush1.msra.mxu0 0.0
        %2552 = vmatprep.subr.mxu0 0.0
        %2553 = vmatpush1.msra.mxu0 0.0
        %2554 = vmatprep.subr.mxu0 0.0
        %2555 = vmatpush1.msra.mxu0 0.0
        %2556 = vmatprep.subr.mxu0 0.0
        %2557 = vmatpush1.msra.mxu0 0.0
        %2558 = vmatprep.subr.mxu0 0.0
        %2559 = vmatpush1.msra.mxu0 0.0
        %2560 = vmatprep.subr.mxu0 0.0
        %2561 = vmatpush1.msra.mxu0 0.0
        %2562 = vmatprep.subr.mxu0 0.0
        %2563 = vmatpush1.msra.mxu0 0.0
        %2564 = vmatprep.mubr.f32.mxu0 0.0
        %2565 = vmatmul.mubr.f32.gmra.mrb[0].mxu0 %v2459
        %v2566 = vpop.f32.mrb[0].mxu0
        %v2567 = vadd.f32 %v2498, %v2566
        %v2568 = vpop.f32.mrb[0].mxu0
        %2569 = vdwg.mxu0
        %v2570 = vtanh.pop %v2567
        %2571 = vst [vmem:[%s718] sm:$0xff] %v2570
        %p2572 = scmp.eq.s32.totalorder %s38, 7
        // Predicated region
        $region117: #{custom_gru_forward_seq.1} parent=91 // pred_check
          %p2573 = pneg %p2572
        $region118: #{custom_gru_forward_seq.1} parent=91 // pred_check_branch
          %2575 = sbr.rel (%p2573) target = $region120
        $region119: #{custom_gru_forward_seq.1} parent=91 // pred_region
          %v2576 = vld [vmem:[#allocation2] sm:$0xff]
          %v2577 = vld [vmem:[#allocation2 + $0x8] sm:$0xff]
          %2578 = vst [vmem:[#allocation14] sm:$0xff] %v2576
          %2579 = vst [vmem:[#allocation14 + $0x8] sm:$0xff] %v2577
          %v2580 = vld [vmem:[#allocation3] sm:$0xff]
          %2581 = vst [vmem:[#allocation15] sm:$0xff] %v2580
          %v2582 = vld [vmem:[#allocation4] sm:$0xff]
          %2583 = vst [vmem:[#allocation17] sm:$0xff] %v2582
        $region120: #{custom_gru_forward_seq.1} parent=91 // pred_fallthru
          _
        %p2584 = scmp.lt.s32.totalorder %s38, 7
        %s2585 = scalar_select %p2584, %s38, 7
        %s2586 = smul.addr %s2585, 8
        %s2587 = scalar_lea.vmem %s21, %s2586
        // Predicated region
        $region121: #{custom_gru_forward_seq.1} parent=91 // pred_check
          %p2588 = pneg %p434
        $region122: #{custom_gru_forward_seq.1} parent=91 // pred_check_branch
          %2590 = sbr.rel (%p2588) target = $region124
        $region123: #{custom_gru_forward_seq.1} parent=91 // pred_region
          %s2592 = ssub.s32 256, 256
          %2593 = vsyncadd [#allocation7], %s2592
          %s2595 = sshll.u32 [#allocation14], 4
          %s2596 = int_to_ptr.vmem [resolvable:$true] %s2595
          %2598 = dma.vmem_to_hbm [thread:$0]  %s2596, 256, %s18, [#allocation7]
        $region124: #{custom_gru_forward_seq.1} parent=91 // pred_fallthru
          _
        // Predicated region
        $region125: #{custom_gru_forward_seq.1} parent=91 // pred_check
          %p2599 = pneg %p455
        $region126: #{custom_gru_forward_seq.1} parent=91 // pred_check_branch
          %2601 = sbr.rel (%p2599) target = $region128
        $region127: #{custom_gru_forward_seq.1} parent=91 // pred_region
          %s2603 = ssub.s32 128, 128
          %2604 = vsyncadd [#allocation16], %s2603
          %s2606 = sshll.u32 [#allocation15], 4
          %s2607 = int_to_ptr.vmem [resolvable:$true] %s2606
          %2609 = dma.vmem_to_hbm [thread:$0]  %s2607, 128, %s19, [#allocation16]
        $region128: #{custom_gru_forward_seq.1} parent=91 // pred_fallthru
          _
        // Predicated region
        $region129: #{custom_gru_forward_seq.1} parent=91 // pred_check
          %p2610 = pneg %p476
        $region130: #{custom_gru_forward_seq.1} parent=91 // pred_check_branch
          %2612 = sbr.rel (%p2610) target = $region132
        $region131: #{custom_gru_forward_seq.1} parent=91 // pred_region
          %s2614 = ssub.s32 128, 128
          %2615 = vsyncadd [#allocation16], %s2614
          %s2617 = sshll.u32 [#allocation17], 4
          %s2618 = int_to_ptr.vmem [resolvable:$true] %s2617
          %2620 = dma.vmem_to_hbm [thread:$0]  %s2618, 128, %s20, [#allocation16]
        $region132: #{custom_gru_forward_seq.1} parent=91 // pred_fallthru
          _
        // Predicated region
        $region133: #{custom_gru_forward_seq.1} parent=91 // pred_check
          %p2621 = pneg %p502
        $region134: #{custom_gru_forward_seq.1} parent=91 // pred_check_branch
          %2623 = sbr.rel (%p2621) target = $region136
        $region135: #{custom_gru_forward_seq.1} parent=91 // pred_region
          _
        $region136: #{custom_gru_forward_seq.1} parent=91 // pred_fallthru
          _
        // Predicated region
        $region137: #{custom_gru_forward_seq.1} parent=91 // pred_check
          %p2624 = pneg %p434
        $region138: #{custom_gru_forward_seq.1} parent=91 // pred_check_branch
          %2626 = sbr.rel (%p2624) target = $region140
        $region139: #{custom_gru_forward_seq.1} parent=91 // pred_region
          %2627 = dma.done [#allocation7], 256
        $region140: #{custom_gru_forward_seq.1} parent=91 // pred_fallthru
          _
        // Predicated region
        $region141: #{custom_gru_forward_seq.1} parent=91 // pred_check
          %p2628 = pneg %p455
        $region142: #{custom_gru_forward_seq.1} parent=91 // pred_check_branch
          %2630 = sbr.rel (%p2628) target = $region144
        $region143: #{custom_gru_forward_seq.1} parent=91 // pred_region
          %2631 = dma.done [#allocation16], 128
        $region144: #{custom_gru_forward_seq.1} parent=91 // pred_fallthru
          _
        // Predicated region
        $region145: #{custom_gru_forward_seq.1} parent=91 // pred_check
          %p2632 = pneg %p476
        $region146: #{custom_gru_forward_seq.1} parent=91 // pred_check_branch
          %2634 = sbr.rel (%p2632) target = $region148
        $region147: #{custom_gru_forward_seq.1} parent=91 // pred_region
          %2635 = dma.done [#allocation16], 128
        $region148: #{custom_gru_forward_seq.1} parent=91 // pred_fallthru
          _
      $region92: #{custom_gru_forward_seq.1} parent=5 // pred_fallthru
        _
      %p2636 = scmp.le.s32.totalorder 2, %s33
      // Predicated region
      $region149: #{custom_gru_forward_seq.1} parent=5 // pred_check
        %p2637 = pneg %p2636
      $region150: #{custom_gru_forward_seq.1} parent=5 // pred_check_branch
        %2639 = sbr.rel (%p2637) target = $region152
      $region151: #{custom_gru_forward_seq.1} parent=5 // pred_region
        %s2640 = ssub.s32 %s33, 2
        // Predicated region
        $region153: #{custom_gru_forward_seq.1} parent=151 // pred_check
          %p2641 = pneg %p508
        $region154: #{custom_gru_forward_seq.1} parent=151 // pred_check_branch
          %2643 = sbr.rel (%p2641) target = $region156
        $region155: #{custom_gru_forward_seq.1} parent=151 // pred_region
          %p2644 = scmp.lt.s32.totalorder %s39, 7
          %s2645 = scalar_select %p2644, %s39, 7
          %s2646 = smul.addr %s2645, 8
          %s2647 = scalar_lea.vmem %s21, %s2646
        $region156: #{custom_gru_forward_seq.1} parent=151 // pred_fallthru
          _
      $region152: #{custom_gru_forward_seq.1} parent=5 // pred_fallthru
        _
    $region6: #{custom_gru_forward_seq.1} parent=1 // loop_footer
      %s37 = sadd.s32 1, %s33
    $region7: #{custom_gru_forward_seq.1} parent=1 // loop_footer_branch
      %32 = sbr.rel target = $region3
    $region8: #{custom_gru_forward_seq.1} parent=1 // loop_exit
      _
    %2648 = vsyncpa [#allocation6], 1
    %s2649 = scalar_lea.sflag [#allocation6], 1
    %2650 = vsyncpa %s2649, 1
    %2651 = vsyncpa [#allocation9], 1
    %2652 = vsyncpa [#allocation12], 1
    %2653 = vsyncpa [#allocation7], 1
    %s2654 = scalar_lea.sflag [#allocation7], 1
    %2655 = vsyncpa %s2654, 1
    %2656 = vsyncpa [#allocation16], 1

</llo_original>
